<compile_context>
chip_gen: v7x
topology: tpu7x:2x2x1
jax: 0.10.0
libtpu: 0.0.40
codegen_flags: <defaults>
</compile_context>

<pallas_src>
import functools

import jax
import jax.numpy as jnp
import numpy as np
from jax.experimental import pallas as pl
from jax.experimental.pallas import tpu as pltpu


# -----------------------------------------------------------------------------
# Fused kernel: residual + folded depthwise conv -> qkv -> MHA softmax -> proj
# -----------------------------------------------------------------------------
def conv_attention_kernel(xpad_ref, wconv_ref, bconv_ref, wqkv_ref, wproj_ref,
                          bproj_ref, out_ref, qkv_s, o_s,
                          *, H, W, ksize, num_heads):
    # Block shapes (one batch element per grid step):
    #   xpad_ref : (1, H+2p, W+2p, C) f32   spatially padded input (NHWC)
    #   wconv_ref: (k, k, C)          f32   folded depthwise weight  wq+wk+wv
    #   bconv_ref: (1, C)             f32   folded conv bias         bq+bk+bv
    #   wqkv_ref : (C, 3C)            bf16  qkv weight^T, q-block pre-scaled
    #   wproj_ref: (C, C)             bf16  proj weight^T
    #   bproj_ref: (1, C)             f32   proj bias
    #   out_ref  : (1, N, C)                N = H*W
    #   qkv_s    : (N, 3C) f32 VMEM scratch (lane-dense qkv activations)
    #   o_s      : (N, C)  f32 VMEM scratch (heads packed back into lanes)
    pad = ksize // 2
    N = out_ref.shape[1]
    C = out_ref.shape[2]
    hd = C // num_heads

    # ---- residual + single folded depthwise conv (f32 accumulation) --------
    xp = xpad_ref[0]                                  # (H+2p, W+2p, C)
    w = wconv_ref[...]                                # (k, k, C)
    acc = xp[pad:pad + H, pad:pad + W, :]             # residual term x
    for dy in range(ksize):
        for dx in range(ksize):
            acc = acc + xp[dy:dy + H, dx:dx + W, :] * w[dy, dx, :]
    acc = acc + bconv_ref[0]                          # folded bias
    s = acc.reshape(N, C)                             # tokens; stays in VMEM

    # ---- qkv: one lane-dense matmul (N,C)@(C,3C), bf16 ops / f32 acc -------
    qkv = jnp.dot(s.astype(jnp.bfloat16), wqkv_ref[...],
                  preferred_element_type=jnp.float32)            # (N, 3C) f32
    qkv_s[...] = qkv

    # Head split from the matmul OUTPUT via lane-window ref reads (no
    # replication of the activation, no hd-wide MXU projections).
    def heads_of(base):
        return jnp.stack(
            [qkv_s[:, base + h * hd: base + (h + 1) * hd]
             for h in range(num_heads)],
            axis=0).astype(jnp.bfloat16)                          # (h, N, hd)

    q = heads_of(0)          # scale already folded into the q weight columns
    k = heads_of(C)
    v = heads_of(2 * C)

    # ---- head-batched attention; softmax stats stay in f32 -----------------
    scores = jnp.einsum("hnd,hmd->hnm", q, k,
                        preferred_element_type=jnp.float32)       # (h, N, N)
    scores = scores - jnp.max(scores, axis=-1, keepdims=True)
    p = jnp.exp(scores)
    denom = jnp.sum(p, axis=-1, keepdims=True)                    # (h, N, 1)
    # attn_drop / proj_drop are identity (p = 0.0 / eval mode)

    o = jnp.einsum("hnm,hmd->hnd", p.astype(jnp.bfloat16), v,
                   preferred_element_type=jnp.float32)            # (h, N, hd)
    # Normalize AFTER the PV matmul: heads*N*hd mults instead of heads*N^2.
    o = o * pl.reciprocal(denom, approx=True)

    # ---- pack heads into lanes, single fused output projection -------------
    # The head sum happens inside the MXU contraction over C = heads*hd.
    for h in range(num_heads):
        o_s[:, h * hd:(h + 1) * hd] = o[h]
    y = jnp.dot(o_s[...].astype(jnp.bfloat16), wproj_ref[...],
                preferred_element_type=jnp.float32)               # (N, C)
    y = y + bproj_ref[0]

    out_ref[0] = y.astype(out_ref.dtype)


# -----------------------------------------------------------------------------
# Wrapper: weight folding / layouts + single pallas_call over grid=(B,)
# -----------------------------------------------------------------------------
def convolutional_attention_forward(x, H, W, params, *, num_heads, ksize):
    B, N, C = x.shape
    assert N == H * W and C % num_heads == 0
    hd = C // num_heads
    scale = hd ** (-0.5)
    pad = ksize // 2

    # (B, N, C) row-major over (H, W) == torch's x.transpose(1,2).reshape(B,C,H,W)
    x_nhwc = x.reshape(B, H, W, C)
    x_pad = jnp.pad(x_nhwc, ((0, 0), (pad, pad), (pad, pad), (0, 0)))

    # Fold the three depthwise convs (same input, linear in the weights).
    w_conv = params["wq_conv"] + params["wk_conv"] + params["wv_conv"]      # (k,k,C)
    b_conv = (params["bq_conv"] + params["bk_conv"]
              + params["bv_conv"]).reshape(1, C)

    # qkv weight transposed to (C, 3C); softmax scale folded into the q block.
    col_scale = jnp.concatenate([jnp.full((C,), scale, dtype=x.dtype),
                                 jnp.ones((2 * C,), dtype=x.dtype)])
    w_qkv_t = (params["w_qkv"].T * col_scale[None, :]).astype(jnp.bfloat16)  # (C,3C)

    w_proj_t = params["w_proj"].T.astype(jnp.bfloat16)                       # (C,C)
    b_proj = params["b_proj"].reshape(1, C)

    kernel = functools.partial(conv_attention_kernel, H=H, W=W, ksize=ksize,
                               num_heads=num_heads)
    Hp, Wp = H + 2 * pad, W + 2 * pad

    return pl.pallas_call(
        kernel,
        out_shape=jax.ShapeDtypeStruct((B, N, C), x.dtype),
        grid_spec=pltpu.PrefetchScalarGridSpec(
            num_scalar_prefetch=0,
            grid=(B,),
            in_specs=[
                pl.BlockSpec((1, Hp, Wp, C), lambda b: (b, 0, 0, 0)),
                pl.BlockSpec((ksize, ksize, C), lambda b: (0, 0, 0)),
                pl.BlockSpec((1, C), lambda b: (0, 0)),
                pl.BlockSpec((C, 3 * C), lambda b: (0, 0)),
                pl.BlockSpec((C, C), lambda b: (0, 0)),
                pl.BlockSpec((1, C), lambda b: (0, 0)),
            ],
            out_specs=pl.BlockSpec((1, N, C), lambda b: (b, 0, 0)),
            scratch_shapes=[
                pltpu.VMEM((N, 3 * C), jnp.float32),   # qkv activations
                pltpu.VMEM((N, C), jnp.float32),       # heads packed into lanes
            ],
        ),
        compiler_params=pltpu.CompilerParams(
            dimension_semantics=("parallel",),
            vmem_limit_bytes=64 * 1024 * 1024),
    )(x_pad, w_conv, b_conv, w_qkv_t, w_proj_t, b_proj)


# -----------------------------------------------------------------------------
# Pure-JAX reference (correctness check, f32 throughout)
# -----------------------------------------------------------------------------
def reference_forward(x, H, W, params, *, num_heads, ksize):
    B, N, C = x.shape
    head_dim = C // num_heads
    scale = head_dim ** (-0.5)
    x_nhwc = x.reshape(B, H, W, C)

    def dwconv(w, b):  # w: (k,k,C), b: (C,)
        return jax.lax.conv_general_dilated(
            x_nhwc, w.reshape(ksize, ksize, 1, C),
            window_strides=(1, 1), padding="SAME",
            dimension_numbers=("NHWC", "HWIO", "NHWC"),
            feature_group_count=C) + b

    qc = dwconv(params["wq_conv"], params["bq_conv"]).reshape(B, N, C)
    kc = dwconv(params["wk_conv"], params["bk_conv"]).reshape(B, N, C)
    vc = dwconv(params["wv_conv"], params["bv_conv"]).reshape(B, N, C)

    s = x + qc + kc + vc
    qkv = s @ params["w_qkv"].T                                   # (B,N,3C)
    qkv = qkv.reshape(B, N, 3, num_heads, head_dim).transpose(2, 0, 3, 1, 4)
    q, k, v = qkv[0], qkv[1], qkv[2]                              # (B,nh,N,hd)
    attn = jax.nn.softmax(jnp.einsum("bhnd,bhmd->bhnm", q, k) * scale, axis=-1)
    o = jnp.einsum("bhnm,bhmd->bhnd", attn, v).transpose(0, 2, 1, 3).reshape(B, N, C)
    return o @ params["w_proj"].T + params["b_proj"]


# -----------------------------------------------------------------------------
if __name__ == "__main__":
    B, H, W = 2, 8, 8
    N = H * W
    dim = 32
    num_heads = 8
    ksize = 3

    key = jax.random.PRNGKey(0)
    keys = jax.random.split(key, 10)

    params = {
        # depthwise conv weights stored as (k, k, C); biases (C,)
        "wq_conv": 0.1 * jax.random.normal(keys[0], (ksize, ksize, dim), jnp.float32),
        "wk_conv": 0.1 * jax.random.normal(keys[1], (ksize, ksize, dim), jnp.float32),
        "wv_conv": 0.1 * jax.random.normal(keys[2], (ksize, ksize, dim), jnp.float32),
        "bq_conv": 0.1 * jax.random.normal(keys[3], (dim,), jnp.float32),
        "bk_conv": 0.1 * jax.random.normal(keys[4], (dim,), jnp.float32),
        "bv_conv": 0.1 * jax.random.normal(keys[5], (dim,), jnp.float32),
        # nn.Linear(dim, 3*dim, bias=False): weight (3C, C)
        "w_qkv": 0.1 * jax.random.normal(keys[6], (3 * dim, dim), jnp.float32),
        # nn.Linear(dim, dim): weight (C, C), bias (C,)
        "w_proj": 0.1 * jax.random.normal(keys[7], (dim, dim), jnp.float32),
        "b_proj": 0.1 * jax.random.normal(keys[8], (dim,), jnp.float32),
    }

    x = jax.random.normal(keys[9], (B, N, dim), jnp.float32)

    out = convolutional_attention_forward(
        x, H, W, params, num_heads=num_heads, ksize=ksize)
    out = jax.block_until_ready(out)

    ref = reference_forward(x, H, W, params, num_heads=num_heads, ksize=ksize)
    ref = jax.block_until_ready(ref)

    # Tolerance covers the bf16 matmul operands (f32 accumulation), the EUP
    # approximate reciprocal in the softmax, and the folded-conv reordering.
    np.testing.assert_allclose(np.asarray(out), np.asarray(ref),
                               rtol=2.5e-2, atol=2.5e-2)
    print("KERNEL_OK")
</pallas_src>

<mosaic_0001>
module attributes {stable_mosaic.version = 11 : i64} {
  func.func @conv_attention_kernel(%arg0: i32, %arg1: memref<1x10x10x32xf32, #tpu.memory_space<vmem>>, %arg2: memref<3x3x32xf32, #tpu.memory_space<vmem>>, %arg3: memref<1x32xf32, #tpu.memory_space<vmem>>, %arg4: memref<32x96xbf16, #tpu.memory_space<vmem>>, %arg5: memref<32x32xbf16, #tpu.memory_space<vmem>>, %arg6: memref<1x32xf32, #tpu.memory_space<vmem>>, %arg7: memref<1x64x32xf32, #tpu.memory_space<vmem>>, %arg8: memref<64x96xf32, #tpu.memory_space<vmem>>, %arg9: memref<64x32xf32, #tpu.memory_space<vmem>>) attributes {dimension_semantics = [#tpu.dimension_semantics<parallel>], iteration_bounds = array<i64: 2>, scalar_prefetch = 0 : i64, scratch_operands = 2 : i64, tpu.core_type = #tpu.core_type<tc>, window_params = [{transform_indices = @transform_0, window_bounds = array<i64: 1, 10, 10, 32>}, {pipeline_mode = #tpu.pipeline_mode<synchronous>, transform_indices = @transform_1, window_bounds = array<i64: 3, 3, 32>}, {pipeline_mode = #tpu.pipeline_mode<synchronous>, transform_indices = @transform_2, window_bounds = array<i64: 1, 32>}, {pipeline_mode = #tpu.pipeline_mode<synchronous>, transform_indices = @transform_3, window_bounds = array<i64: 32, 96>}, {pipeline_mode = #tpu.pipeline_mode<synchronous>, transform_indices = @transform_4, window_bounds = array<i64: 32, 32>}, {pipeline_mode = #tpu.pipeline_mode<synchronous>, transform_indices = @transform_5, window_bounds = array<i64: 1, 32>}, {transform_indices = @transform_6, window_bounds = array<i64: 1, 64, 32>}]} {
    %c0 = arith.constant 0 : index
    %c0_0 = arith.constant 0 : index
    %c0_1 = arith.constant 0 : index
    %c0_2 = arith.constant 0 : index
    %0 = vector.load %arg1[%c0, %c0_0, %c0_1, %c0_2] : memref<1x10x10x32xf32, #tpu.memory_space<vmem>>, vector<1x10x10x32xf32>
    %1 = vector.shape_cast %0 : vector<1x10x10x32xf32> to vector<10x10x32xf32>
    %c0_3 = arith.constant 0 : index
    %c0_4 = arith.constant 0 : index
    %c0_5 = arith.constant 0 : index
    %2 = vector.load %arg2[%c0_3, %c0_4, %c0_5] : memref<3x3x32xf32, #tpu.memory_space<vmem>>, vector<3x3x32xf32>
    %3 = vector.extract_strided_slice %1 {offsets = [1, 1, 0], sizes = [8, 8, 32], strides = [1, 1, 1]} : vector<10x10x32xf32> to vector<8x8x32xf32>
    %4 = vector.extract_strided_slice %1 {offsets = [0, 0, 0], sizes = [8, 8, 32], strides = [1, 1, 1]} : vector<10x10x32xf32> to vector<8x8x32xf32>
    %5 = vector.extract_strided_slice %2 {offsets = [0, 0, 0], sizes = [1, 1, 32], strides = [1, 1, 1]} : vector<3x3x32xf32> to vector<1x1x32xf32>
    %6 = vector.shape_cast %5 : vector<1x1x32xf32> to vector<32xf32>
    %7 = vector.shape_cast %6 : vector<32xf32> to vector<1x1x32xf32>
    %8 = vector.broadcast %7 : vector<1x1x32xf32> to vector<8x8x32xf32>
    %9 = arith.mulf %4, %8 : vector<8x8x32xf32>
    %10 = arith.addf %3, %9 : vector<8x8x32xf32>
    %11 = vector.extract_strided_slice %1 {offsets = [0, 1, 0], sizes = [8, 8, 32], strides = [1, 1, 1]} : vector<10x10x32xf32> to vector<8x8x32xf32>
    %12 = vector.extract_strided_slice %2 {offsets = [0, 1, 0], sizes = [1, 1, 32], strides = [1, 1, 1]} : vector<3x3x32xf32> to vector<1x1x32xf32>
    %13 = vector.shape_cast %12 : vector<1x1x32xf32> to vector<32xf32>
    %14 = vector.shape_cast %13 : vector<32xf32> to vector<1x1x32xf32>
    %15 = vector.broadcast %14 : vector<1x1x32xf32> to vector<8x8x32xf32>
    %16 = arith.mulf %11, %15 : vector<8x8x32xf32>
    %17 = arith.addf %10, %16 : vector<8x8x32xf32>
    %18 = vector.extract_strided_slice %1 {offsets = [0, 2, 0], sizes = [8, 8, 32], strides = [1, 1, 1]} : vector<10x10x32xf32> to vector<8x8x32xf32>
    %19 = vector.extract_strided_slice %2 {offsets = [0, 2, 0], sizes = [1, 1, 32], strides = [1, 1, 1]} : vector<3x3x32xf32> to vector<1x1x32xf32>
    %20 = vector.shape_cast %19 : vector<1x1x32xf32> to vector<32xf32>
    %21 = vector.shape_cast %20 : vector<32xf32> to vector<1x1x32xf32>
    %22 = vector.broadcast %21 : vector<1x1x32xf32> to vector<8x8x32xf32>
    %23 = arith.mulf %18, %22 : vector<8x8x32xf32>
    %24 = arith.addf %17, %23 : vector<8x8x32xf32>
    %25 = vector.extract_strided_slice %1 {offsets = [1, 0, 0], sizes = [8, 8, 32], strides = [1, 1, 1]} : vector<10x10x32xf32> to vector<8x8x32xf32>
    %26 = vector.extract_strided_slice %2 {offsets = [1, 0, 0], sizes = [1, 1, 32], strides = [1, 1, 1]} : vector<3x3x32xf32> to vector<1x1x32xf32>
    %27 = vector.shape_cast %26 : vector<1x1x32xf32> to vector<32xf32>
    %28 = vector.shape_cast %27 : vector<32xf32> to vector<1x1x32xf32>
    %29 = vector.broadcast %28 : vector<1x1x32xf32> to vector<8x8x32xf32>
    %30 = arith.mulf %25, %29 : vector<8x8x32xf32>
    %31 = arith.addf %24, %30 : vector<8x8x32xf32>
    %32 = vector.extract_strided_slice %1 {offsets = [1, 1, 0], sizes = [8, 8, 32], strides = [1, 1, 1]} : vector<10x10x32xf32> to vector<8x8x32xf32>
    %33 = vector.extract_strided_slice %2 {offsets = [1, 1, 0], sizes = [1, 1, 32], strides = [1, 1, 1]} : vector<3x3x32xf32> to vector<1x1x32xf32>
    %34 = vector.shape_cast %33 : vector<1x1x32xf32> to vector<32xf32>
    %35 = vector.shape_cast %34 : vector<32xf32> to vector<1x1x32xf32>
    %36 = vector.broadcast %35 : vector<1x1x32xf32> to vector<8x8x32xf32>
    %37 = arith.mulf %32, %36 : vector<8x8x32xf32>
    %38 = arith.addf %31, %37 : vector<8x8x32xf32>
    %39 = vector.extract_strided_slice %1 {offsets = [1, 2, 0], sizes = [8, 8, 32], strides = [1, 1, 1]} : vector<10x10x32xf32> to vector<8x8x32xf32>
    %40 = vector.extract_strided_slice %2 {offsets = [1, 2, 0], sizes = [1, 1, 32], strides = [1, 1, 1]} : vector<3x3x32xf32> to vector<1x1x32xf32>
    %41 = vector.shape_cast %40 : vector<1x1x32xf32> to vector<32xf32>
    %42 = vector.shape_cast %41 : vector<32xf32> to vector<1x1x32xf32>
    %43 = vector.broadcast %42 : vector<1x1x32xf32> to vector<8x8x32xf32>
    %44 = arith.mulf %39, %43 : vector<8x8x32xf32>
    %45 = arith.addf %38, %44 : vector<8x8x32xf32>
    %46 = vector.extract_strided_slice %1 {offsets = [2, 0, 0], sizes = [8, 8, 32], strides = [1, 1, 1]} : vector<10x10x32xf32> to vector<8x8x32xf32>
    %47 = vector.extract_strided_slice %2 {offsets = [2, 0, 0], sizes = [1, 1, 32], strides = [1, 1, 1]} : vector<3x3x32xf32> to vector<1x1x32xf32>
    %48 = vector.shape_cast %47 : vector<1x1x32xf32> to vector<32xf32>
    %49 = vector.shape_cast %48 : vector<32xf32> to vector<1x1x32xf32>
    %50 = vector.broadcast %49 : vector<1x1x32xf32> to vector<8x8x32xf32>
    %51 = arith.mulf %46, %50 : vector<8x8x32xf32>
    %52 = arith.addf %45, %51 : vector<8x8x32xf32>
    %53 = vector.extract_strided_slice %1 {offsets = [2, 1, 0], sizes = [8, 8, 32], strides = [1, 1, 1]} : vector<10x10x32xf32> to vector<8x8x32xf32>
    %54 = vector.extract_strided_slice %2 {offsets = [2, 1, 0], sizes = [1, 1, 32], strides = [1, 1, 1]} : vector<3x3x32xf32> to vector<1x1x32xf32>
    %55 = vector.shape_cast %54 : vector<1x1x32xf32> to vector<32xf32>
    %56 = vector.shape_cast %55 : vector<32xf32> to vector<1x1x32xf32>
    %57 = vector.broadcast %56 : vector<1x1x32xf32> to vector<8x8x32xf32>
    %58 = arith.mulf %53, %57 : vector<8x8x32xf32>
    %59 = arith.addf %52, %58 : vector<8x8x32xf32>
    %60 = vector.extract_strided_slice %1 {offsets = [2, 2, 0], sizes = [8, 8, 32], strides = [1, 1, 1]} : vector<10x10x32xf32> to vector<8x8x32xf32>
    %61 = vector.extract_strided_slice %2 {offsets = [2, 2, 0], sizes = [1, 1, 32], strides = [1, 1, 1]} : vector<3x3x32xf32> to vector<1x1x32xf32>
    %62 = vector.shape_cast %61 : vector<1x1x32xf32> to vector<32xf32>
    %63 = vector.shape_cast %62 : vector<32xf32> to vector<1x1x32xf32>
    %64 = vector.broadcast %63 : vector<1x1x32xf32> to vector<8x8x32xf32>
    %65 = arith.mulf %60, %64 : vector<8x8x32xf32>
    %66 = arith.addf %59, %65 : vector<8x8x32xf32>
    %c0_6 = arith.constant 0 : index
    %c0_7 = arith.constant 0 : index
    %67 = vector.load %arg3[%c0_6, %c0_7] : memref<1x32xf32, #tpu.memory_space<vmem>>, vector<1x32xf32>
    %68 = vector.shape_cast %67 : vector<1x32xf32> to vector<32xf32>
    %69 = vector.shape_cast %68 : vector<32xf32> to vector<1x1x32xf32>
    %70 = vector.broadcast %69 : vector<1x1x32xf32> to vector<8x8x32xf32>
    %71 = arith.addf %66, %70 : vector<8x8x32xf32>
    %72 = vector.shape_cast %71 : vector<8x8x32xf32> to vector<64x32xf32>
    %73 = arith.truncf %72 : vector<64x32xf32> to vector<64x32xbf16>
    %c0_8 = arith.constant 0 : index
    %c0_9 = arith.constant 0 : index
    %74 = vector.load %arg4[%c0_8, %c0_9] : memref<32x96xbf16, #tpu.memory_space<vmem>>, vector<32x96xbf16>
    %cst = arith.constant dense<0.000000e+00> : vector<64x96xf32>
    %75 = tpu.matmul %73, %74, %cst {dimension_numbers = #tpu.dot_dimension_numbers<[1], [0], [0], [1], [0, 0, 1, 1], [], []>} : vector<64x32xbf16>, vector<32x96xbf16>, vector<64x96xf32> -> vector<64x96xf32>
    %c0_10 = arith.constant 0 : index
    %c0_11 = arith.constant 0 : index
    %76 = vector.load %arg8[%c0_10, %c0_11] : memref<64x96xf32, #tpu.memory_space<vmem>>, vector<64x96xf32>
    tpu.vector_store %arg8[%c0_10, %c0_11], %75 {strides = array<i32>} : memref<64x96xf32, #tpu.memory_space<vmem>>, vector<64x96xf32>,
    %c0_12 = arith.constant 0 : index
    %c0_13 = arith.constant 0 : index
    %77 = vector.load %arg8[%c0_12, %c0_13] : memref<64x96xf32, #tpu.memory_space<vmem>>, vector<64x4xf32>
    %c0_14 = arith.constant 0 : index
    %c4 = arith.constant 4 : index
    %78 = vector.load %arg8[%c0_14, %c4] : memref<64x96xf32, #tpu.memory_space<vmem>>, vector<64x4xf32>
    %c0_15 = arith.constant 0 : index
    %c8 = arith.constant 8 : index
    %79 = vector.load %arg8[%c0_15, %c8] : memref<64x96xf32, #tpu.memory_space<vmem>>, vector<64x4xf32>
    %c0_16 = arith.constant 0 : index
    %c12 = arith.constant 12 : index
    %80 = vector.load %arg8[%c0_16, %c12] : memref<64x96xf32, #tpu.memory_space<vmem>>, vector<64x4xf32>
    %c0_17 = arith.constant 0 : index
    %c16 = arith.constant 16 : index
    %81 = vector.load %arg8[%c0_17, %c16] : memref<64x96xf32, #tpu.memory_space<vmem>>, vector<64x4xf32>
    %c0_18 = arith.constant 0 : index
    %c20 = arith.constant 20 : index
    %82 = vector.load %arg8[%c0_18, %c20] : memref<64x96xf32, #tpu.memory_space<vmem>>, vector<64x4xf32>
    %c0_19 = arith.constant 0 : index
    %c24 = arith.constant 24 : index
    %83 = vector.load %arg8[%c0_19, %c24] : memref<64x96xf32, #tpu.memory_space<vmem>>, vector<64x4xf32>
    %c0_20 = arith.constant 0 : index
    %c28 = arith.constant 28 : index
    %84 = vector.load %arg8[%c0_20, %c28] : memref<64x96xf32, #tpu.memory_space<vmem>>, vector<64x4xf32>
    %85 = vector.shape_cast %77 : vector<64x4xf32> to vector<1x64x4xf32>
    %86 = vector.shape_cast %78 : vector<64x4xf32> to vector<1x64x4xf32>
    %87 = vector.shape_cast %79 : vector<64x4xf32> to vector<1x64x4xf32>
    %88 = vector.shape_cast %80 : vector<64x4xf32> to vector<1x64x4xf32>
    %89 = vector.shape_cast %81 : vector<64x4xf32> to vector<1x64x4xf32>
    %90 = vector.shape_cast %82 : vector<64x4xf32> to vector<1x64x4xf32>
    %91 = vector.shape_cast %83 : vector<64x4xf32> to vector<1x64x4xf32>
    %92 = vector.shape_cast %84 : vector<64x4xf32> to vector<1x64x4xf32>
    %93 = tpu.concatenate %85, %86, %87, %88, %89, %90, %91, %92 in 0 : vector<1x64x4xf32>, vector<1x64x4xf32>, vector<1x64x4xf32>, vector<1x64x4xf32>, vector<1x64x4xf32>, vector<1x64x4xf32>, vector<1x64x4xf32>, vector<1x64x4xf32> -> vector<8x64x4xf32>
    %94 = arith.truncf %93 : vector<8x64x4xf32> to vector<8x64x4xbf16>
    %c0_21 = arith.constant 0 : index
    %c32 = arith.constant 32 : index
    %95 = vector.load %arg8[%c0_21, %c32] : memref<64x96xf32, #tpu.memory_space<vmem>>, vector<64x4xf32>
    %c0_22 = arith.constant 0 : index
    %c36 = arith.constant 36 : index
    %96 = vector.load %arg8[%c0_22, %c36] : memref<64x96xf32, #tpu.memory_space<vmem>>, vector<64x4xf32>
    %c0_23 = arith.constant 0 : index
    %c40 = arith.constant 40 : index
    %97 = vector.load %arg8[%c0_23, %c40] : memref<64x96xf32, #tpu.memory_space<vmem>>, vector<64x4xf32>
    %c0_24 = arith.constant 0 : index
    %c44 = arith.constant 44 : index
    %98 = vector.load %arg8[%c0_24, %c44] : memref<64x96xf32, #tpu.memory_space<vmem>>, vector<64x4xf32>
    %c0_25 = arith.constant 0 : index
    %c48 = arith.constant 48 : index
    %99 = vector.load %arg8[%c0_25, %c48] : memref<64x96xf32, #tpu.memory_space<vmem>>, vector<64x4xf32>
    %c0_26 = arith.constant 0 : index
    %c52 = arith.constant 52 : index
    %100 = vector.load %arg8[%c0_26, %c52] : memref<64x96xf32, #tpu.memory_space<vmem>>, vector<64x4xf32>
    %c0_27 = arith.constant 0 : index
    %c56 = arith.constant 56 : index
    %101 = vector.load %arg8[%c0_27, %c56] : memref<64x96xf32, #tpu.memory_space<vmem>>, vector<64x4xf32>
    %c0_28 = arith.constant 0 : index
    %c60 = arith.constant 60 : index
    %102 = vector.load %arg8[%c0_28, %c60] : memref<64x96xf32, #tpu.memory_space<vmem>>, vector<64x4xf32>
    %103 = vector.shape_cast %95 : vector<64x4xf32> to vector<1x64x4xf32>
    %104 = vector.shape_cast %96 : vector<64x4xf32> to vector<1x64x4xf32>
    %105 = vector.shape_cast %97 : vector<64x4xf32> to vector<1x64x4xf32>
    %106 = vector.shape_cast %98 : vector<64x4xf32> to vector<1x64x4xf32>
    %107 = vector.shape_cast %99 : vector<64x4xf32> to vector<1x64x4xf32>
    %108 = vector.shape_cast %100 : vector<64x4xf32> to vector<1x64x4xf32>
    %109 = vector.shape_cast %101 : vector<64x4xf32> to vector<1x64x4xf32>
    %110 = vector.shape_cast %102 : vector<64x4xf32> to vector<1x64x4xf32>
    %111 = tpu.concatenate %103, %104, %105, %106, %107, %108, %109, %110 in 0 : vector<1x64x4xf32>, vector<1x64x4xf32>, vector<1x64x4xf32>, vector<1x64x4xf32>, vector<1x64x4xf32>, vector<1x64x4xf32>, vector<1x64x4xf32>, vector<1x64x4xf32> -> vector<8x64x4xf32>
    %112 = arith.truncf %111 : vector<8x64x4xf32> to vector<8x64x4xbf16>
    %c0_29 = arith.constant 0 : index
    %c64 = arith.constant 64 : index
    %113 = vector.load %arg8[%c0_29, %c64] : memref<64x96xf32, #tpu.memory_space<vmem>>, vector<64x4xf32>
    %c0_30 = arith.constant 0 : index
    %c68 = arith.constant 68 : index
    %114 = vector.load %arg8[%c0_30, %c68] : memref<64x96xf32, #tpu.memory_space<vmem>>, vector<64x4xf32>
    %c0_31 = arith.constant 0 : index
    %c72 = arith.constant 72 : index
    %115 = vector.load %arg8[%c0_31, %c72] : memref<64x96xf32, #tpu.memory_space<vmem>>, vector<64x4xf32>
    %c0_32 = arith.constant 0 : index
    %c76 = arith.constant 76 : index
    %116 = vector.load %arg8[%c0_32, %c76] : memref<64x96xf32, #tpu.memory_space<vmem>>, vector<64x4xf32>
    %c0_33 = arith.constant 0 : index
    %c80 = arith.constant 80 : index
    %117 = vector.load %arg8[%c0_33, %c80] : memref<64x96xf32, #tpu.memory_space<vmem>>, vector<64x4xf32>
    %c0_34 = arith.constant 0 : index
    %c84 = arith.constant 84 : index
    %118 = vector.load %arg8[%c0_34, %c84] : memref<64x96xf32, #tpu.memory_space<vmem>>, vector<64x4xf32>
    %c0_35 = arith.constant 0 : index
    %c88 = arith.constant 88 : index
    %119 = vector.load %arg8[%c0_35, %c88] : memref<64x96xf32, #tpu.memory_space<vmem>>, vector<64x4xf32>
    %c0_36 = arith.constant 0 : index
    %c92 = arith.constant 92 : index
    %120 = vector.load %arg8[%c0_36, %c92] : memref<64x96xf32, #tpu.memory_space<vmem>>, vector<64x4xf32>
    %121 = vector.shape_cast %113 : vector<64x4xf32> to vector<1x64x4xf32>
    %122 = vector.shape_cast %114 : vector<64x4xf32> to vector<1x64x4xf32>
    %123 = vector.shape_cast %115 : vector<64x4xf32> to vector<1x64x4xf32>
    %124 = vector.shape_cast %116 : vector<64x4xf32> to vector<1x64x4xf32>
    %125 = vector.shape_cast %117 : vector<64x4xf32> to vector<1x64x4xf32>
    %126 = vector.shape_cast %118 : vector<64x4xf32> to vector<1x64x4xf32>
    %127 = vector.shape_cast %119 : vector<64x4xf32> to vector<1x64x4xf32>
    %128 = vector.shape_cast %120 : vector<64x4xf32> to vector<1x64x4xf32>
    %129 = tpu.concatenate %121, %122, %123, %124, %125, %126, %127, %128 in 0 : vector<1x64x4xf32>, vector<1x64x4xf32>, vector<1x64x4xf32>, vector<1x64x4xf32>, vector<1x64x4xf32>, vector<1x64x4xf32>, vector<1x64x4xf32>, vector<1x64x4xf32> -> vector<8x64x4xf32>
    %130 = arith.truncf %129 : vector<8x64x4xf32> to vector<8x64x4xbf16>
    "tpu.trace_start"() <{level = 10 : i32, message = "hnd,hmd->hnm"}> : () -> ()
    %cst_37 = arith.constant dense<0.000000e+00> : vector<8x64x64xf32>
    %131 = tpu.matmul %94, %112, %cst_37 {dimension_numbers = #tpu.dot_dimension_numbers<[2], [2], [1], [1], [0, 0, 0, 1, 1, 1], [0], [0]>} : vector<8x64x4xbf16>, vector<8x64x4xbf16>, vector<8x64x64xf32> -> vector<8x64x64xf32>
    "tpu.trace_stop"() : () -> ()
    %cst_38 = arith.constant dense<0xFF800000> : vector<8x64xf32>
    %132 = vector.multi_reduction <maximumf>, %131, %cst_38 [2] : vector<8x64x64xf32> to vector<8x64xf32>
    %133 = vector.shape_cast %132 : vector<8x64xf32> to vector<8x64x1xf32>
    %134 = vector.broadcast %133 : vector<8x64x1xf32> to vector<8x64x64xf32>
    %135 = arith.subf %131, %134 : vector<8x64x64xf32>
    %136 = math.exp %135 : vector<8x64x64xf32>
    %cst_39 = arith.constant dense<0.000000e+00> : vector<8x64xf32>
    %137 = vector.multi_reduction <add>, %136, %cst_39 [2] : vector<8x64x64xf32> to vector<8x64xf32>
    %138 = vector.shape_cast %137 : vector<8x64xf32> to vector<8x64x1xf32>
    %139 = arith.truncf %136 : vector<8x64x64xf32> to vector<8x64x64xbf16>
    "tpu.trace_start"() <{level = 10 : i32, message = "hnm,hmd->hnd"}> : () -> ()
    %cst_40 = arith.constant dense<0.000000e+00> : vector<8x64x4xf32>
    %140 = tpu.matmul %139, %130, %cst_40 {dimension_numbers = #tpu.dot_dimension_numbers<[2], [1], [1], [2], [0, 0, 0, 1, 1, 2], [0], [0]>} : vector<8x64x64xbf16>, vector<8x64x4xbf16>, vector<8x64x4xf32> -> vector<8x64x4xf32>
    "tpu.trace_stop"() : () -> ()
    %141 = tpu.reciprocal %138 {approx = true} : vector<8x64x1xf32> -> vector<8x64x1xf32>
    %142 = vector.broadcast %141 : vector<8x64x1xf32> to vector<8x64x4xf32>
    %143 = arith.mulf %140, %142 : vector<8x64x4xf32>
    %144 = vector.extract_strided_slice %143 {offsets = [0, 0, 0], sizes = [1, 64, 4], strides = [1, 1, 1]} : vector<8x64x4xf32> to vector<1x64x4xf32>
    %145 = vector.shape_cast %144 : vector<1x64x4xf32> to vector<64x4xf32>
    %c0_41 = arith.constant 0 : index
    %c0_42 = arith.constant 0 : index
    %146 = vector.load %arg9[%c0_41, %c0_42] : memref<64x32xf32, #tpu.memory_space<vmem>>, vector<64x4xf32>
    tpu.vector_store %arg9[%c0_41, %c0_42], %145 {strides = array<i32>} : memref<64x32xf32, #tpu.memory_space<vmem>>, vector<64x4xf32>,
    %147 = vector.extract_strided_slice %143 {offsets = [1, 0, 0], sizes = [1, 64, 4], strides = [1, 1, 1]} : vector<8x64x4xf32> to vector<1x64x4xf32>
    %148 = vector.shape_cast %147 : vector<1x64x4xf32> to vector<64x4xf32>
    %c0_43 = arith.constant 0 : index
    %c4_44 = arith.constant 4 : index
    %149 = vector.load %arg9[%c0_43, %c4_44] : memref<64x32xf32, #tpu.memory_space<vmem>>, vector<64x4xf32>
    tpu.vector_store %arg9[%c0_43, %c4_44], %148 {strides = array<i32>} : memref<64x32xf32, #tpu.memory_space<vmem>>, vector<64x4xf32>,
    %150 = vector.extract_strided_slice %143 {offsets = [2, 0, 0], sizes = [1, 64, 4], strides = [1, 1, 1]} : vector<8x64x4xf32> to vector<1x64x4xf32>
    %151 = vector.shape_cast %150 : vector<1x64x4xf32> to vector<64x4xf32>
    %c0_45 = arith.constant 0 : index
    %c8_46 = arith.constant 8 : index
    %152 = vector.load %arg9[%c0_45, %c8_46] : memref<64x32xf32, #tpu.memory_space<vmem>>, vector<64x4xf32>
    tpu.vector_store %arg9[%c0_45, %c8_46], %151 {strides = array<i32>} : memref<64x32xf32, #tpu.memory_space<vmem>>, vector<64x4xf32>,
    %153 = vector.extract_strided_slice %143 {offsets = [3, 0, 0], sizes = [1, 64, 4], strides = [1, 1, 1]} : vector<8x64x4xf32> to vector<1x64x4xf32>
    %154 = vector.shape_cast %153 : vector<1x64x4xf32> to vector<64x4xf32>
    %c0_47 = arith.constant 0 : index
    %c12_48 = arith.constant 12 : index
    %155 = vector.load %arg9[%c0_47, %c12_48] : memref<64x32xf32, #tpu.memory_space<vmem>>, vector<64x4xf32>
    tpu.vector_store %arg9[%c0_47, %c12_48], %154 {strides = array<i32>} : memref<64x32xf32, #tpu.memory_space<vmem>>, vector<64x4xf32>,
    %156 = vector.extract_strided_slice %143 {offsets = [4, 0, 0], sizes = [1, 64, 4], strides = [1, 1, 1]} : vector<8x64x4xf32> to vector<1x64x4xf32>
    %157 = vector.shape_cast %156 : vector<1x64x4xf32> to vector<64x4xf32>
    %c0_49 = arith.constant 0 : index
    %c16_50 = arith.constant 16 : index
    %158 = vector.load %arg9[%c0_49, %c16_50] : memref<64x32xf32, #tpu.memory_space<vmem>>, vector<64x4xf32>
    tpu.vector_store %arg9[%c0_49, %c16_50], %157 {strides = array<i32>} : memref<64x32xf32, #tpu.memory_space<vmem>>, vector<64x4xf32>,
    %159 = vector.extract_strided_slice %143 {offsets = [5, 0, 0], sizes = [1, 64, 4], strides = [1, 1, 1]} : vector<8x64x4xf32> to vector<1x64x4xf32>
    %160 = vector.shape_cast %159 : vector<1x64x4xf32> to vector<64x4xf32>
    %c0_51 = arith.constant 0 : index
    %c20_52 = arith.constant 20 : index
    %161 = vector.load %arg9[%c0_51, %c20_52] : memref<64x32xf32, #tpu.memory_space<vmem>>, vector<64x4xf32>
    tpu.vector_store %arg9[%c0_51, %c20_52], %160 {strides = array<i32>} : memref<64x32xf32, #tpu.memory_space<vmem>>, vector<64x4xf32>,
    %162 = vector.extract_strided_slice %143 {offsets = [6, 0, 0], sizes = [1, 64, 4], strides = [1, 1, 1]} : vector<8x64x4xf32> to vector<1x64x4xf32>
    %163 = vector.shape_cast %162 : vector<1x64x4xf32> to vector<64x4xf32>
    %c0_53 = arith.constant 0 : index
    %c24_54 = arith.constant 24 : index
    %164 = vector.load %arg9[%c0_53, %c24_54] : memref<64x32xf32, #tpu.memory_space<vmem>>, vector<64x4xf32>
    tpu.vector_store %arg9[%c0_53, %c24_54], %163 {strides = array<i32>} : memref<64x32xf32, #tpu.memory_space<vmem>>, vector<64x4xf32>,
    %165 = vector.extract_strided_slice %143 {offsets = [7, 0, 0], sizes = [1, 64, 4], strides = [1, 1, 1]} : vector<8x64x4xf32> to vector<1x64x4xf32>
    %166 = vector.shape_cast %165 : vector<1x64x4xf32> to vector<64x4xf32>
    %c0_55 = arith.constant 0 : index
    %c28_56 = arith.constant 28 : index
    %167 = vector.load %arg9[%c0_55, %c28_56] : memref<64x32xf32, #tpu.memory_space<vmem>>, vector<64x4xf32>
    tpu.vector_store %arg9[%c0_55, %c28_56], %166 {strides = array<i32>} : memref<64x32xf32, #tpu.memory_space<vmem>>, vector<64x4xf32>,
    %c0_57 = arith.constant 0 : index
    %c0_58 = arith.constant 0 : index
    %168 = vector.load %arg9[%c0_57, %c0_58] : memref<64x32xf32, #tpu.memory_space<vmem>>, vector<64x32xf32>
    %169 = arith.truncf %168 : vector<64x32xf32> to vector<64x32xbf16>
    %c0_59 = arith.constant 0 : index
    %c0_60 = arith.constant 0 : index
    %170 = vector.load %arg5[%c0_59, %c0_60] : memref<32x32xbf16, #tpu.memory_space<vmem>>, vector<32x32xbf16>
    %cst_61 = arith.constant dense<0.000000e+00> : vector<64x32xf32>
    %171 = tpu.matmul %169, %170, %cst_61 {dimension_numbers = #tpu.dot_dimension_numbers<[1], [0], [0], [1], [0, 0, 1, 1], [], []>} : vector<64x32xbf16>, vector<32x32xbf16>, vector<64x32xf32> -> vector<64x32xf32>
    %c0_62 = arith.constant 0 : index
    %c0_63 = arith.constant 0 : index
    %172 = vector.load %arg6[%c0_62, %c0_63] : memref<1x32xf32, #tpu.memory_space<vmem>>, vector<1x32xf32>
    %173 = vector.shape_cast %172 : vector<1x32xf32> to vector<32xf32>
    %174 = vector.shape_cast %173 : vector<32xf32> to vector<1x32xf32>
    %175 = vector.broadcast %174 : vector<1x32xf32> to vector<64x32xf32>
    %176 = arith.addf %171, %175 : vector<64x32xf32>
    %c0_64 = arith.constant 0 : index
    %c0_65 = arith.constant 0 : index
    %c0_66 = arith.constant 0 : index
    %177 = vector.load %arg7[%c0_64, %c0_65, %c0_66] : memref<1x64x32xf32, #tpu.memory_space<vmem>>, vector<1x64x32xf32>
    %178 = vector.shape_cast %177 : vector<1x64x32xf32> to vector<64x32xf32>
    %179 = vector.shape_cast %176 : vector<64x32xf32> to vector<1x64x32xf32>
    tpu.vector_store %arg7[%c0_64, %c0_65, %c0_66], %179 {strides = array<i32>} : memref<1x64x32xf32, #tpu.memory_space<vmem>>, vector<1x64x32xf32>,
    return
  }
  func.func @transform_0(%arg0: i32) -> (i32, i32, i32, i32) {
    %c0_i32 = arith.constant 0 : i32
    %c0_i32_0 = arith.constant 0 : i32
    %c0_i32_1 = arith.constant 0 : i32
    %c0_i32_2 = arith.constant 0 : i32
    return %arg0, %c0_i32, %c0_i32_0, %c0_i32_1 : i32, i32, i32, i32
  }
  func.func @transform_1(%arg0: i32) -> (i32, i32, i32) {
    %c0_i32 = arith.constant 0 : i32
    %c0_i32_0 = arith.constant 0 : i32
    %c0_i32_1 = arith.constant 0 : i32
    %c0_i32_2 = arith.constant 0 : i32
    return %c0_i32, %c0_i32_0, %c0_i32_1 : i32, i32, i32
  }
  func.func @transform_2(%arg0: i32) -> (i32, i32) {
    %c0_i32 = arith.constant 0 : i32
    %c0_i32_0 = arith.constant 0 : i32
    %c0_i32_1 = arith.constant 0 : i32
    return %c0_i32, %c0_i32_0 : i32, i32
  }
  func.func @transform_3(%arg0: i32) -> (i32, i32) {
    %c0_i32 = arith.constant 0 : i32
    %c0_i32_0 = arith.constant 0 : i32
    %c0_i32_1 = arith.constant 0 : i32
    return %c0_i32, %c0_i32_0 : i32, i32
  }
  func.func @transform_4(%arg0: i32) -> (i32, i32) {
    %c0_i32 = arith.constant 0 : i32
    %c0_i32_0 = arith.constant 0 : i32
    %c0_i32_1 = arith.constant 0 : i32
    return %c0_i32, %c0_i32_0 : i32, i32
  }
  func.func @transform_5(%arg0: i32) -> (i32, i32) {
    %c0_i32 = arith.constant 0 : i32
    %c0_i32_0 = arith.constant 0 : i32
    %c0_i32_1 = arith.constant 0 : i32
    return %c0_i32, %c0_i32_0 : i32, i32
  }
  func.func @transform_6(%arg0: i32) -> (i32, i32, i32) {
    %c0_i32 = arith.constant 0 : i32
    %c0_i32_0 = arith.constant 0 : i32
    %c0_i32_1 = arith.constant 0 : i32
    return %arg0, %c0_i32, %c0_i32_0 : i32, i32, i32
  }
}

</mosaic_0001>

<llo_original>
// kernel: tpu_custom_call.1
$region0: #{tpu_custom_call.1}
  #allocation0 [shape = 'u32[]', space=smem, size = 0x4, offset = 0x4, fixed_abs, tag = 'smem constant byte address 0x4 - core index']
  #allocation1 [shape = 'u32[144,128]{1,0:T(1,128)}', space=vmem, size = 0x12000, scoped, tag = 'internal scratch']
  #allocation2 [shape = 'f32[64,96]{1,0:T(8,128)}', space=vmem, size = 0x8000, scoped, tag = 'scratch operand']
  #allocation3 [shape = 'f32[64,32]{1,0:T(8,128)}', space=vmem, size = 0x8000, scoped, tag = 'scratch operand']
  %s0 = inlined_call_operand.hbm [shape: f32[2,10,10,32], index: 0, kind: input, shape index: {}]
  %s1 = inlined_call_operand.hbm [shape: f32[3,3,32], index: 1, kind: input, shape index: {}]
  %s2 = inlined_call_operand.hbm [shape: f32[1,32], index: 2, kind: input, shape index: {}]
  %s3 = inlined_call_operand.hbm [shape: bf16[32,96], index: 3, kind: input, shape index: {}]
  %s4 = inlined_call_operand.hbm [shape: bf16[32,32], index: 4, kind: input, shape index: {}]
  %s5 = inlined_call_operand.hbm [shape: f32[1,32], index: 5, kind: input, shape index: {}]
  %s6 = inlined_call_operand.hbm [shape: f32[2,64,32], index: 6, kind: output, shape index: {}]
  %s7 = sld [smem:[#allocation0]]
  $region81: #{tpu_custom_call.1} parent=0
    _
  %s9 = ssub.s32 1, %s7
  %s10 = scalar_select 0, %s9, %s7
  $region1: #{tpu_custom_call.1} parent=0
    #allocation4 [shape = 'u8[163840]{0}', space=vmem, size = 0x28000, scoped, tag = 'input window, operand 0']
    #allocation5 [shape = 's32[2]{0}', space=sflag, size = 0x8, scoped, tag = 'scoped memory for tpu_custom_call.1']
    #allocation6 [shape = 's32[2]{0}', space=sflag, size = 0x8, scoped, tag = 'scoped memory for tpu_custom_call.1']
    #allocation7 [shape = 'u8[6144]{0}', space=vmem, size = 0x1800, scoped, tag = 'input window, operand 1, single buffered']
    #allocation8 [shape = 's32[1]{0}', space=sflag, size = 0x4, scoped, tag = 'scoped memory for tpu_custom_call.1']
    #allocation9 [shape = 'u8[512]{0}', space=vmem, size = 0x400, scoped, tag = 'input window, operand 2, single buffered']
    #allocation10 [shape = 'u8[8192]{0}', space=vmem, size = 0x2000, scoped, tag = 'input window, operand 3, single buffered']
    #allocation11 [shape = 's32[1]{0}', space=sflag, size = 0x4, scoped, tag = 'scoped memory for tpu_custom_call.1']
    #allocation12 [shape = 'u8[8192]{0}', space=vmem, size = 0x2000, scoped, tag = 'input window, operand 4, single buffered']
    #allocation13 [shape = 'u8[512]{0}', space=vmem, size = 0x400, scoped, tag = 'input window, operand 5, single buffered']
    #allocation14 [shape = 's32[1]{0}', space=sflag, size = 0x4, scoped, tag = 'scoped memory for tpu_custom_call.1']
    #allocation15 [shape = 'u8[65536]{0}', space=vmem, size = 0x10000, scoped, tag = 'output window, operand 0']
    %11 = vsyncpa [#allocation5], 0
    %s12 = scalar_lea.sflag [#allocation5], 1
    %13 = vsyncpa %s12, 0
    %14 = vsyncpa [#allocation8], 0
    %15 = vsyncpa [#allocation11], 0
    %16 = vsyncpa [#allocation14], 0
    %17 = vsyncpa [#allocation6], 0
    %s18 = scalar_lea.sflag [#allocation6], 1
    %19 = vsyncpa %s18, 0
    loop: start=0, step=1, limit=4
    $region2: #{tpu_custom_call.1} parent=1 // loop_pre_header
      _
    $region3: #{tpu_custom_call.1} parent=1 // loop_header
      %s21 = sphi 0, %s25
      %p22 = scmp.ge.s32.totalorder %s21, 4
      %s31 = sphi 0, %s33
      %s34 = sphi 0, %s31
      %s35 = sphi 0, %s34
      %s51 = sphi 0, %s35
      %s55 = sphi 0, %s55
      %s57 = sphi 0, %s55
      %s58 = sphi 0, %s57
      %s72 = sphi 0, %s58
      %s76 = sphi 0, %s76
      %s78 = sphi 0, %s76
      %s79 = sphi 0, %s78
      %s93 = sphi 0, %s79
      %s97 = sphi 0, %s97
      %s99 = sphi 0, %s97
      %s100 = sphi 0, %s99
      %s114 = sphi 0, %s100
      %s118 = sphi 0, %s118
      %s120 = sphi 0, %s118
      %s121 = sphi 0, %s120
      %s135 = sphi 0, %s121
      %s139 = sphi 0, %s139
      %s141 = sphi 0, %s139
      %s142 = sphi 0, %s141
      %s156 = sphi 0, %s142
      %s162 = sphi 0, %s164
      %s165 = sphi 0, %s162
      %s166 = sphi 0, %s165
      %s182 = sphi 0, %s166
    $region4: #{tpu_custom_call.1} parent=1 // loop_header_branch
      %24 = sbr.rel (%p22) target = $region8
    $region5: #{tpu_custom_call.1} parent=1 // loop_body
      %s26 = ssub.s32 %s21, 1
      %s27 = ssub.s32 %s21, 2
      %s28 = sadd.s32 %s21, 1
      %s29 = ssub.s32 %s21, %s28
      %p30 = scmp.eq.s32.totalorder %s29, 0
      %s32 = sadd.s32 %s31, 1
      %s33 = scalar_select %p30, %s31, %s32
      %p36 = pneg %p30
      %p37 = scmp.eq.s32.totalorder %s21, 1
      %p38 = por %p36, %p37
      %p39 = scmp.ne.s32.totalorder %s31, %s34
      %p40 = scmp.eq.s32.totalorder %s21, 0
      %p41 = por %p39, %p40
      %p42 = scmp.ne.s32.totalorder %s31, %s34
      %p43 = scmp.eq.s32.totalorder %s26, 1
      %p44 = por %p42, %p43
      %p45 = scmp.ne.s32.totalorder %s34, %s35
      %p46 = scmp.eq.s32.totalorder %s26, 0
      %p47 = por %p45, %p46
      %p48 = scmp.ne.s32.totalorder %s34, %s35
      %p49 = scmp.eq.s32.totalorder %s27, 1
      %p50 = por %p48, %p49
      %p52 = scmp.ne.s32.totalorder %s35, %s51
      %p53 = scmp.eq.s32.totalorder %s27, 0
      %p54 = por %p52, %p53
      %s56 = sadd.s32 %s55, 1
      %p59 = scmp.eq.s32.totalorder %s21, 1
      %p60 = scmp.ne.s32.totalorder %s55, %s57
      %p61 = scmp.eq.s32.totalorder %s21, 0
      %p62 = por %p60, %p61
      %p63 = scmp.ne.s32.totalorder %s55, %s57
      %p64 = scmp.eq.s32.totalorder %s26, 1
      %p65 = por %p63, %p64
      %p66 = scmp.ne.s32.totalorder %s57, %s58
      %p67 = scmp.eq.s32.totalorder %s26, 0
      %p68 = por %p66, %p67
      %p69 = scmp.ne.s32.totalorder %s57, %s58
      %p70 = scmp.eq.s32.totalorder %s27, 1
      %p71 = por %p69, %p70
      %p73 = scmp.ne.s32.totalorder %s58, %s72
      %p74 = scmp.eq.s32.totalorder %s27, 0
      %p75 = por %p73, %p74
      %s77 = sadd.s32 %s76, 1
      %p80 = scmp.eq.s32.totalorder %s21, 1
      %p81 = scmp.ne.s32.totalorder %s76, %s78
      %p82 = scmp.eq.s32.totalorder %s21, 0
      %p83 = por %p81, %p82
      %p84 = scmp.ne.s32.totalorder %s76, %s78
      %p85 = scmp.eq.s32.totalorder %s26, 1
      %p86 = por %p84, %p85
      %p87 = scmp.ne.s32.totalorder %s78, %s79
      %p88 = scmp.eq.s32.totalorder %s26, 0
      %p89 = por %p87, %p88
      %p90 = scmp.ne.s32.totalorder %s78, %s79
      %p91 = scmp.eq.s32.totalorder %s27, 1
      %p92 = por %p90, %p91
      %p94 = scmp.ne.s32.totalorder %s79, %s93
      %p95 = scmp.eq.s32.totalorder %s27, 0
      %p96 = por %p94, %p95
      %s98 = sadd.s32 %s97, 1
      %p101 = scmp.eq.s32.totalorder %s21, 1
      %p102 = scmp.ne.s32.totalorder %s97, %s99
      %p103 = scmp.eq.s32.totalorder %s21, 0
      %p104 = por %p102, %p103
      %p105 = scmp.ne.s32.totalorder %s97, %s99
      %p106 = scmp.eq.s32.totalorder %s26, 1
      %p107 = por %p105, %p106
      %p108 = scmp.ne.s32.totalorder %s99, %s100
      %p109 = scmp.eq.s32.totalorder %s26, 0
      %p110 = por %p108, %p109
      %p111 = scmp.ne.s32.totalorder %s99, %s100
      %p112 = scmp.eq.s32.totalorder %s27, 1
      %p113 = por %p111, %p112
      %p115 = scmp.ne.s32.totalorder %s100, %s114
      %p116 = scmp.eq.s32.totalorder %s27, 0
      %p117 = por %p115, %p116
      %s119 = sadd.s32 %s118, 1
      %p122 = scmp.eq.s32.totalorder %s21, 1
      %p123 = scmp.ne.s32.totalorder %s118, %s120
      %p124 = scmp.eq.s32.totalorder %s21, 0
      %p125 = por %p123, %p124
      %p126 = scmp.ne.s32.totalorder %s118, %s120
      %p127 = scmp.eq.s32.totalorder %s26, 1
      %p128 = por %p126, %p127
      %p129 = scmp.ne.s32.totalorder %s120, %s121
      %p130 = scmp.eq.s32.totalorder %s26, 0
      %p131 = por %p129, %p130
      %p132 = scmp.ne.s32.totalorder %s120, %s121
      %p133 = scmp.eq.s32.totalorder %s27, 1
      %p134 = por %p132, %p133
      %p136 = scmp.ne.s32.totalorder %s121, %s135
      %p137 = scmp.eq.s32.totalorder %s27, 0
      %p138 = por %p136, %p137
      %s140 = sadd.s32 %s139, 1
      %p143 = scmp.eq.s32.totalorder %s21, 1
      %p144 = scmp.ne.s32.totalorder %s139, %s141
      %p145 = scmp.eq.s32.totalorder %s21, 0
      %p146 = por %p144, %p145
      %p147 = scmp.ne.s32.totalorder %s139, %s141
      %p148 = scmp.eq.s32.totalorder %s26, 1
      %p149 = por %p147, %p148
      %p150 = scmp.ne.s32.totalorder %s141, %s142
      %p151 = scmp.eq.s32.totalorder %s26, 0
      %p152 = por %p150, %p151
      %p153 = scmp.ne.s32.totalorder %s141, %s142
      %p154 = scmp.eq.s32.totalorder %s27, 1
      %p155 = por %p153, %p154
      %p157 = scmp.ne.s32.totalorder %s142, %s156
      %p158 = scmp.eq.s32.totalorder %s27, 0
      %p159 = por %p157, %p158
      %s160 = ssub.s32 %s21, %s28
      %p161 = scmp.eq.s32.totalorder %s160, 0
      %s163 = sadd.s32 %s162, 1
      %s164 = scalar_select %p161, %s162, %s163
      %p167 = pneg %p161
      %p168 = scmp.eq.s32.totalorder %s21, 1
      %p169 = por %p167, %p168
      %p170 = scmp.ne.s32.totalorder %s162, %s165
      %p171 = scmp.eq.s32.totalorder %s21, 0
      %p172 = por %p170, %p171
      %p173 = scmp.ne.s32.totalorder %s162, %s165
      %p174 = scmp.eq.s32.totalorder %s26, 1
      %p175 = por %p173, %p174
      %p176 = scmp.ne.s32.totalorder %s165, %s166
      %p177 = scmp.eq.s32.totalorder %s26, 0
      %p178 = por %p176, %p177
      %p179 = scmp.ne.s32.totalorder %s165, %s166
      %p180 = scmp.eq.s32.totalorder %s27, 1
      %p181 = por %p179, %p180
      %p183 = scmp.ne.s32.totalorder %s166, %s182
      %p184 = scmp.eq.s32.totalorder %s27, 0
      %p185 = por %p183, %p184
      %p186 = scmp.le.s32.totalorder 1, %s21
      %p187 = scmp.lt.s32.totalorder %s21, 3
      %p188 = pnand %p186, %p187
      %p189 = pneg %p188
      // Predicated region
      $region9: #{tpu_custom_call.1} parent=5 // pred_check
        _
      $region10: #{tpu_custom_call.1} parent=5 // pred_check_branch
        %191 = sbr.rel (%p188) target = $region12
      $region11: #{tpu_custom_call.1} parent=5 // pred_region
        %s192 = ssub.s32 %s21, 1
        // Predicated region
        $region13: #{tpu_custom_call.1} parent=11 // pred_check
          %p193 = pneg %p68
        $region14: #{tpu_custom_call.1} parent=11 // pred_check_branch
          %195 = sbr.rel (%p193) target = $region16
        $region15: #{tpu_custom_call.1} parent=11 // pred_region
          %s197 = ssub.s32 192, 192
          %198 = vsyncadd [#allocation8], %s197
          %s199 = sshll.u32 [#allocation7], 4
          %s200 = int_to_ptr.vmem [resolvable:$true] %s199
          %205 = dma.hbm_to_vmem [thread:$0]  %s1, 192, %s200, [#allocation8], 64, 64, 4
        $region16: #{tpu_custom_call.1} parent=11 // pred_fallthru
          _
        // Predicated region
        $region17: #{tpu_custom_call.1} parent=11 // pred_check
          %p206 = pneg %p89
        $region18: #{tpu_custom_call.1} parent=11 // pred_check_branch
          %208 = sbr.rel (%p206) target = $region20
        $region19: #{tpu_custom_call.1} parent=11 // pred_region
          %s210 = ssub.s32 16, 16
          %211 = vsyncadd [#allocation8], %s210
          %s213 = sshll.u32 [#allocation9], 4
          %s214 = int_to_ptr.vmem [resolvable:$true] %s213
          %216 = dma.hbm_to_vmem [thread:$0]  %s2, 16, %s214, [#allocation8]
        $region20: #{tpu_custom_call.1} parent=11 // pred_fallthru
          _
        // Predicated region
        $region21: #{tpu_custom_call.1} parent=11 // pred_check
          %p217 = pneg %p110
        $region22: #{tpu_custom_call.1} parent=11 // pred_check_branch
          %219 = sbr.rel (%p217) target = $region24
        $region23: #{tpu_custom_call.1} parent=11 // pred_region
          %s221 = ssub.s32 256, 256
          %222 = vsyncadd [#allocation11], %s221
          %s223 = sshll.u32 [#allocation10], 4
          %s224 = int_to_ptr.vmem [resolvable:$true] %s223
          %229 = dma.hbm_to_vmem [thread:$0]  %s3, 256, %s224, [#allocation11], 64, 64, 4
        $region24: #{tpu_custom_call.1} parent=11 // pred_fallthru
          _
        // Predicated region
        $region25: #{tpu_custom_call.1} parent=11 // pred_check
          %p230 = pneg %p131
        $region26: #{tpu_custom_call.1} parent=11 // pred_check_branch
          %232 = sbr.rel (%p230) target = $region28
        $region27: #{tpu_custom_call.1} parent=11 // pred_region
          %s234 = ssub.s32 256, 256
          %235 = vsyncadd [#allocation11], %s234
          %s236 = sshll.u32 [#allocation12], 4
          %s237 = int_to_ptr.vmem [resolvable:$true] %s236
          %242 = dma.hbm_to_vmem [thread:$0]  %s4, 256, %s237, [#allocation11], 64, 64, 4
        $region28: #{tpu_custom_call.1} parent=11 // pred_fallthru
          _
        // Predicated region
        $region29: #{tpu_custom_call.1} parent=11 // pred_check
          %p243 = pneg %p152
        $region30: #{tpu_custom_call.1} parent=11 // pred_check_branch
          %245 = sbr.rel (%p243) target = $region32
        $region31: #{tpu_custom_call.1} parent=11 // pred_region
          %s247 = ssub.s32 16, 16
          %248 = vsyncadd [#allocation14], %s247
          %s250 = sshll.u32 [#allocation13], 4
          %s251 = int_to_ptr.vmem [resolvable:$true] %s250
          %253 = dma.hbm_to_vmem [thread:$0]  %s5, 16, %s251, [#allocation14]
        $region32: #{tpu_custom_call.1} parent=11 // pred_fallthru
          _
      $region12: #{tpu_custom_call.1} parent=5 // pred_fallthru
        _
      %p254 = scmp.lt.s32.totalorder %s21, 2
      // Predicated region
      $region33: #{tpu_custom_call.1} parent=5 // pred_check
        %p255 = pneg %p254
      $region34: #{tpu_custom_call.1} parent=5 // pred_check_branch
        %257 = sbr.rel (%p255) target = $region36
      $region35: #{tpu_custom_call.1} parent=5 // pred_region
        // Predicated region
        $region37: #{tpu_custom_call.1} parent=35 // pred_check
          %p258 = pneg %p41
        $region38: #{tpu_custom_call.1} parent=35 // pred_check_branch
          %260 = sbr.rel (%p258) target = $region40
        $region39: #{tpu_custom_call.1} parent=35 // pred_region
          %s261 = sand.u32 %s31, 1
          %s262 = scalar_lea.sflag [#allocation5], %s261
          %s263 = sand.u32 %s31, 1
          %s264 = smul.addr %s263, 160
          %s265 = scalar_lea.vmem [#allocation4], %s264
          %s267 = ssub.s32 2560, 2560
          %268 = vsyncadd %s262, %s267
          %s269 = smul.addr %s21, 20
          %s270 = smul.addr %s269, 128
          %s271 = scalar_lea.hbm %s0, %s270
          %s272 = sshll.u32 %s265, 4
          %s273 = int_to_ptr.vmem [resolvable:$true] %s272
          %278 = dma.hbm_to_vmem [thread:$0]  %s271, 2560, %s273, %s262, 128, 128, 8
        $region40: #{tpu_custom_call.1} parent=35 // pred_fallthru
          _
      $region36: #{tpu_custom_call.1} parent=5 // pred_fallthru
        _
      %p279 = scmp.le.s32.totalorder 1, %s21
      %p280 = scmp.lt.s32.totalorder %s21, 3
      %p281 = pnand %p279, %p280
      %p282 = pneg %p281
      // Predicated region
      $region41: #{tpu_custom_call.1} parent=5 // pred_check
        _
      $region42: #{tpu_custom_call.1} parent=5 // pred_check_branch
        %284 = sbr.rel (%p281) target = $region44
      $region43: #{tpu_custom_call.1} parent=5 // pred_region
        %s285 = ssub.s32 %s21, 1
        %s286 = sand.u32 %s34, 1
        %s287 = scalar_lea.sflag [#allocation5], %s286
        %s288 = sand.u32 %s34, 1
        %s289 = smul.addr %s288, 160
        %s290 = scalar_lea.vmem [#allocation4], %s289
        // Predicated region
        $region45: #{tpu_custom_call.1} parent=43 // pred_check
          %p291 = pneg %p47
        $region46: #{tpu_custom_call.1} parent=43 // pred_check_branch
          %293 = sbr.rel (%p291) target = $region48
        $region47: #{tpu_custom_call.1} parent=43 // pred_region
          %294 = dma.done %s287, 2560
        $region48: #{tpu_custom_call.1} parent=43 // pred_fallthru
          _
        // Predicated region
        $region49: #{tpu_custom_call.1} parent=43 // pred_check
          %p295 = pneg %p68
        $region50: #{tpu_custom_call.1} parent=43 // pred_check_branch
          %297 = sbr.rel (%p295) target = $region52
        $region51: #{tpu_custom_call.1} parent=43 // pred_region
          %298 = dma.done [#allocation8], 192
        $region52: #{tpu_custom_call.1} parent=43 // pred_fallthru
          _
        // Predicated region
        $region53: #{tpu_custom_call.1} parent=43 // pred_check
          %p299 = pneg %p89
        $region54: #{tpu_custom_call.1} parent=43 // pred_check_branch
          %301 = sbr.rel (%p299) target = $region56
        $region55: #{tpu_custom_call.1} parent=43 // pred_region
          %302 = dma.done [#allocation8], 16
        $region56: #{tpu_custom_call.1} parent=43 // pred_fallthru
          _
        // Predicated region
        $region57: #{tpu_custom_call.1} parent=43 // pred_check
          %p303 = pneg %p110
        $region58: #{tpu_custom_call.1} parent=43 // pred_check_branch
          %305 = sbr.rel (%p303) target = $region60
        $region59: #{tpu_custom_call.1} parent=43 // pred_region
          %306 = dma.done [#allocation11], 256
        $region60: #{tpu_custom_call.1} parent=43 // pred_fallthru
          _
        // Predicated region
        $region61: #{tpu_custom_call.1} parent=43 // pred_check
          %p307 = pneg %p131
        $region62: #{tpu_custom_call.1} parent=43 // pred_check_branch
          %309 = sbr.rel (%p307) target = $region64
        $region63: #{tpu_custom_call.1} parent=43 // pred_region
          %310 = dma.done [#allocation11], 256
        $region64: #{tpu_custom_call.1} parent=43 // pred_fallthru
          _
        // Predicated region
        $region65: #{tpu_custom_call.1} parent=43 // pred_check
          %p311 = pneg %p152
        $region66: #{tpu_custom_call.1} parent=43 // pred_check_branch
          %313 = sbr.rel (%p311) target = $region68
        $region67: #{tpu_custom_call.1} parent=43 // pred_region
          %314 = dma.done [#allocation14], 16
        $region68: #{tpu_custom_call.1} parent=43 // pred_fallthru
          _
        %s315 = sand.u32 %s34, 1
        %s316 = scalar_lea.sflag [#allocation5], %s315
        %s317 = sand.u32 %s34, 1
        %s318 = smul.addr %s317, 160
        %s319 = scalar_lea.vmem [#allocation4], %s318
        %p320 = pneg %p47
        %p321 = pneg %p44
        %p322 = pneg %p68
        %p323 = pneg %p65
        %p324 = pneg %p89
        %p325 = pneg %p86
        %p326 = pneg %p110
        %p327 = pneg %p107
        %p328 = pneg %p131
        %p329 = pneg %p128
        %p330 = pneg %p152
        %p331 = pneg %p149
        %p332 = pneg %p178
        %p333 = pneg %p175
        %s334 = sand.u32 %s165, 1
        %s335 = scalar_lea.sflag [#allocation6], %s334
        %s336 = sand.u32 %s165, 1
        %s337 = smul.addr %s336, 64
        %s338 = scalar_lea.vmem [#allocation15], %s337
        %v340 = vld [vmem:[%s290] sm:$0xff]
        %v341 = vld [vmem:[%s290 + $0x8] sm:$0x3]
        %v342 = vld [vmem:[%s290 + $0x10] sm:$0xff]
        %v343 = vld [vmem:[%s290 + $0x18] sm:$0x3]
        %v344 = vld [vmem:[%s290 + $0x20] sm:$0xff]
        %v345 = vld [vmem:[%s290 + $0x28] sm:$0x3]
        %v346 = vld [vmem:[%s290 + $0x30] sm:$0xff]
        %v347 = vld [vmem:[%s290 + $0x38] sm:$0x3]
        %v348 = vld [vmem:[%s290 + $0x40] sm:$0xff]
        %v349 = vld [vmem:[%s290 + $0x48] sm:$0x3]
        %v350 = vld [vmem:[%s290 + $0x50] sm:$0xff]
        %v351 = vld [vmem:[%s290 + $0x58] sm:$0x3]
        %v352 = vld [vmem:[%s290 + $0x60] sm:$0xff]
        %v353 = vld [vmem:[%s290 + $0x68] sm:$0x3]
        %v354 = vld [vmem:[%s290 + $0x70] sm:$0xff]
        %v355 = vld [vmem:[%s290 + $0x78] sm:$0x3]
        %v356 = vld [vmem:[%s290 + $0x80] sm:$0xff]
        %v357 = vld [vmem:[%s290 + $0x88] sm:$0x3]
        %v358 = vld [vmem:[%s290 + $0x90] sm:$0xff]
        %v359 = vld [vmem:[%s290 + $0x98] sm:$0x3]
        %v360 = vld [vmem:[#allocation7] sm:$0x7]
        %v361 = vld [vmem:[#allocation7 + $0x4] sm:$0x7]
        %v362 = vld [vmem:[#allocation7 + $0x8] sm:$0x7]
        %v363 = vlaneseq
        %v364 = vshrl.u32 %v363, 7
        %v365 = vsub.s32 0, %v364
        %v366 = vrot.slane %v360, %v365
        %v367 = vmul.f32 %v340, %v366
        %v368 = vmul.f32 %v342, %v366
        %v369 = vmul.f32 %v344, %v366
        %v370 = vmul.f32 %v346, %v366
        %v371 = vmul.f32 %v348, %v366
        %v372 = vmul.f32 %v350, %v366
        %v373 = vmul.f32 %v352, %v366
        %v374 = vmul.f32 %v354, %v366
        %v383 = vrot.slane %v367, 7
        %v384 = vrot.slane %v368, 7
        %v385 = vrot.slane %v369, 7
        %v386 = vrot.slane %v370, 7
        %v387 = vrot.slane %v371, 7
        %v388 = vrot.slane %v372, 7
        %v389 = vrot.slane %v373, 7
        %v390 = vrot.slane %v374, 7
        %v399 = vadd.f32 %v342, %v383
        %v400 = vadd.f32 %v343, %v383
        %v401 = vadd.f32 %v344, %v384
        %v402 = vadd.f32 %v345, %v384
        %v403 = vadd.f32 %v346, %v385
        %v404 = vadd.f32 %v347, %v385
        %v405 = vadd.f32 %v348, %v386
        %v406 = vadd.f32 %v349, %v386
        %v407 = vadd.f32 %v350, %v387
        %v408 = vadd.f32 %v351, %v387
        %v409 = vadd.f32 %v352, %v388
        %v410 = vadd.f32 %v353, %v388
        %v411 = vadd.f32 %v354, %v389
        %v412 = vadd.f32 %v355, %v389
        %v413 = vadd.f32 %v356, %v390
        %v414 = vadd.f32 %v357, %v390
        %v415 = vlaneseq
        %v416 = vshrl.u32 %v415, 7
        %v417 = vsub.s32 1, %v416
        %v418 = vrot.slane %v360, %v417
        %v419 = vmul.f32 %v340, %v418
        %v420 = vmul.f32 %v341, %v418
        %v421 = vmul.f32 %v342, %v418
        %v422 = vmul.f32 %v343, %v418
        %v423 = vmul.f32 %v344, %v418
        %v424 = vmul.f32 %v345, %v418
        %v425 = vmul.f32 %v346, %v418
        %v426 = vmul.f32 %v347, %v418
        %v427 = vmul.f32 %v348, %v418
        %v428 = vmul.f32 %v349, %v418
        %v429 = vmul.f32 %v350, %v418
        %v430 = vmul.f32 %v351, %v418
        %v431 = vmul.f32 %v352, %v418
        %v432 = vmul.f32 %v353, %v418
        %v433 = vmul.f32 %v354, %v418
        %v434 = vmul.f32 %v355, %v418
        %v435 = vadd.f32 %v399, %v419
        %v436 = vadd.f32 %v400, %v420
        %v437 = vadd.f32 %v401, %v421
        %v438 = vadd.f32 %v402, %v422
        %v439 = vadd.f32 %v403, %v423
        %v440 = vadd.f32 %v404, %v424
        %v441 = vadd.f32 %v405, %v425
        %v442 = vadd.f32 %v406, %v426
        %v443 = vadd.f32 %v407, %v427
        %v444 = vadd.f32 %v408, %v428
        %v445 = vadd.f32 %v409, %v429
        %v446 = vadd.f32 %v410, %v430
        %v447 = vadd.f32 %v411, %v431
        %v448 = vadd.f32 %v412, %v432
        %v449 = vadd.f32 %v413, %v433
        %v450 = vadd.f32 %v414, %v434
        %v451 = vlaneseq
        %v452 = vshrl.u32 %v451, 7
        %v453 = vsub.s32 2, %v452
        %v454 = vrot.slane %v360, %v453
        %v455 = vmul.f32 %v340, %v454
        %v456 = vmul.f32 %v341, %v454
        %v457 = vmul.f32 %v342, %v454
        %v458 = vmul.f32 %v343, %v454
        %v459 = vmul.f32 %v344, %v454
        %v460 = vmul.f32 %v345, %v454
        %v461 = vmul.f32 %v346, %v454
        %v462 = vmul.f32 %v347, %v454
        %v463 = vmul.f32 %v348, %v454
        %v464 = vmul.f32 %v349, %v454
        %v465 = vmul.f32 %v350, %v454
        %v466 = vmul.f32 %v351, %v454
        %v467 = vmul.f32 %v352, %v454
        %v468 = vmul.f32 %v353, %v454
        %v469 = vmul.f32 %v354, %v454
        %v470 = vmul.f32 %v355, %v454
        %vm487 = vcmask 1046528
        %v488 = vrot.slane %v455, 1
        %v489 = vrot.slane %v456, 1
        %v490 = vsel %vm487, %v488, %v489
        %v491 = vrot.slane %v457, 1
        %v492 = vrot.slane %v458, 1
        %v493 = vsel %vm487, %v491, %v492
        %v494 = vrot.slane %v459, 1
        %v495 = vrot.slane %v460, 1
        %v496 = vsel %vm487, %v494, %v495
        %v497 = vrot.slane %v461, 1
        %v498 = vrot.slane %v462, 1
        %v499 = vsel %vm487, %v497, %v498
        %v500 = vrot.slane %v463, 1
        %v501 = vrot.slane %v464, 1
        %v502 = vsel %vm487, %v500, %v501
        %v503 = vrot.slane %v465, 1
        %v504 = vrot.slane %v466, 1
        %v505 = vsel %vm487, %v503, %v504
        %v506 = vrot.slane %v467, 1
        %v507 = vrot.slane %v468, 1
        %v508 = vsel %vm487, %v506, %v507
        %v509 = vrot.slane %v469, 1
        %v510 = vrot.slane %v470, 1
        %v511 = vsel %vm487, %v509, %v510
        %v528 = vadd.f32 %v435, %v490
        %v529 = vadd.f32 %v436, %v489
        %v530 = vadd.f32 %v437, %v493
        %v531 = vadd.f32 %v438, %v492
        %v532 = vadd.f32 %v439, %v496
        %v533 = vadd.f32 %v440, %v495
        %v534 = vadd.f32 %v441, %v499
        %v535 = vadd.f32 %v442, %v498
        %v536 = vadd.f32 %v443, %v502
        %v537 = vadd.f32 %v444, %v501
        %v538 = vadd.f32 %v445, %v505
        %v539 = vadd.f32 %v446, %v504
        %v540 = vadd.f32 %v447, %v508
        %v541 = vadd.f32 %v448, %v507
        %v542 = vadd.f32 %v449, %v511
        %v543 = vadd.f32 %v450, %v510
        %v544 = vlaneseq
        %v545 = vshrl.u32 %v544, 7
        %v546 = vsub.s32 0, %v545
        %v547 = vrot.slane %v361, %v546
        %v548 = vmul.f32 %v342, %v547
        %v549 = vmul.f32 %v344, %v547
        %v550 = vmul.f32 %v346, %v547
        %v551 = vmul.f32 %v348, %v547
        %v552 = vmul.f32 %v350, %v547
        %v553 = vmul.f32 %v352, %v547
        %v554 = vmul.f32 %v354, %v547
        %v555 = vmul.f32 %v356, %v547
        %v564 = vrot.slane %v548, 7
        %v565 = vrot.slane %v549, 7
        %v566 = vrot.slane %v550, 7
        %v567 = vrot.slane %v551, 7
        %v568 = vrot.slane %v552, 7
        %v569 = vrot.slane %v553, 7
        %v570 = vrot.slane %v554, 7
        %v571 = vrot.slane %v555, 7
        %v580 = vadd.f32 %v528, %v564
        %v581 = vadd.f32 %v529, %v564
        %v582 = vadd.f32 %v530, %v565
        %v583 = vadd.f32 %v531, %v565
        %v584 = vadd.f32 %v532, %v566
        %v585 = vadd.f32 %v533, %v566
        %v586 = vadd.f32 %v534, %v567
        %v587 = vadd.f32 %v535, %v567
        %v588 = vadd.f32 %v536, %v568
        %v589 = vadd.f32 %v537, %v568
        %v590 = vadd.f32 %v538, %v569
        %v591 = vadd.f32 %v539, %v569
        %v592 = vadd.f32 %v540, %v570
        %v593 = vadd.f32 %v541, %v570
        %v594 = vadd.f32 %v542, %v571
        %v595 = vadd.f32 %v543, %v571
        %v596 = vlaneseq
        %v597 = vshrl.u32 %v596, 7
        %v598 = vsub.s32 1, %v597
        %v599 = vrot.slane %v361, %v598
        %v600 = vmul.f32 %v342, %v599
        %v601 = vmul.f32 %v343, %v599
        %v602 = vmul.f32 %v344, %v599
        %v603 = vmul.f32 %v345, %v599
        %v604 = vmul.f32 %v346, %v599
        %v605 = vmul.f32 %v347, %v599
        %v606 = vmul.f32 %v348, %v599
        %v607 = vmul.f32 %v349, %v599
        %v608 = vmul.f32 %v350, %v599
        %v609 = vmul.f32 %v351, %v599
        %v610 = vmul.f32 %v352, %v599
        %v611 = vmul.f32 %v353, %v599
        %v612 = vmul.f32 %v354, %v599
        %v613 = vmul.f32 %v355, %v599
        %v614 = vmul.f32 %v356, %v599
        %v615 = vmul.f32 %v357, %v599
        %v616 = vadd.f32 %v580, %v600
        %v617 = vadd.f32 %v581, %v601
        %v618 = vadd.f32 %v582, %v602
        %v619 = vadd.f32 %v583, %v603
        %v620 = vadd.f32 %v584, %v604
        %v621 = vadd.f32 %v585, %v605
        %v622 = vadd.f32 %v586, %v606
        %v623 = vadd.f32 %v587, %v607
        %v624 = vadd.f32 %v588, %v608
        %v625 = vadd.f32 %v589, %v609
        %v626 = vadd.f32 %v590, %v610
        %v627 = vadd.f32 %v591, %v611
        %v628 = vadd.f32 %v592, %v612
        %v629 = vadd.f32 %v593, %v613
        %v630 = vadd.f32 %v594, %v614
        %v631 = vadd.f32 %v595, %v615
        %v632 = vlaneseq
        %v633 = vshrl.u32 %v632, 7
        %v634 = vsub.s32 2, %v633
        %v635 = vrot.slane %v361, %v634
        %v636 = vmul.f32 %v342, %v635
        %v637 = vmul.f32 %v343, %v635
        %v638 = vmul.f32 %v344, %v635
        %v639 = vmul.f32 %v345, %v635
        %v640 = vmul.f32 %v346, %v635
        %v641 = vmul.f32 %v347, %v635
        %v642 = vmul.f32 %v348, %v635
        %v643 = vmul.f32 %v349, %v635
        %v644 = vmul.f32 %v350, %v635
        %v645 = vmul.f32 %v351, %v635
        %v646 = vmul.f32 %v352, %v635
        %v647 = vmul.f32 %v353, %v635
        %v648 = vmul.f32 %v354, %v635
        %v649 = vmul.f32 %v355, %v635
        %v650 = vmul.f32 %v356, %v635
        %v651 = vmul.f32 %v357, %v635
        %v668 = vrot.slane %v636, 1
        %v669 = vrot.slane %v637, 1
        %v670 = vsel %vm487, %v668, %v669
        %v671 = vrot.slane %v638, 1
        %v672 = vrot.slane %v639, 1
        %v673 = vsel %vm487, %v671, %v672
        %v674 = vrot.slane %v640, 1
        %v675 = vrot.slane %v641, 1
        %v676 = vsel %vm487, %v674, %v675
        %v677 = vrot.slane %v642, 1
        %v678 = vrot.slane %v643, 1
        %v679 = vsel %vm487, %v677, %v678
        %v680 = vrot.slane %v644, 1
        %v681 = vrot.slane %v645, 1
        %v682 = vsel %vm487, %v680, %v681
        %v683 = vrot.slane %v646, 1
        %v684 = vrot.slane %v647, 1
        %v685 = vsel %vm487, %v683, %v684
        %v686 = vrot.slane %v648, 1
        %v687 = vrot.slane %v649, 1
        %v688 = vsel %vm487, %v686, %v687
        %v689 = vrot.slane %v650, 1
        %v690 = vrot.slane %v651, 1
        %v691 = vsel %vm487, %v689, %v690
        %v708 = vadd.f32 %v616, %v670
        %v709 = vadd.f32 %v617, %v669
        %v710 = vadd.f32 %v618, %v673
        %v711 = vadd.f32 %v619, %v672
        %v712 = vadd.f32 %v620, %v676
        %v713 = vadd.f32 %v621, %v675
        %v714 = vadd.f32 %v622, %v679
        %v715 = vadd.f32 %v623, %v678
        %v716 = vadd.f32 %v624, %v682
        %v717 = vadd.f32 %v625, %v681
        %v718 = vadd.f32 %v626, %v685
        %v719 = vadd.f32 %v627, %v684
        %v720 = vadd.f32 %v628, %v688
        %v721 = vadd.f32 %v629, %v687
        %v722 = vadd.f32 %v630, %v691
        %v723 = vadd.f32 %v631, %v690
        %v724 = vlaneseq
        %v725 = vshrl.u32 %v724, 7
        %v726 = vsub.s32 0, %v725
        %v727 = vrot.slane %v362, %v726
        %v728 = vmul.f32 %v344, %v727
        %v729 = vmul.f32 %v346, %v727
        %v730 = vmul.f32 %v348, %v727
        %v731 = vmul.f32 %v350, %v727
        %v732 = vmul.f32 %v352, %v727
        %v733 = vmul.f32 %v354, %v727
        %v734 = vmul.f32 %v356, %v727
        %v735 = vmul.f32 %v358, %v727
        %v744 = vrot.slane %v728, 7
        %v745 = vrot.slane %v729, 7
        %v746 = vrot.slane %v730, 7
        %v747 = vrot.slane %v731, 7
        %v748 = vrot.slane %v732, 7
        %v749 = vrot.slane %v733, 7
        %v750 = vrot.slane %v734, 7
        %v751 = vrot.slane %v735, 7
        %v760 = vadd.f32 %v708, %v744
        %v761 = vadd.f32 %v709, %v744
        %v762 = vadd.f32 %v710, %v745
        %v763 = vadd.f32 %v711, %v745
        %v764 = vadd.f32 %v712, %v746
        %v765 = vadd.f32 %v713, %v746
        %v766 = vadd.f32 %v714, %v747
        %v767 = vadd.f32 %v715, %v747
        %v768 = vadd.f32 %v716, %v748
        %v769 = vadd.f32 %v717, %v748
        %v770 = vadd.f32 %v718, %v749
        %v771 = vadd.f32 %v719, %v749
        %v772 = vadd.f32 %v720, %v750
        %v773 = vadd.f32 %v721, %v750
        %v774 = vadd.f32 %v722, %v751
        %v775 = vadd.f32 %v723, %v751
        %v776 = vlaneseq
        %v777 = vshrl.u32 %v776, 7
        %v778 = vsub.s32 1, %v777
        %v779 = vrot.slane %v362, %v778
        %v780 = vmul.f32 %v344, %v779
        %v781 = vmul.f32 %v345, %v779
        %v782 = vmul.f32 %v346, %v779
        %v783 = vmul.f32 %v347, %v779
        %v784 = vmul.f32 %v348, %v779
        %v785 = vmul.f32 %v349, %v779
        %v786 = vmul.f32 %v350, %v779
        %v787 = vmul.f32 %v351, %v779
        %v788 = vmul.f32 %v352, %v779
        %v789 = vmul.f32 %v353, %v779
        %v790 = vmul.f32 %v354, %v779
        %v791 = vmul.f32 %v355, %v779
        %v792 = vmul.f32 %v356, %v779
        %v793 = vmul.f32 %v357, %v779
        %v794 = vmul.f32 %v358, %v779
        %v795 = vmul.f32 %v359, %v779
        %v796 = vadd.f32 %v760, %v780
        %v797 = vadd.f32 %v761, %v781
        %v798 = vadd.f32 %v762, %v782
        %v799 = vadd.f32 %v763, %v783
        %v800 = vadd.f32 %v764, %v784
        %v801 = vadd.f32 %v765, %v785
        %v802 = vadd.f32 %v766, %v786
        %v803 = vadd.f32 %v767, %v787
        %v804 = vadd.f32 %v768, %v788
        %v805 = vadd.f32 %v769, %v789
        %v806 = vadd.f32 %v770, %v790
        %v807 = vadd.f32 %v771, %v791
        %v808 = vadd.f32 %v772, %v792
        %v809 = vadd.f32 %v773, %v793
        %v810 = vadd.f32 %v774, %v794
        %v811 = vadd.f32 %v775, %v795
        %v812 = vlaneseq
        %v813 = vshrl.u32 %v812, 7
        %v814 = vsub.s32 2, %v813
        %v815 = vrot.slane %v362, %v814
        %v816 = vmul.f32 %v344, %v815
        %v817 = vmul.f32 %v345, %v815
        %v818 = vmul.f32 %v346, %v815
        %v819 = vmul.f32 %v347, %v815
        %v820 = vmul.f32 %v348, %v815
        %v821 = vmul.f32 %v349, %v815
        %v822 = vmul.f32 %v350, %v815
        %v823 = vmul.f32 %v351, %v815
        %v824 = vmul.f32 %v352, %v815
        %v825 = vmul.f32 %v353, %v815
        %v826 = vmul.f32 %v354, %v815
        %v827 = vmul.f32 %v355, %v815
        %v828 = vmul.f32 %v356, %v815
        %v829 = vmul.f32 %v357, %v815
        %v830 = vmul.f32 %v358, %v815
        %v831 = vmul.f32 %v359, %v815
        %v848 = vrot.slane %v816, 1
        %v849 = vrot.slane %v817, 1
        %v850 = vsel %vm487, %v848, %v849
        %v851 = vrot.slane %v818, 1
        %v852 = vrot.slane %v819, 1
        %v853 = vsel %vm487, %v851, %v852
        %v854 = vrot.slane %v820, 1
        %v855 = vrot.slane %v821, 1
        %v856 = vsel %vm487, %v854, %v855
        %v857 = vrot.slane %v822, 1
        %v858 = vrot.slane %v823, 1
        %v859 = vsel %vm487, %v857, %v858
        %v860 = vrot.slane %v824, 1
        %v861 = vrot.slane %v825, 1
        %v862 = vsel %vm487, %v860, %v861
        %v863 = vrot.slane %v826, 1
        %v864 = vrot.slane %v827, 1
        %v865 = vsel %vm487, %v863, %v864
        %v866 = vrot.slane %v828, 1
        %v867 = vrot.slane %v829, 1
        %v868 = vsel %vm487, %v866, %v867
        %v869 = vrot.slane %v830, 1
        %v870 = vrot.slane %v831, 1
        %v871 = vsel %vm487, %v869, %v870
        %v888 = vadd.f32 %v796, %v850
        %v889 = vadd.f32 %v797, %v849
        %v890 = vadd.f32 %v798, %v853
        %v891 = vadd.f32 %v799, %v852
        %v892 = vadd.f32 %v800, %v856
        %v893 = vadd.f32 %v801, %v855
        %v894 = vadd.f32 %v802, %v859
        %v895 = vadd.f32 %v803, %v858
        %v896 = vadd.f32 %v804, %v862
        %v897 = vadd.f32 %v805, %v861
        %v898 = vadd.f32 %v806, %v865
        %v899 = vadd.f32 %v807, %v864
        %v900 = vadd.f32 %v808, %v868
        %v901 = vadd.f32 %v809, %v867
        %v902 = vadd.f32 %v810, %v871
        %v903 = vadd.f32 %v811, %v870
        %v904 = vld [vmem:[#allocation9] sm:$0x1]
        %v906 = vlaneseq
        %v907 = vshrl.u32 %v906, 7
        %v908 = vsub.s32 0, %v907
        %v909 = vrot.slane %v904, %v908
        %v911 = vadd.f32 %v888, %v909
        %v912 = vadd.f32 %v889, %v909
        %v913 = vadd.f32 %v890, %v909
        %v914 = vadd.f32 %v891, %v909
        %v915 = vadd.f32 %v892, %v909
        %v916 = vadd.f32 %v893, %v909
        %v917 = vadd.f32 %v894, %v909
        %v918 = vadd.f32 %v895, %v909
        %v919 = vadd.f32 %v896, %v909
        %v920 = vadd.f32 %v897, %v909
        %v921 = vadd.f32 %v898, %v909
        %v922 = vadd.f32 %v899, %v909
        %v923 = vadd.f32 %v900, %v909
        %v924 = vadd.f32 %v901, %v909
        %v925 = vadd.f32 %v902, %v909
        %v926 = vadd.f32 %v903, %v909
        %v943 = vrot.slane %v911, 1
        %v944 = vrot.slane %v912, 1
        %v945 = vsel %vm487, %v943, %v944
        %v946 = vrot.slane %v913, 1
        %v947 = vrot.slane %v914, 1
        %v948 = vsel %vm487, %v946, %v947
        %v949 = vrot.slane %v915, 1
        %v950 = vrot.slane %v916, 1
        %v951 = vsel %vm487, %v949, %v950
        %v952 = vrot.slane %v917, 1
        %v953 = vrot.slane %v918, 1
        %v954 = vsel %vm487, %v952, %v953
        %v955 = vrot.slane %v919, 1
        %v956 = vrot.slane %v920, 1
        %v957 = vsel %vm487, %v955, %v956
        %v958 = vrot.slane %v921, 1
        %v959 = vrot.slane %v922, 1
        %v960 = vsel %vm487, %v958, %v959
        %v961 = vrot.slane %v923, 1
        %v962 = vrot.slane %v924, 1
        %v963 = vsel %vm487, %v961, %v962
        %v964 = vrot.slane %v925, 1
        %v965 = vrot.slane %v926, 1
        %v966 = vsel %vm487, %v964, %v965
        %v975 = vpack.c.bf16 %v948, %v945
        %v976 = vpack.c.bf16 %v954, %v951
        %v977 = vpack.c.bf16 %v960, %v957
        %v978 = vpack.c.bf16 %v966, %v963
        %v979 = vld [vmem:[#allocation10] sm:$0xf]
        %v980 = vld [vmem:[#allocation10 + $0x4] sm:$0xf]
        %v981 = vld [vmem:[#allocation10 + $0x8] sm:$0xf]
        %v982 = vld [vmem:[#allocation10 + $0xc] sm:$0xf]
        %v987 = vunpack.c.l.b16 %v979
        %v988 = vunpack.c.l.b16 %v980
        %v989 = vunpack.c.l.b16 %v981
        %v990 = vunpack.c.l.b16 %v982
        %v991 = vpack.c.b16 %v988, %v987
        %v992 = vpack.c.b16 %v990, %v989
        %vm995 = vcmask 261120
        %v997 = vsel %vm995, %v975, 0
        %v1000 = vsel %vm995, %v976, 0
        %v1003 = vsel %vm995, %v977, 0
        %v1006 = vsel %vm995, %v978, 0
        %1008 = vmatprep.subr.bf16.mxu0 0
        %1009 = vmatpush1.bf16.msra.mxu0 %v991
        %1010 = vmatprep.subr.bf16.mxu0 0
        %1011 = vmatpush1.bf16.msra.mxu0 %v992
        %1012 = vmatprep.subr.bf16.mxu0 0
        %1013 = vmatpush1.bf16.msra.mxu0 0
        %1014 = vmatprep.subr.bf16.mxu0 0
        %1015 = vmatpush1.bf16.msra.mxu0 0
        %1016 = vmatprep.subr.bf16.mxu0 0
        %1017 = vmatpush1.bf16.msra.mxu0 0
        %1018 = vmatprep.subr.bf16.mxu0 0
        %1019 = vmatpush1.bf16.msra.mxu0 0
        %1020 = vmatprep.subr.bf16.mxu0 0
        %1021 = vmatpush1.bf16.msra.mxu0 0
        %1022 = vmatprep.subr.bf16.mxu0 0
        %1023 = vmatpush1.bf16.msra.mxu0 0
        %1024 = vmatprep.subr.bf16.mxu0 0
        %1025 = vmatpush1.bf16.msra.mxu0 0
        %1026 = vmatprep.subr.bf16.mxu0 0
        %1027 = vmatpush1.bf16.msra.mxu0 0
        %1028 = vmatprep.subr.bf16.mxu0 0
        %1029 = vmatpush1.bf16.msra.mxu0 0
        %1030 = vmatprep.subr.bf16.mxu0 0
        %1031 = vmatpush1.bf16.msra.mxu0 0
        %1032 = vmatprep.subr.bf16.mxu0 0
        %1033 = vmatpush1.bf16.msra.mxu0 0
        %1034 = vmatprep.subr.bf16.mxu0 0
        %1035 = vmatpush1.bf16.msra.mxu0 0
        %1036 = vmatprep.subr.bf16.mxu0 0
        %1037 = vmatpush1.bf16.msra.mxu0 0
        %1038 = vmatprep.subr.bf16.mxu0 0
        %1039 = vmatpush1.bf16.msra.mxu0 0
        %1040 = vmatprep.mubr.bf16.mxu0 0
        %1041 = vmatmul.mubr.bf16.gmra.mrb[0].mxu0 %v997
        %v1042 = vpop.f32.mrb[0].mxu0
        %v1043 = vadd.f32 0.0, %v1042
        %v1044 = vpop.f32.mrb[0].mxu0
        %v1045 = vpop.f32.mrb[0].mxu0
        %v1046 = vadd.f32 0.0, %v1045
        %v1047 = vpop.f32.mrb[0].mxu0
        %1048 = vmatprep.mubr.bf16.mxu0 0
        %1049 = vmatmul.mubr.bf16.gmra.mrb[0].mxu0 %v1000
        %v1050 = vpop.f32.mrb[0].mxu0
        %v1051 = vadd.f32 0.0, %v1050
        %v1052 = vpop.f32.mrb[0].mxu0
        %v1053 = vpop.f32.mrb[0].mxu0
        %v1054 = vadd.f32 0.0, %v1053
        %v1055 = vpop.f32.mrb[0].mxu0
        %1056 = vmatprep.mubr.bf16.mxu0 0
        %1057 = vmatmul.mubr.bf16.gmra.mrb[0].mxu0 %v1003
        %v1058 = vpop.f32.mrb[0].mxu0
        %v1059 = vadd.f32 0.0, %v1058
        %v1060 = vpop.f32.mrb[0].mxu0
        %v1061 = vpop.f32.mrb[0].mxu0
        %v1062 = vadd.f32 0.0, %v1061
        %v1063 = vpop.f32.mrb[0].mxu0
        %1064 = vmatprep.mubr.bf16.mxu0 0
        %1065 = vmatmul.mubr.bf16.gmra.mrb[0].mxu0 %v1006
        %v1066 = vpop.f32.mrb[0].mxu0
        %v1067 = vadd.f32 0.0, %v1066
        %v1068 = vpop.f32.mrb[0].mxu0
        %v1069 = vpop.f32.mrb[0].mxu0
        %v1070 = vadd.f32 0.0, %v1069
        %v1071 = vpop.f32.mrb[0].mxu0
        %1072 = vdwg.mxu0
        %vm1073 = vcmask 785408
        %1074 = vst.msk [vmem:[#allocation2] sm:$0xff] %vm1073, %v1043
        %1075 = vst.msk [vmem:[#allocation2 + $0x8] sm:$0xff] %vm1073, %v1046
        %1076 = vst.msk [vmem:[#allocation2 + $0x10] sm:$0xff] %vm1073, %v1051
        %1077 = vst.msk [vmem:[#allocation2 + $0x18] sm:$0xff] %vm1073, %v1054
        %1078 = vst.msk [vmem:[#allocation2 + $0x20] sm:$0xff] %vm1073, %v1059
        %1079 = vst.msk [vmem:[#allocation2 + $0x28] sm:$0xff] %vm1073, %v1062
        %1080 = vst.msk [vmem:[#allocation2 + $0x30] sm:$0xff] %vm1073, %v1067
        %1081 = vst.msk [vmem:[#allocation2 + $0x38] sm:$0xff] %vm1073, %v1070
        %v1082 = vld [vmem:[#allocation2] sm:$0xff]
        %v1083 = vld [vmem:[#allocation2 + $0x8] sm:$0xff]
        %v1084 = vld [vmem:[#allocation2 + $0x10] sm:$0xff]
        %v1085 = vld [vmem:[#allocation2 + $0x18] sm:$0xff]
        %v1086 = vld [vmem:[#allocation2 + $0x20] sm:$0xff]
        %v1087 = vld [vmem:[#allocation2 + $0x28] sm:$0xff]
        %v1088 = vld [vmem:[#allocation2 + $0x30] sm:$0xff]
        %v1089 = vld [vmem:[#allocation2 + $0x38] sm:$0xff]
        %1098 = vrot.lane.b32.xlu0 %v1082, 124
        %v1099 = vpop.permute.xlu0 %1098
        %1100 = vrot.lane.b32.xlu0 %v1083, 124
        %v1101 = vpop.permute.xlu0 %1100
        %1102 = vrot.lane.b32.xlu0 %v1084, 124
        %v1103 = vpop.permute.xlu0 %1102
        %1104 = vrot.lane.b32.xlu0 %v1085, 124
        %v1105 = vpop.permute.xlu0 %1104
        %1106 = vrot.lane.b32.xlu0 %v1086, 124
        %v1107 = vpop.permute.xlu0 %1106
        %1108 = vrot.lane.b32.xlu0 %v1087, 124
        %v1109 = vpop.permute.xlu0 %1108
        %1110 = vrot.lane.b32.xlu0 %v1088, 124
        %v1111 = vpop.permute.xlu0 %1110
        %1112 = vrot.lane.b32.xlu0 %v1089, 124
        %v1113 = vpop.permute.xlu0 %1112
        %1122 = vrot.lane.b32.xlu0 %v1082, 120
        %v1123 = vpop.permute.xlu0 %1122
        %1124 = vrot.lane.b32.xlu0 %v1083, 120
        %v1125 = vpop.permute.xlu0 %1124
        %1126 = vrot.lane.b32.xlu0 %v1084, 120
        %v1127 = vpop.permute.xlu0 %1126
        %1128 = vrot.lane.b32.xlu0 %v1085, 120
        %v1129 = vpop.permute.xlu0 %1128
        %1130 = vrot.lane.b32.xlu0 %v1086, 120
        %v1131 = vpop.permute.xlu0 %1130
        %1132 = vrot.lane.b32.xlu0 %v1087, 120
        %v1133 = vpop.permute.xlu0 %1132
        %1134 = vrot.lane.b32.xlu0 %v1088, 120
        %v1135 = vpop.permute.xlu0 %1134
        %1136 = vrot.lane.b32.xlu0 %v1089, 120
        %v1137 = vpop.permute.xlu0 %1136
        %1146 = vrot.lane.b32.xlu0 %v1082, 116
        %v1147 = vpop.permute.xlu0 %1146
        %1148 = vrot.lane.b32.xlu0 %v1083, 116
        %v1149 = vpop.permute.xlu0 %1148
        %1150 = vrot.lane.b32.xlu0 %v1084, 116
        %v1151 = vpop.permute.xlu0 %1150
        %1152 = vrot.lane.b32.xlu0 %v1085, 116
        %v1153 = vpop.permute.xlu0 %1152
        %1154 = vrot.lane.b32.xlu0 %v1086, 116
        %v1155 = vpop.permute.xlu0 %1154
        %1156 = vrot.lane.b32.xlu0 %v1087, 116
        %v1157 = vpop.permute.xlu0 %1156
        %1158 = vrot.lane.b32.xlu0 %v1088, 116
        %v1159 = vpop.permute.xlu0 %1158
        %1160 = vrot.lane.b32.xlu0 %v1089, 116
        %v1161 = vpop.permute.xlu0 %1160
        %1170 = vrot.lane.b32.xlu0 %v1082, 112
        %v1171 = vpop.permute.xlu0 %1170
        %1172 = vrot.lane.b32.xlu0 %v1083, 112
        %v1173 = vpop.permute.xlu0 %1172
        %1174 = vrot.lane.b32.xlu0 %v1084, 112
        %v1175 = vpop.permute.xlu0 %1174
        %1176 = vrot.lane.b32.xlu0 %v1085, 112
        %v1177 = vpop.permute.xlu0 %1176
        %1178 = vrot.lane.b32.xlu0 %v1086, 112
        %v1179 = vpop.permute.xlu0 %1178
        %1180 = vrot.lane.b32.xlu0 %v1087, 112
        %v1181 = vpop.permute.xlu0 %1180
        %1182 = vrot.lane.b32.xlu0 %v1088, 112
        %v1183 = vpop.permute.xlu0 %1182
        %1184 = vrot.lane.b32.xlu0 %v1089, 112
        %v1185 = vpop.permute.xlu0 %1184
        %1194 = vrot.lane.b32.xlu0 %v1082, 108
        %v1195 = vpop.permute.xlu0 %1194
        %1196 = vrot.lane.b32.xlu0 %v1083, 108
        %v1197 = vpop.permute.xlu0 %1196
        %1198 = vrot.lane.b32.xlu0 %v1084, 108
        %v1199 = vpop.permute.xlu0 %1198
        %1200 = vrot.lane.b32.xlu0 %v1085, 108
        %v1201 = vpop.permute.xlu0 %1200
        %1202 = vrot.lane.b32.xlu0 %v1086, 108
        %v1203 = vpop.permute.xlu0 %1202
        %1204 = vrot.lane.b32.xlu0 %v1087, 108
        %v1205 = vpop.permute.xlu0 %1204
        %1206 = vrot.lane.b32.xlu0 %v1088, 108
        %v1207 = vpop.permute.xlu0 %1206
        %1208 = vrot.lane.b32.xlu0 %v1089, 108
        %v1209 = vpop.permute.xlu0 %1208
        %1218 = vrot.lane.b32.xlu0 %v1082, 104
        %v1219 = vpop.permute.xlu0 %1218
        %1220 = vrot.lane.b32.xlu0 %v1083, 104
        %v1221 = vpop.permute.xlu0 %1220
        %1222 = vrot.lane.b32.xlu0 %v1084, 104
        %v1223 = vpop.permute.xlu0 %1222
        %1224 = vrot.lane.b32.xlu0 %v1085, 104
        %v1225 = vpop.permute.xlu0 %1224
        %1226 = vrot.lane.b32.xlu0 %v1086, 104
        %v1227 = vpop.permute.xlu0 %1226
        %1228 = vrot.lane.b32.xlu0 %v1087, 104
        %v1229 = vpop.permute.xlu0 %1228
        %1230 = vrot.lane.b32.xlu0 %v1088, 104
        %v1231 = vpop.permute.xlu0 %1230
        %1232 = vrot.lane.b32.xlu0 %v1089, 104
        %v1233 = vpop.permute.xlu0 %1232
        %1242 = vrot.lane.b32.xlu0 %v1082, 100
        %v1243 = vpop.permute.xlu0 %1242
        %1244 = vrot.lane.b32.xlu0 %v1083, 100
        %v1245 = vpop.permute.xlu0 %1244
        %1246 = vrot.lane.b32.xlu0 %v1084, 100
        %v1247 = vpop.permute.xlu0 %1246
        %1248 = vrot.lane.b32.xlu0 %v1085, 100
        %v1249 = vpop.permute.xlu0 %1248
        %1250 = vrot.lane.b32.xlu0 %v1086, 100
        %v1251 = vpop.permute.xlu0 %1250
        %1252 = vrot.lane.b32.xlu0 %v1087, 100
        %v1253 = vpop.permute.xlu0 %1252
        %1254 = vrot.lane.b32.xlu0 %v1088, 100
        %v1255 = vpop.permute.xlu0 %1254
        %1256 = vrot.lane.b32.xlu0 %v1089, 100
        %v1257 = vpop.permute.xlu0 %1256
        %v1266 = vpack.c.bf16 %v1083, %v1082
        %v1267 = vpack.c.bf16 %v1085, %v1084
        %v1268 = vpack.c.bf16 %v1087, %v1086
        %v1269 = vpack.c.bf16 %v1089, %v1088
        %v1270 = vpack.c.bf16 %v1101, %v1099
        %v1271 = vpack.c.bf16 %v1105, %v1103
        %v1272 = vpack.c.bf16 %v1109, %v1107
        %v1273 = vpack.c.bf16 %v1113, %v1111
        %v1274 = vpack.c.bf16 %v1125, %v1123
        %v1275 = vpack.c.bf16 %v1129, %v1127
        %v1276 = vpack.c.bf16 %v1133, %v1131
        %v1277 = vpack.c.bf16 %v1137, %v1135
        %v1278 = vpack.c.bf16 %v1149, %v1147
        %v1279 = vpack.c.bf16 %v1153, %v1151
        %v1280 = vpack.c.bf16 %v1157, %v1155
        %v1281 = vpack.c.bf16 %v1161, %v1159
        %v1282 = vpack.c.bf16 %v1173, %v1171
        %v1283 = vpack.c.bf16 %v1177, %v1175
        %v1284 = vpack.c.bf16 %v1181, %v1179
        %v1285 = vpack.c.bf16 %v1185, %v1183
        %v1286 = vpack.c.bf16 %v1197, %v1195
        %v1287 = vpack.c.bf16 %v1201, %v1199
        %v1288 = vpack.c.bf16 %v1205, %v1203
        %v1289 = vpack.c.bf16 %v1209, %v1207
        %v1290 = vpack.c.bf16 %v1221, %v1219
        %v1291 = vpack.c.bf16 %v1225, %v1223
        %v1292 = vpack.c.bf16 %v1229, %v1227
        %v1293 = vpack.c.bf16 %v1233, %v1231
        %v1294 = vpack.c.bf16 %v1245, %v1243
        %v1295 = vpack.c.bf16 %v1249, %v1247
        %v1296 = vpack.c.bf16 %v1253, %v1251
        %v1297 = vpack.c.bf16 %v1257, %v1255
        %1302 = vrot.lane.b32.xlu0 %v1266, 96
        %v1303 = vpop.permute.xlu0 %1302
        %1304 = vrot.lane.b32.xlu0 %v1267, 96
        %v1305 = vpop.permute.xlu0 %1304
        %1306 = vrot.lane.b32.xlu0 %v1268, 96
        %v1307 = vpop.permute.xlu0 %1306
        %1308 = vrot.lane.b32.xlu0 %v1269, 96
        %v1309 = vpop.permute.xlu0 %1308
        %vm1310 = vcmask 31744
        %v1312 = vsel %vm1310, %v1266, 0
        %v1315 = vsel %vm1310, %v1267, 0
        %v1318 = vsel %vm1310, %v1268, 0
        %v1321 = vsel %vm1310, %v1269, 0
        %v1324 = vsel %vm1310, %v1303, 0
        %v1327 = vsel %vm1310, %v1305, 0
        %v1330 = vsel %vm1310, %v1307, 0
        %v1333 = vsel %vm1310, %v1309, 0
        %1335 = vmatprep.subr.bf16.mxu0 0
        %1336 = vmatpush1.bf16.xpose.msra.mxu0 %v1324
        %1337 = vmatprep.subr.bf16.mxu0 0
        %1338 = vmatpush1.bf16.xpose.msra.mxu0 %v1327
        %1339 = vmatprep.subr.bf16.mxu0 0
        %1340 = vmatpush1.bf16.xpose.msra.mxu0 %v1330
        %1341 = vmatprep.subr.bf16.mxu0 0
        %1342 = vmatpush1.bf16.xpose.msra.mxu0 %v1333
        %1343 = vmatprep.subr.bf16.mxu0 0
        %1344 = vmatpush1.bf16.xpose.msra.mxu0 0
        %1345 = vmatprep.subr.bf16.mxu0 0
        %1346 = vmatpush1.bf16.xpose.msra.mxu0 0
        %1347 = vmatprep.subr.bf16.mxu0 0
        %1348 = vmatpush1.bf16.xpose.msra.mxu0 0
        %1349 = vmatprep.subr.bf16.mxu0 0
        %1350 = vmatpush1.bf16.xpose.msra.mxu0 0
        %1351 = vmatprep.subr.bf16.mxu0 0
        %1352 = vmatpush1.bf16.xpose.msra.mxu0 0
        %1353 = vmatprep.subr.bf16.mxu0 0
        %1354 = vmatpush1.bf16.xpose.msra.mxu0 0
        %1355 = vmatprep.subr.bf16.mxu0 0
        %1356 = vmatpush1.bf16.xpose.msra.mxu0 0
        %1357 = vmatprep.subr.bf16.mxu0 0
        %1358 = vmatpush1.bf16.xpose.msra.mxu0 0
        %1359 = vmatprep.subr.bf16.mxu0 0
        %1360 = vmatpush1.bf16.xpose.msra.mxu0 0
        %1361 = vmatprep.subr.bf16.mxu0 0
        %1362 = vmatpush1.bf16.xpose.msra.mxu0 0
        %1363 = vmatprep.subr.bf16.mxu0 0
        %1364 = vmatpush1.bf16.xpose.msra.mxu0 0
        %1365 = vmatprep.subr.bf16.mxu0 0
        %1366 = vmatpush1.bf16.xpose.msra.mxu0 0
        %1367 = vmatprep.mubr.bf16.mxu0 0
        %1368 = vmatmul.mubr.bf16.gmra.mrb[0].mxu0 %v1312
        %v1369 = vpop.f32.mrb[0].mxu0
        %v1370 = vadd.f32 0.0, %v1369
        %v1371 = vpop.f32.mrb[0].mxu0
        %v1372 = vpop.f32.mrb[0].mxu0
        %v1373 = vadd.f32 0.0, %v1372
        %v1374 = vpop.f32.mrb[0].mxu0
        %1375 = vmatprep.mubr.bf16.mxu0 0
        %1376 = vmatmul.mubr.bf16.gmra.mrb[0].mxu0 %v1315
        %v1377 = vpop.f32.mrb[0].mxu0
        %v1378 = vadd.f32 0.0, %v1377
        %v1379 = vpop.f32.mrb[0].mxu0
        %v1380 = vpop.f32.mrb[0].mxu0
        %v1381 = vadd.f32 0.0, %v1380
        %v1382 = vpop.f32.mrb[0].mxu0
        %1383 = vmatprep.mubr.bf16.mxu0 0
        %1384 = vmatmul.mubr.bf16.gmra.mrb[0].mxu0 %v1318
        %v1385 = vpop.f32.mrb[0].mxu0
        %v1386 = vadd.f32 0.0, %v1385
        %v1387 = vpop.f32.mrb[0].mxu0
        %v1388 = vpop.f32.mrb[0].mxu0
        %v1389 = vadd.f32 0.0, %v1388
        %v1390 = vpop.f32.mrb[0].mxu0
        %1391 = vmatprep.mubr.bf16.mxu0 0
        %1392 = vmatmul.mubr.bf16.gmra.mrb[0].mxu0 %v1321
        %v1393 = vpop.f32.mrb[0].mxu0
        %v1394 = vadd.f32 0.0, %v1393
        %v1395 = vpop.f32.mrb[0].mxu0
        %v1396 = vpop.f32.mrb[0].mxu0
        %v1397 = vadd.f32 0.0, %v1396
        %v1398 = vpop.f32.mrb[0].mxu0
        %1399 = vdwg.mxu0
        %1404 = vrot.lane.b32.xlu0 %v1270, 96
        %v1405 = vpop.permute.xlu0 %1404
        %1406 = vrot.lane.b32.xlu0 %v1271, 96
        %v1407 = vpop.permute.xlu0 %1406
        %1408 = vrot.lane.b32.xlu0 %v1272, 96
        %v1409 = vpop.permute.xlu0 %1408
        %1410 = vrot.lane.b32.xlu0 %v1273, 96
        %v1411 = vpop.permute.xlu0 %1410
        %v1413 = vsel %vm1310, %v1270, 0
        %v1416 = vsel %vm1310, %v1271, 0
        %v1419 = vsel %vm1310, %v1272, 0
        %v1422 = vsel %vm1310, %v1273, 0
        %v1425 = vsel %vm1310, %v1405, 0
        %v1428 = vsel %vm1310, %v1407, 0
        %v1431 = vsel %vm1310, %v1409, 0
        %v1434 = vsel %vm1310, %v1411, 0
        %1436 = vmatprep.subr.bf16.mxu0 0
        %1437 = vmatpush1.bf16.xpose.msra.mxu0 %v1425
        %1438 = vmatprep.subr.bf16.mxu0 0
        %1439 = vmatpush1.bf16.xpose.msra.mxu0 %v1428
        %1440 = vmatprep.subr.bf16.mxu0 0
        %1441 = vmatpush1.bf16.xpose.msra.mxu0 %v1431
        %1442 = vmatprep.subr.bf16.mxu0 0
        %1443 = vmatpush1.bf16.xpose.msra.mxu0 %v1434
        %1444 = vmatprep.subr.bf16.mxu0 0
        %1445 = vmatpush1.bf16.xpose.msra.mxu0 0
        %1446 = vmatprep.subr.bf16.mxu0 0
        %1447 = vmatpush1.bf16.xpose.msra.mxu0 0
        %1448 = vmatprep.subr.bf16.mxu0 0
        %1449 = vmatpush1.bf16.xpose.msra.mxu0 0
        %1450 = vmatprep.subr.bf16.mxu0 0
        %1451 = vmatpush1.bf16.xpose.msra.mxu0 0
        %1452 = vmatprep.subr.bf16.mxu0 0
        %1453 = vmatpush1.bf16.xpose.msra.mxu0 0
        %1454 = vmatprep.subr.bf16.mxu0 0
        %1455 = vmatpush1.bf16.xpose.msra.mxu0 0
        %1456 = vmatprep.subr.bf16.mxu0 0
        %1457 = vmatpush1.bf16.xpose.msra.mxu0 0
        %1458 = vmatprep.subr.bf16.mxu0 0
        %1459 = vmatpush1.bf16.xpose.msra.mxu0 0
        %1460 = vmatprep.subr.bf16.mxu0 0
        %1461 = vmatpush1.bf16.xpose.msra.mxu0 0
        %1462 = vmatprep.subr.bf16.mxu0 0
        %1463 = vmatpush1.bf16.xpose.msra.mxu0 0
        %1464 = vmatprep.subr.bf16.mxu0 0
        %1465 = vmatpush1.bf16.xpose.msra.mxu0 0
        %1466 = vmatprep.subr.bf16.mxu0 0
        %1467 = vmatpush1.bf16.xpose.msra.mxu0 0
        %1468 = vmatprep.mubr.bf16.mxu0 0
        %1469 = vmatmul.mubr.bf16.gmra.mrb[0].mxu0 %v1413
        %v1470 = vpop.f32.mrb[0].mxu0
        %v1471 = vadd.f32 0.0, %v1470
        %v1472 = vpop.f32.mrb[0].mxu0
        %v1473 = vpop.f32.mrb[0].mxu0
        %v1474 = vadd.f32 0.0, %v1473
        %v1475 = vpop.f32.mrb[0].mxu0
        %1476 = vmatprep.mubr.bf16.mxu0 0
        %1477 = vmatmul.mubr.bf16.gmra.mrb[0].mxu0 %v1416
        %v1478 = vpop.f32.mrb[0].mxu0
        %v1479 = vadd.f32 0.0, %v1478
        %v1480 = vpop.f32.mrb[0].mxu0
        %v1481 = vpop.f32.mrb[0].mxu0
        %v1482 = vadd.f32 0.0, %v1481
        %v1483 = vpop.f32.mrb[0].mxu0
        %1484 = vmatprep.mubr.bf16.mxu0 0
        %1485 = vmatmul.mubr.bf16.gmra.mrb[0].mxu0 %v1419
        %v1486 = vpop.f32.mrb[0].mxu0
        %v1487 = vadd.f32 0.0, %v1486
        %v1488 = vpop.f32.mrb[0].mxu0
        %v1489 = vpop.f32.mrb[0].mxu0
        %v1490 = vadd.f32 0.0, %v1489
        %v1491 = vpop.f32.mrb[0].mxu0
        %1492 = vmatprep.mubr.bf16.mxu0 0
        %1493 = vmatmul.mubr.bf16.gmra.mrb[0].mxu0 %v1422
        %v1494 = vpop.f32.mrb[0].mxu0
        %v1495 = vadd.f32 0.0, %v1494
        %v1496 = vpop.f32.mrb[0].mxu0
        %v1497 = vpop.f32.mrb[0].mxu0
        %v1498 = vadd.f32 0.0, %v1497
        %v1499 = vpop.f32.mrb[0].mxu0
        %1500 = vdwg.mxu0
        %1505 = vrot.lane.b32.xlu0 %v1274, 96
        %v1506 = vpop.permute.xlu0 %1505
        %1507 = vrot.lane.b32.xlu0 %v1275, 96
        %v1508 = vpop.permute.xlu0 %1507
        %1509 = vrot.lane.b32.xlu0 %v1276, 96
        %v1510 = vpop.permute.xlu0 %1509
        %1511 = vrot.lane.b32.xlu0 %v1277, 96
        %v1512 = vpop.permute.xlu0 %1511
        %v1514 = vsel %vm1310, %v1274, 0
        %v1517 = vsel %vm1310, %v1275, 0
        %v1520 = vsel %vm1310, %v1276, 0
        %v1523 = vsel %vm1310, %v1277, 0
        %v1526 = vsel %vm1310, %v1506, 0
        %v1529 = vsel %vm1310, %v1508, 0
        %v1532 = vsel %vm1310, %v1510, 0
        %v1535 = vsel %vm1310, %v1512, 0
        %1537 = vmatprep.subr.bf16.mxu0 0
        %1538 = vmatpush1.bf16.xpose.msra.mxu0 %v1526
        %1539 = vmatprep.subr.bf16.mxu0 0
        %1540 = vmatpush1.bf16.xpose.msra.mxu0 %v1529
        %1541 = vmatprep.subr.bf16.mxu0 0
        %1542 = vmatpush1.bf16.xpose.msra.mxu0 %v1532
        %1543 = vmatprep.subr.bf16.mxu0 0
        %1544 = vmatpush1.bf16.xpose.msra.mxu0 %v1535
        %1545 = vmatprep.subr.bf16.mxu0 0
        %1546 = vmatpush1.bf16.xpose.msra.mxu0 0
        %1547 = vmatprep.subr.bf16.mxu0 0
        %1548 = vmatpush1.bf16.xpose.msra.mxu0 0
        %1549 = vmatprep.subr.bf16.mxu0 0
        %1550 = vmatpush1.bf16.xpose.msra.mxu0 0
        %1551 = vmatprep.subr.bf16.mxu0 0
        %1552 = vmatpush1.bf16.xpose.msra.mxu0 0
        %1553 = vmatprep.subr.bf16.mxu0 0
        %1554 = vmatpush1.bf16.xpose.msra.mxu0 0
        %1555 = vmatprep.subr.bf16.mxu0 0
        %1556 = vmatpush1.bf16.xpose.msra.mxu0 0
        %1557 = vmatprep.subr.bf16.mxu0 0
        %1558 = vmatpush1.bf16.xpose.msra.mxu0 0
        %1559 = vmatprep.subr.bf16.mxu0 0
        %1560 = vmatpush1.bf16.xpose.msra.mxu0 0
        %1561 = vmatprep.subr.bf16.mxu0 0
        %1562 = vmatpush1.bf16.xpose.msra.mxu0 0
        %1563 = vmatprep.subr.bf16.mxu0 0
        %1564 = vmatpush1.bf16.xpose.msra.mxu0 0
        %1565 = vmatprep.subr.bf16.mxu0 0
        %1566 = vmatpush1.bf16.xpose.msra.mxu0 0
        %1567 = vmatprep.subr.bf16.mxu0 0
        %1568 = vmatpush1.bf16.xpose.msra.mxu0 0
        %1569 = vmatprep.mubr.bf16.mxu0 0
        %1570 = vmatmul.mubr.bf16.gmra.mrb[0].mxu0 %v1514
        %v1571 = vpop.f32.mrb[0].mxu0
        %v1572 = vadd.f32 0.0, %v1571
        %v1573 = vpop.f32.mrb[0].mxu0
        %v1574 = vpop.f32.mrb[0].mxu0
        %v1575 = vadd.f32 0.0, %v1574
        %v1576 = vpop.f32.mrb[0].mxu0
        %1577 = vmatprep.mubr.bf16.mxu0 0
        %1578 = vmatmul.mubr.bf16.gmra.mrb[0].mxu0 %v1517
        %v1579 = vpop.f32.mrb[0].mxu0
        %v1580 = vadd.f32 0.0, %v1579
        %v1581 = vpop.f32.mrb[0].mxu0
        %v1582 = vpop.f32.mrb[0].mxu0
        %v1583 = vadd.f32 0.0, %v1582
        %v1584 = vpop.f32.mrb[0].mxu0
        %1585 = vmatprep.mubr.bf16.mxu0 0
        %1586 = vmatmul.mubr.bf16.gmra.mrb[0].mxu0 %v1520
        %v1587 = vpop.f32.mrb[0].mxu0
        %v1588 = vadd.f32 0.0, %v1587
        %v1589 = vpop.f32.mrb[0].mxu0
        %v1590 = vpop.f32.mrb[0].mxu0
        %v1591 = vadd.f32 0.0, %v1590
        %v1592 = vpop.f32.mrb[0].mxu0
        %1593 = vmatprep.mubr.bf16.mxu0 0
        %1594 = vmatmul.mubr.bf16.gmra.mrb[0].mxu0 %v1523
        %v1595 = vpop.f32.mrb[0].mxu0
        %v1596 = vadd.f32 0.0, %v1595
        %v1597 = vpop.f32.mrb[0].mxu0
        %v1598 = vpop.f32.mrb[0].mxu0
        %v1599 = vadd.f32 0.0, %v1598
        %v1600 = vpop.f32.mrb[0].mxu0
        %1601 = vdwg.mxu0
        %1606 = vrot.lane.b32.xlu0 %v1278, 96
        %v1607 = vpop.permute.xlu0 %1606
        %1608 = vrot.lane.b32.xlu0 %v1279, 96
        %v1609 = vpop.permute.xlu0 %1608
        %1610 = vrot.lane.b32.xlu0 %v1280, 96
        %v1611 = vpop.permute.xlu0 %1610
        %1612 = vrot.lane.b32.xlu0 %v1281, 96
        %v1613 = vpop.permute.xlu0 %1612
        %v1615 = vsel %vm1310, %v1278, 0
        %v1618 = vsel %vm1310, %v1279, 0
        %v1621 = vsel %vm1310, %v1280, 0
        %v1624 = vsel %vm1310, %v1281, 0
        %v1627 = vsel %vm1310, %v1607, 0
        %v1630 = vsel %vm1310, %v1609, 0
        %v1633 = vsel %vm1310, %v1611, 0
        %v1636 = vsel %vm1310, %v1613, 0
        %1638 = vmatprep.subr.bf16.mxu0 0
        %1639 = vmatpush1.bf16.xpose.msra.mxu0 %v1627
        %1640 = vmatprep.subr.bf16.mxu0 0
        %1641 = vmatpush1.bf16.xpose.msra.mxu0 %v1630
        %1642 = vmatprep.subr.bf16.mxu0 0
        %1643 = vmatpush1.bf16.xpose.msra.mxu0 %v1633
        %1644 = vmatprep.subr.bf16.mxu0 0
        %1645 = vmatpush1.bf16.xpose.msra.mxu0 %v1636
        %1646 = vmatprep.subr.bf16.mxu0 0
        %1647 = vmatpush1.bf16.xpose.msra.mxu0 0
        %1648 = vmatprep.subr.bf16.mxu0 0
        %1649 = vmatpush1.bf16.xpose.msra.mxu0 0
        %1650 = vmatprep.subr.bf16.mxu0 0
        %1651 = vmatpush1.bf16.xpose.msra.mxu0 0
        %1652 = vmatprep.subr.bf16.mxu0 0
        %1653 = vmatpush1.bf16.xpose.msra.mxu0 0
        %1654 = vmatprep.subr.bf16.mxu0 0
        %1655 = vmatpush1.bf16.xpose.msra.mxu0 0
        %1656 = vmatprep.subr.bf16.mxu0 0
        %1657 = vmatpush1.bf16.xpose.msra.mxu0 0
        %1658 = vmatprep.subr.bf16.mxu0 0
        %1659 = vmatpush1.bf16.xpose.msra.mxu0 0
        %1660 = vmatprep.subr.bf16.mxu0 0
        %1661 = vmatpush1.bf16.xpose.msra.mxu0 0
        %1662 = vmatprep.subr.bf16.mxu0 0
        %1663 = vmatpush1.bf16.xpose.msra.mxu0 0
        %1664 = vmatprep.subr.bf16.mxu0 0
        %1665 = vmatpush1.bf16.xpose.msra.mxu0 0
        %1666 = vmatprep.subr.bf16.mxu0 0
        %1667 = vmatpush1.bf16.xpose.msra.mxu0 0
        %1668 = vmatprep.subr.bf16.mxu0 0
        %1669 = vmatpush1.bf16.xpose.msra.mxu0 0
        %1670 = vmatprep.mubr.bf16.mxu0 0
        %1671 = vmatmul.mubr.bf16.gmra.mrb[0].mxu0 %v1615
        %v1672 = vpop.f32.mrb[0].mxu0
        %v1673 = vadd.f32 0.0, %v1672
        %v1674 = vpop.f32.mrb[0].mxu0
        %v1675 = vpop.f32.mrb[0].mxu0
        %v1676 = vadd.f32 0.0, %v1675
        %v1677 = vpop.f32.mrb[0].mxu0
        %1678 = vmatprep.mubr.bf16.mxu0 0
        %1679 = vmatmul.mubr.bf16.gmra.mrb[0].mxu0 %v1618
        %v1680 = vpop.f32.mrb[0].mxu0
        %v1681 = vadd.f32 0.0, %v1680
        %v1682 = vpop.f32.mrb[0].mxu0
        %v1683 = vpop.f32.mrb[0].mxu0
        %v1684 = vadd.f32 0.0, %v1683
        %v1685 = vpop.f32.mrb[0].mxu0
        %1686 = vmatprep.mubr.bf16.mxu0 0
        %1687 = vmatmul.mubr.bf16.gmra.mrb[0].mxu0 %v1621
        %v1688 = vpop.f32.mrb[0].mxu0
        %v1689 = vadd.f32 0.0, %v1688
        %v1690 = vpop.f32.mrb[0].mxu0
        %v1691 = vpop.f32.mrb[0].mxu0
        %v1692 = vadd.f32 0.0, %v1691
        %v1693 = vpop.f32.mrb[0].mxu0
        %1694 = vmatprep.mubr.bf16.mxu0 0
        %1695 = vmatmul.mubr.bf16.gmra.mrb[0].mxu0 %v1624
        %v1696 = vpop.f32.mrb[0].mxu0
        %v1697 = vadd.f32 0.0, %v1696
        %v1698 = vpop.f32.mrb[0].mxu0
        %v1699 = vpop.f32.mrb[0].mxu0
        %v1700 = vadd.f32 0.0, %v1699
        %v1701 = vpop.f32.mrb[0].mxu0
        %1702 = vdwg.mxu0
        %1707 = vrot.lane.b32.xlu0 %v1282, 96
        %v1708 = vpop.permute.xlu0 %1707
        %1709 = vrot.lane.b32.xlu0 %v1283, 96
        %v1710 = vpop.permute.xlu0 %1709
        %1711 = vrot.lane.b32.xlu0 %v1284, 96
        %v1712 = vpop.permute.xlu0 %1711
        %1713 = vrot.lane.b32.xlu0 %v1285, 96
        %v1714 = vpop.permute.xlu0 %1713
        %v1716 = vsel %vm1310, %v1282, 0
        %v1719 = vsel %vm1310, %v1283, 0
        %v1722 = vsel %vm1310, %v1284, 0
        %v1725 = vsel %vm1310, %v1285, 0
        %v1728 = vsel %vm1310, %v1708, 0
        %v1731 = vsel %vm1310, %v1710, 0
        %v1734 = vsel %vm1310, %v1712, 0
        %v1737 = vsel %vm1310, %v1714, 0
        %1739 = vmatprep.subr.bf16.mxu0 0
        %1740 = vmatpush1.bf16.xpose.msra.mxu0 %v1728
        %1741 = vmatprep.subr.bf16.mxu0 0
        %1742 = vmatpush1.bf16.xpose.msra.mxu0 %v1731
        %1743 = vmatprep.subr.bf16.mxu0 0
        %1744 = vmatpush1.bf16.xpose.msra.mxu0 %v1734
        %1745 = vmatprep.subr.bf16.mxu0 0
        %1746 = vmatpush1.bf16.xpose.msra.mxu0 %v1737
        %1747 = vmatprep.subr.bf16.mxu0 0
        %1748 = vmatpush1.bf16.xpose.msra.mxu0 0
        %1749 = vmatprep.subr.bf16.mxu0 0
        %1750 = vmatpush1.bf16.xpose.msra.mxu0 0
        %1751 = vmatprep.subr.bf16.mxu0 0
        %1752 = vmatpush1.bf16.xpose.msra.mxu0 0
        %1753 = vmatprep.subr.bf16.mxu0 0
        %1754 = vmatpush1.bf16.xpose.msra.mxu0 0
        %1755 = vmatprep.subr.bf16.mxu0 0
        %1756 = vmatpush1.bf16.xpose.msra.mxu0 0
        %1757 = vmatprep.subr.bf16.mxu0 0
        %1758 = vmatpush1.bf16.xpose.msra.mxu0 0
        %1759 = vmatprep.subr.bf16.mxu0 0
        %1760 = vmatpush1.bf16.xpose.msra.mxu0 0
        %1761 = vmatprep.subr.bf16.mxu0 0
        %1762 = vmatpush1.bf16.xpose.msra.mxu0 0
        %1763 = vmatprep.subr.bf16.mxu0 0
        %1764 = vmatpush1.bf16.xpose.msra.mxu0 0
        %1765 = vmatprep.subr.bf16.mxu0 0
        %1766 = vmatpush1.bf16.xpose.msra.mxu0 0
        %1767 = vmatprep.subr.bf16.mxu0 0
        %1768 = vmatpush1.bf16.xpose.msra.mxu0 0
        %1769 = vmatprep.subr.bf16.mxu0 0
        %1770 = vmatpush1.bf16.xpose.msra.mxu0 0
        %1771 = vmatprep.mubr.bf16.mxu0 0
        %1772 = vmatmul.mubr.bf16.gmra.mrb[0].mxu0 %v1716
        %v1773 = vpop.f32.mrb[0].mxu0
        %v1774 = vadd.f32 0.0, %v1773
        %v1775 = vpop.f32.mrb[0].mxu0
        %v1776 = vpop.f32.mrb[0].mxu0
        %v1777 = vadd.f32 0.0, %v1776
        %v1778 = vpop.f32.mrb[0].mxu0
        %1779 = vmatprep.mubr.bf16.mxu0 0
        %1780 = vmatmul.mubr.bf16.gmra.mrb[0].mxu0 %v1719
        %v1781 = vpop.f32.mrb[0].mxu0
        %v1782 = vadd.f32 0.0, %v1781
        %v1783 = vpop.f32.mrb[0].mxu0
        %v1784 = vpop.f32.mrb[0].mxu0
        %v1785 = vadd.f32 0.0, %v1784
        %v1786 = vpop.f32.mrb[0].mxu0
        %1787 = vmatprep.mubr.bf16.mxu0 0
        %1788 = vmatmul.mubr.bf16.gmra.mrb[0].mxu0 %v1722
        %v1789 = vpop.f32.mrb[0].mxu0
        %v1790 = vadd.f32 0.0, %v1789
        %v1791 = vpop.f32.mrb[0].mxu0
        %v1792 = vpop.f32.mrb[0].mxu0
        %v1793 = vadd.f32 0.0, %v1792
        %v1794 = vpop.f32.mrb[0].mxu0
        %1795 = vmatprep.mubr.bf16.mxu0 0
        %1796 = vmatmul.mubr.bf16.gmra.mrb[0].mxu0 %v1725
        %v1797 = vpop.f32.mrb[0].mxu0
        %v1798 = vadd.f32 0.0, %v1797
        %v1799 = vpop.f32.mrb[0].mxu0
        %v1800 = vpop.f32.mrb[0].mxu0
        %v1801 = vadd.f32 0.0, %v1800
        %v1802 = vpop.f32.mrb[0].mxu0
        %1803 = vdwg.mxu0
        %1808 = vrot.lane.b32.xlu0 %v1286, 96
        %v1809 = vpop.permute.xlu0 %1808
        %1810 = vrot.lane.b32.xlu0 %v1287, 96
        %v1811 = vpop.permute.xlu0 %1810
        %1812 = vrot.lane.b32.xlu0 %v1288, 96
        %v1813 = vpop.permute.xlu0 %1812
        %1814 = vrot.lane.b32.xlu0 %v1289, 96
        %v1815 = vpop.permute.xlu0 %1814
        %v1817 = vsel %vm1310, %v1286, 0
        %v1820 = vsel %vm1310, %v1287, 0
        %v1823 = vsel %vm1310, %v1288, 0
        %v1826 = vsel %vm1310, %v1289, 0
        %v1829 = vsel %vm1310, %v1809, 0
        %v1832 = vsel %vm1310, %v1811, 0
        %v1835 = vsel %vm1310, %v1813, 0
        %v1838 = vsel %vm1310, %v1815, 0
        %1840 = vmatprep.subr.bf16.mxu0 0
        %1841 = vmatpush1.bf16.xpose.msra.mxu0 %v1829
        %1842 = vmatprep.subr.bf16.mxu0 0
        %1843 = vmatpush1.bf16.xpose.msra.mxu0 %v1832
        %1844 = vmatprep.subr.bf16.mxu0 0
        %1845 = vmatpush1.bf16.xpose.msra.mxu0 %v1835
        %1846 = vmatprep.subr.bf16.mxu0 0
        %1847 = vmatpush1.bf16.xpose.msra.mxu0 %v1838
        %1848 = vmatprep.subr.bf16.mxu0 0
        %1849 = vmatpush1.bf16.xpose.msra.mxu0 0
        %1850 = vmatprep.subr.bf16.mxu0 0
        %1851 = vmatpush1.bf16.xpose.msra.mxu0 0
        %1852 = vmatprep.subr.bf16.mxu0 0
        %1853 = vmatpush1.bf16.xpose.msra.mxu0 0
        %1854 = vmatprep.subr.bf16.mxu0 0
        %1855 = vmatpush1.bf16.xpose.msra.mxu0 0
        %1856 = vmatprep.subr.bf16.mxu0 0
        %1857 = vmatpush1.bf16.xpose.msra.mxu0 0
        %1858 = vmatprep.subr.bf16.mxu0 0
        %1859 = vmatpush1.bf16.xpose.msra.mxu0 0
        %1860 = vmatprep.subr.bf16.mxu0 0
        %1861 = vmatpush1.bf16.xpose.msra.mxu0 0
        %1862 = vmatprep.subr.bf16.mxu0 0
        %1863 = vmatpush1.bf16.xpose.msra.mxu0 0
        %1864 = vmatprep.subr.bf16.mxu0 0
        %1865 = vmatpush1.bf16.xpose.msra.mxu0 0
        %1866 = vmatprep.subr.bf16.mxu0 0
        %1867 = vmatpush1.bf16.xpose.msra.mxu0 0
        %1868 = vmatprep.subr.bf16.mxu0 0
        %1869 = vmatpush1.bf16.xpose.msra.mxu0 0
        %1870 = vmatprep.subr.bf16.mxu0 0
        %1871 = vmatpush1.bf16.xpose.msra.mxu0 0
        %1872 = vmatprep.mubr.bf16.mxu0 0
        %1873 = vmatmul.mubr.bf16.gmra.mrb[0].mxu0 %v1817
        %v1874 = vpop.f32.mrb[0].mxu0
        %v1875 = vadd.f32 0.0, %v1874
        %v1876 = vpop.f32.mrb[0].mxu0
        %v1877 = vpop.f32.mrb[0].mxu0
        %v1878 = vadd.f32 0.0, %v1877
        %v1879 = vpop.f32.mrb[0].mxu0
        %1880 = vmatprep.mubr.bf16.mxu0 0
        %1881 = vmatmul.mubr.bf16.gmra.mrb[0].mxu0 %v1820
        %v1882 = vpop.f32.mrb[0].mxu0
        %v1883 = vadd.f32 0.0, %v1882
        %v1884 = vpop.f32.mrb[0].mxu0
        %v1885 = vpop.f32.mrb[0].mxu0
        %v1886 = vadd.f32 0.0, %v1885
        %v1887 = vpop.f32.mrb[0].mxu0
        %1888 = vmatprep.mubr.bf16.mxu0 0
        %1889 = vmatmul.mubr.bf16.gmra.mrb[0].mxu0 %v1823
        %v1890 = vpop.f32.mrb[0].mxu0
        %v1891 = vadd.f32 0.0, %v1890
        %v1892 = vpop.f32.mrb[0].mxu0
        %v1893 = vpop.f32.mrb[0].mxu0
        %v1894 = vadd.f32 0.0, %v1893
        %v1895 = vpop.f32.mrb[0].mxu0
        %1896 = vmatprep.mubr.bf16.mxu0 0
        %1897 = vmatmul.mubr.bf16.gmra.mrb[0].mxu0 %v1826
        %v1898 = vpop.f32.mrb[0].mxu0
        %v1899 = vadd.f32 0.0, %v1898
        %v1900 = vpop.f32.mrb[0].mxu0
        %v1901 = vpop.f32.mrb[0].mxu0
        %v1902 = vadd.f32 0.0, %v1901
        %v1903 = vpop.f32.mrb[0].mxu0
        %1904 = vdwg.mxu0
        %1909 = vrot.lane.b32.xlu0 %v1290, 96
        %v1910 = vpop.permute.xlu0 %1909
        %1911 = vrot.lane.b32.xlu0 %v1291, 96
        %v1912 = vpop.permute.xlu0 %1911
        %1913 = vrot.lane.b32.xlu0 %v1292, 96
        %v1914 = vpop.permute.xlu0 %1913
        %1915 = vrot.lane.b32.xlu0 %v1293, 96
        %v1916 = vpop.permute.xlu0 %1915
        %v1918 = vsel %vm1310, %v1290, 0
        %v1921 = vsel %vm1310, %v1291, 0
        %v1924 = vsel %vm1310, %v1292, 0
        %v1927 = vsel %vm1310, %v1293, 0
        %v1930 = vsel %vm1310, %v1910, 0
        %v1933 = vsel %vm1310, %v1912, 0
        %v1936 = vsel %vm1310, %v1914, 0
        %v1939 = vsel %vm1310, %v1916, 0
        %1941 = vmatprep.subr.bf16.mxu0 0
        %1942 = vmatpush1.bf16.xpose.msra.mxu0 %v1930
        %1943 = vmatprep.subr.bf16.mxu0 0
        %1944 = vmatpush1.bf16.xpose.msra.mxu0 %v1933
        %1945 = vmatprep.subr.bf16.mxu0 0
        %1946 = vmatpush1.bf16.xpose.msra.mxu0 %v1936
        %1947 = vmatprep.subr.bf16.mxu0 0
        %1948 = vmatpush1.bf16.xpose.msra.mxu0 %v1939
        %1949 = vmatprep.subr.bf16.mxu0 0
        %1950 = vmatpush1.bf16.xpose.msra.mxu0 0
        %1951 = vmatprep.subr.bf16.mxu0 0
        %1952 = vmatpush1.bf16.xpose.msra.mxu0 0
        %1953 = vmatprep.subr.bf16.mxu0 0
        %1954 = vmatpush1.bf16.xpose.msra.mxu0 0
        %1955 = vmatprep.subr.bf16.mxu0 0
        %1956 = vmatpush1.bf16.xpose.msra.mxu0 0
        %1957 = vmatprep.subr.bf16.mxu0 0
        %1958 = vmatpush1.bf16.xpose.msra.mxu0 0
        %1959 = vmatprep.subr.bf16.mxu0 0
        %1960 = vmatpush1.bf16.xpose.msra.mxu0 0
        %1961 = vmatprep.subr.bf16.mxu0 0
        %1962 = vmatpush1.bf16.xpose.msra.mxu0 0
        %1963 = vmatprep.subr.bf16.mxu0 0
        %1964 = vmatpush1.bf16.xpose.msra.mxu0 0
        %1965 = vmatprep.subr.bf16.mxu0 0
        %1966 = vmatpush1.bf16.xpose.msra.mxu0 0
        %1967 = vmatprep.subr.bf16.mxu0 0
        %1968 = vmatpush1.bf16.xpose.msra.mxu0 0
        %1969 = vmatprep.subr.bf16.mxu0 0
        %1970 = vmatpush1.bf16.xpose.msra.mxu0 0
        %1971 = vmatprep.subr.bf16.mxu0 0
        %1972 = vmatpush1.bf16.xpose.msra.mxu0 0
        %1973 = vmatprep.mubr.bf16.mxu0 0
        %1974 = vmatmul.mubr.bf16.gmra.mrb[0].mxu0 %v1918
        %v1975 = vpop.f32.mrb[0].mxu0
        %v1976 = vadd.f32 0.0, %v1975
        %v1977 = vpop.f32.mrb[0].mxu0
        %v1978 = vpop.f32.mrb[0].mxu0
        %v1979 = vadd.f32 0.0, %v1978
        %v1980 = vpop.f32.mrb[0].mxu0
        %1981 = vmatprep.mubr.bf16.mxu0 0
        %1982 = vmatmul.mubr.bf16.gmra.mrb[0].mxu0 %v1921
        %v1983 = vpop.f32.mrb[0].mxu0
        %v1984 = vadd.f32 0.0, %v1983
        %v1985 = vpop.f32.mrb[0].mxu0
        %v1986 = vpop.f32.mrb[0].mxu0
        %v1987 = vadd.f32 0.0, %v1986
        %v1988 = vpop.f32.mrb[0].mxu0
        %1989 = vmatprep.mubr.bf16.mxu0 0
        %1990 = vmatmul.mubr.bf16.gmra.mrb[0].mxu0 %v1924
        %v1991 = vpop.f32.mrb[0].mxu0
        %v1992 = vadd.f32 0.0, %v1991
        %v1993 = vpop.f32.mrb[0].mxu0
        %v1994 = vpop.f32.mrb[0].mxu0
        %v1995 = vadd.f32 0.0, %v1994
        %v1996 = vpop.f32.mrb[0].mxu0
        %1997 = vmatprep.mubr.bf16.mxu0 0
        %1998 = vmatmul.mubr.bf16.gmra.mrb[0].mxu0 %v1927
        %v1999 = vpop.f32.mrb[0].mxu0
        %v2000 = vadd.f32 0.0, %v1999
        %v2001 = vpop.f32.mrb[0].mxu0
        %v2002 = vpop.f32.mrb[0].mxu0
        %v2003 = vadd.f32 0.0, %v2002
        %v2004 = vpop.f32.mrb[0].mxu0
        %2005 = vdwg.mxu0
        %2010 = vrot.lane.b32.xlu0 %v1294, 96
        %v2011 = vpop.permute.xlu0 %2010
        %2012 = vrot.lane.b32.xlu0 %v1295, 96
        %v2013 = vpop.permute.xlu0 %2012
        %2014 = vrot.lane.b32.xlu0 %v1296, 96
        %v2015 = vpop.permute.xlu0 %2014
        %2016 = vrot.lane.b32.xlu0 %v1297, 96
        %v2017 = vpop.permute.xlu0 %2016
        %v2019 = vsel %vm1310, %v1294, 0
        %v2022 = vsel %vm1310, %v1295, 0
        %v2025 = vsel %vm1310, %v1296, 0
        %v2028 = vsel %vm1310, %v1297, 0
        %v2031 = vsel %vm1310, %v2011, 0
        %v2034 = vsel %vm1310, %v2013, 0
        %v2037 = vsel %vm1310, %v2015, 0
        %v2040 = vsel %vm1310, %v2017, 0
        %2042 = vmatprep.subr.bf16.mxu0 0
        %2043 = vmatpush1.bf16.xpose.msra.mxu0 %v2031
        %2044 = vmatprep.subr.bf16.mxu0 0
        %2045 = vmatpush1.bf16.xpose.msra.mxu0 %v2034
        %2046 = vmatprep.subr.bf16.mxu0 0
        %2047 = vmatpush1.bf16.xpose.msra.mxu0 %v2037
        %2048 = vmatprep.subr.bf16.mxu0 0
        %2049 = vmatpush1.bf16.xpose.msra.mxu0 %v2040
        %2050 = vmatprep.subr.bf16.mxu0 0
        %2051 = vmatpush1.bf16.xpose.msra.mxu0 0
        %2052 = vmatprep.subr.bf16.mxu0 0
        %2053 = vmatpush1.bf16.xpose.msra.mxu0 0
        %2054 = vmatprep.subr.bf16.mxu0 0
        %2055 = vmatpush1.bf16.xpose.msra.mxu0 0
        %2056 = vmatprep.subr.bf16.mxu0 0
        %2057 = vmatpush1.bf16.xpose.msra.mxu0 0
        %2058 = vmatprep.subr.bf16.mxu0 0
        %2059 = vmatpush1.bf16.xpose.msra.mxu0 0
        %2060 = vmatprep.subr.bf16.mxu0 0
        %2061 = vmatpush1.bf16.xpose.msra.mxu0 0
        %2062 = vmatprep.subr.bf16.mxu0 0
        %2063 = vmatpush1.bf16.xpose.msra.mxu0 0
        %2064 = vmatprep.subr.bf16.mxu0 0
        %2065 = vmatpush1.bf16.xpose.msra.mxu0 0
        %2066 = vmatprep.subr.bf16.mxu0 0
        %2067 = vmatpush1.bf16.xpose.msra.mxu0 0
        %2068 = vmatprep.subr.bf16.mxu0 0
        %2069 = vmatpush1.bf16.xpose.msra.mxu0 0
        %2070 = vmatprep.subr.bf16.mxu0 0
        %2071 = vmatpush1.bf16.xpose.msra.mxu0 0
        %2072 = vmatprep.subr.bf16.mxu0 0
        %2073 = vmatpush1.bf16.xpose.msra.mxu0 0
        %2074 = vmatprep.mubr.bf16.mxu0 0
        %2075 = vmatmul.mubr.bf16.gmra.mrb[0].mxu0 %v2019
        %v2076 = vpop.f32.mrb[0].mxu0
        %v2077 = vadd.f32 0.0, %v2076
        %v2078 = vpop.f32.mrb[0].mxu0
        %v2079 = vpop.f32.mrb[0].mxu0
        %v2080 = vadd.f32 0.0, %v2079
        %v2081 = vpop.f32.mrb[0].mxu0
        %2082 = vmatprep.mubr.bf16.mxu0 0
        %2083 = vmatmul.mubr.bf16.gmra.mrb[0].mxu0 %v2022
        %v2084 = vpop.f32.mrb[0].mxu0
        %v2085 = vadd.f32 0.0, %v2084
        %v2086 = vpop.f32.mrb[0].mxu0
        %v2087 = vpop.f32.mrb[0].mxu0
        %v2088 = vadd.f32 0.0, %v2087
        %v2089 = vpop.f32.mrb[0].mxu0
        %2090 = vmatprep.mubr.bf16.mxu0 0
        %2091 = vmatmul.mubr.bf16.gmra.mrb[0].mxu0 %v2025
        %v2092 = vpop.f32.mrb[0].mxu0
        %v2093 = vadd.f32 0.0, %v2092
        %v2094 = vpop.f32.mrb[0].mxu0
        %v2095 = vpop.f32.mrb[0].mxu0
        %v2096 = vadd.f32 0.0, %v2095
        %v2097 = vpop.f32.mrb[0].mxu0
        %2098 = vmatprep.mubr.bf16.mxu0 0
        %2099 = vmatmul.mubr.bf16.gmra.mrb[0].mxu0 %v2028
        %v2100 = vpop.f32.mrb[0].mxu0
        %v2101 = vadd.f32 0.0, %v2100
        %v2102 = vpop.f32.mrb[0].mxu0
        %v2103 = vpop.f32.mrb[0].mxu0
        %v2104 = vadd.f32 0.0, %v2103
        %v2105 = vpop.f32.mrb[0].mxu0
        %2106 = vdwg.mxu0
        %vm2107 = vcmask 523264
        %v2108 = vsel %vm2107, %v1370, -inf
        %2109 = vmax.xlane.f32.xlu0 %v2108
        %v2110 = vpop.xlane.xlu0 %2109
        %v2111 = vsel %vm2107, %v1373, -inf
        %2112 = vmax.xlane.f32.xlu0 %v2111
        %v2113 = vpop.xlane.xlu0 %2112
        %v2114 = vsel %vm2107, %v1378, -inf
        %2115 = vmax.xlane.f32.xlu0 %v2114
        %v2116 = vpop.xlane.xlu0 %2115
        %v2117 = vsel %vm2107, %v1381, -inf
        %2118 = vmax.xlane.f32.xlu0 %v2117
        %v2119 = vpop.xlane.xlu0 %2118
        %v2120 = vsel %vm2107, %v1386, -inf
        %2121 = vmax.xlane.f32.xlu0 %v2120
        %v2122 = vpop.xlane.xlu0 %2121
        %v2123 = vsel %vm2107, %v1389, -inf
        %2124 = vmax.xlane.f32.xlu0 %v2123
        %v2125 = vpop.xlane.xlu0 %2124
        %v2126 = vsel %vm2107, %v1394, -inf
        %2127 = vmax.xlane.f32.xlu0 %v2126
        %v2128 = vpop.xlane.xlu0 %2127
        %v2129 = vsel %vm2107, %v1397, -inf
        %2130 = vmax.xlane.f32.xlu0 %v2129
        %v2131 = vpop.xlane.xlu0 %2130
        %v2132 = vsel %vm2107, %v1471, -inf
        %2133 = vmax.xlane.f32.xlu0 %v2132
        %v2134 = vpop.xlane.xlu0 %2133
        %v2135 = vsel %vm2107, %v1474, -inf
        %2136 = vmax.xlane.f32.xlu0 %v2135
        %v2137 = vpop.xlane.xlu0 %2136
        %v2138 = vsel %vm2107, %v1479, -inf
        %2139 = vmax.xlane.f32.xlu0 %v2138
        %v2140 = vpop.xlane.xlu0 %2139
        %v2141 = vsel %vm2107, %v1482, -inf
        %2142 = vmax.xlane.f32.xlu0 %v2141
        %v2143 = vpop.xlane.xlu0 %2142
        %v2144 = vsel %vm2107, %v1487, -inf
        %2145 = vmax.xlane.f32.xlu0 %v2144
        %v2146 = vpop.xlane.xlu0 %2145
        %v2147 = vsel %vm2107, %v1490, -inf
        %2148 = vmax.xlane.f32.xlu0 %v2147
        %v2149 = vpop.xlane.xlu0 %2148
        %v2150 = vsel %vm2107, %v1495, -inf
        %2151 = vmax.xlane.f32.xlu0 %v2150
        %v2152 = vpop.xlane.xlu0 %2151
        %v2153 = vsel %vm2107, %v1498, -inf
        %2154 = vmax.xlane.f32.xlu0 %v2153
        %v2155 = vpop.xlane.xlu0 %2154
        %v2156 = vsel %vm2107, %v1572, -inf
        %2157 = vmax.xlane.f32.xlu0 %v2156
        %v2158 = vpop.xlane.xlu0 %2157
        %v2159 = vsel %vm2107, %v1575, -inf
        %2160 = vmax.xlane.f32.xlu0 %v2159
        %v2161 = vpop.xlane.xlu0 %2160
        %v2162 = vsel %vm2107, %v1580, -inf
        %2163 = vmax.xlane.f32.xlu0 %v2162
        %v2164 = vpop.xlane.xlu0 %2163
        %v2165 = vsel %vm2107, %v1583, -inf
        %2166 = vmax.xlane.f32.xlu0 %v2165
        %v2167 = vpop.xlane.xlu0 %2166
        %v2168 = vsel %vm2107, %v1588, -inf
        %2169 = vmax.xlane.f32.xlu0 %v2168
        %v2170 = vpop.xlane.xlu0 %2169
        %v2171 = vsel %vm2107, %v1591, -inf
        %2172 = vmax.xlane.f32.xlu0 %v2171
        %v2173 = vpop.xlane.xlu0 %2172
        %v2174 = vsel %vm2107, %v1596, -inf
        %2175 = vmax.xlane.f32.xlu0 %v2174
        %v2176 = vpop.xlane.xlu0 %2175
        %v2177 = vsel %vm2107, %v1599, -inf
        %2178 = vmax.xlane.f32.xlu0 %v2177
        %v2179 = vpop.xlane.xlu0 %2178
        %v2180 = vsel %vm2107, %v1673, -inf
        %2181 = vmax.xlane.f32.xlu0 %v2180
        %v2182 = vpop.xlane.xlu0 %2181
        %v2183 = vsel %vm2107, %v1676, -inf
        %2184 = vmax.xlane.f32.xlu0 %v2183
        %v2185 = vpop.xlane.xlu0 %2184
        %v2186 = vsel %vm2107, %v1681, -inf
        %2187 = vmax.xlane.f32.xlu0 %v2186
        %v2188 = vpop.xlane.xlu0 %2187
        %v2189 = vsel %vm2107, %v1684, -inf
        %2190 = vmax.xlane.f32.xlu0 %v2189
        %v2191 = vpop.xlane.xlu0 %2190
        %v2192 = vsel %vm2107, %v1689, -inf
        %2193 = vmax.xlane.f32.xlu0 %v2192
        %v2194 = vpop.xlane.xlu0 %2193
        %v2195 = vsel %vm2107, %v1692, -inf
        %2196 = vmax.xlane.f32.xlu0 %v2195
        %v2197 = vpop.xlane.xlu0 %2196
        %v2198 = vsel %vm2107, %v1697, -inf
        %2199 = vmax.xlane.f32.xlu0 %v2198
        %v2200 = vpop.xlane.xlu0 %2199
        %v2201 = vsel %vm2107, %v1700, -inf
        %2202 = vmax.xlane.f32.xlu0 %v2201
        %v2203 = vpop.xlane.xlu0 %2202
        %v2204 = vsel %vm2107, %v1774, -inf
        %2205 = vmax.xlane.f32.xlu0 %v2204
        %v2206 = vpop.xlane.xlu0 %2205
        %v2207 = vsel %vm2107, %v1777, -inf
        %2208 = vmax.xlane.f32.xlu0 %v2207
        %v2209 = vpop.xlane.xlu0 %2208
        %v2210 = vsel %vm2107, %v1782, -inf
        %2211 = vmax.xlane.f32.xlu0 %v2210
        %v2212 = vpop.xlane.xlu0 %2211
        %v2213 = vsel %vm2107, %v1785, -inf
        %2214 = vmax.xlane.f32.xlu0 %v2213
        %v2215 = vpop.xlane.xlu0 %2214
        %v2216 = vsel %vm2107, %v1790, -inf
        %2217 = vmax.xlane.f32.xlu0 %v2216
        %v2218 = vpop.xlane.xlu0 %2217
        %v2219 = vsel %vm2107, %v1793, -inf
        %2220 = vmax.xlane.f32.xlu0 %v2219
        %v2221 = vpop.xlane.xlu0 %2220
        %v2222 = vsel %vm2107, %v1798, -inf
        %2223 = vmax.xlane.f32.xlu0 %v2222
        %v2224 = vpop.xlane.xlu0 %2223
        %v2225 = vsel %vm2107, %v1801, -inf
        %2226 = vmax.xlane.f32.xlu0 %v2225
        %v2227 = vpop.xlane.xlu0 %2226
        %v2228 = vsel %vm2107, %v1875, -inf
        %2229 = vmax.xlane.f32.xlu0 %v2228
        %v2230 = vpop.xlane.xlu0 %2229
        %v2231 = vsel %vm2107, %v1878, -inf
        %2232 = vmax.xlane.f32.xlu0 %v2231
        %v2233 = vpop.xlane.xlu0 %2232
        %v2234 = vsel %vm2107, %v1883, -inf
        %2235 = vmax.xlane.f32.xlu0 %v2234
        %v2236 = vpop.xlane.xlu0 %2235
        %v2237 = vsel %vm2107, %v1886, -inf
        %2238 = vmax.xlane.f32.xlu0 %v2237
        %v2239 = vpop.xlane.xlu0 %2238
        %v2240 = vsel %vm2107, %v1891, -inf
        %2241 = vmax.xlane.f32.xlu0 %v2240
        %v2242 = vpop.xlane.xlu0 %2241
        %v2243 = vsel %vm2107, %v1894, -inf
        %2244 = vmax.xlane.f32.xlu0 %v2243
        %v2245 = vpop.xlane.xlu0 %2244
        %v2246 = vsel %vm2107, %v1899, -inf
        %2247 = vmax.xlane.f32.xlu0 %v2246
        %v2248 = vpop.xlane.xlu0 %2247
        %v2249 = vsel %vm2107, %v1902, -inf
        %2250 = vmax.xlane.f32.xlu0 %v2249
        %v2251 = vpop.xlane.xlu0 %2250
        %v2252 = vsel %vm2107, %v1976, -inf
        %2253 = vmax.xlane.f32.xlu0 %v2252
        %v2254 = vpop.xlane.xlu0 %2253
        %v2255 = vsel %vm2107, %v1979, -inf
        %2256 = vmax.xlane.f32.xlu0 %v2255
        %v2257 = vpop.xlane.xlu0 %2256
        %v2258 = vsel %vm2107, %v1984, -inf
        %2259 = vmax.xlane.f32.xlu0 %v2258
        %v2260 = vpop.xlane.xlu0 %2259
        %v2261 = vsel %vm2107, %v1987, -inf
        %2262 = vmax.xlane.f32.xlu0 %v2261
        %v2263 = vpop.xlane.xlu0 %2262
        %v2264 = vsel %vm2107, %v1992, -inf
        %2265 = vmax.xlane.f32.xlu0 %v2264
        %v2266 = vpop.xlane.xlu0 %2265
        %v2267 = vsel %vm2107, %v1995, -inf
        %2268 = vmax.xlane.f32.xlu0 %v2267
        %v2269 = vpop.xlane.xlu0 %2268
        %v2270 = vsel %vm2107, %v2000, -inf
        %2271 = vmax.xlane.f32.xlu0 %v2270
        %v2272 = vpop.xlane.xlu0 %2271
        %v2273 = vsel %vm2107, %v2003, -inf
        %2274 = vmax.xlane.f32.xlu0 %v2273
        %v2275 = vpop.xlane.xlu0 %2274
        %v2276 = vsel %vm2107, %v2077, -inf
        %2277 = vmax.xlane.f32.xlu0 %v2276
        %v2278 = vpop.xlane.xlu0 %2277
        %v2279 = vsel %vm2107, %v2080, -inf
        %2280 = vmax.xlane.f32.xlu0 %v2279
        %v2281 = vpop.xlane.xlu0 %2280
        %v2282 = vsel %vm2107, %v2085, -inf
        %2283 = vmax.xlane.f32.xlu0 %v2282
        %v2284 = vpop.xlane.xlu0 %2283
        %v2285 = vsel %vm2107, %v2088, -inf
        %2286 = vmax.xlane.f32.xlu0 %v2285
        %v2287 = vpop.xlane.xlu0 %2286
        %v2288 = vsel %vm2107, %v2093, -inf
        %2289 = vmax.xlane.f32.xlu0 %v2288
        %v2290 = vpop.xlane.xlu0 %2289
        %v2291 = vsel %vm2107, %v2096, -inf
        %2292 = vmax.xlane.f32.xlu0 %v2291
        %v2293 = vpop.xlane.xlu0 %2292
        %v2294 = vsel %vm2107, %v2101, -inf
        %2295 = vmax.xlane.f32.xlu0 %v2294
        %v2296 = vpop.xlane.xlu0 %2295
        %v2297 = vsel %vm2107, %v2104, -inf
        %2298 = vmax.xlane.f32.xlu0 %v2297
        %v2299 = vpop.xlane.xlu0 %2298
        %v2300 = vsub.f32 %v1370, %v2110
        %v2301 = vsub.f32 %v1373, %v2113
        %v2302 = vsub.f32 %v1378, %v2116
        %v2303 = vsub.f32 %v1381, %v2119
        %v2304 = vsub.f32 %v1386, %v2122
        %v2305 = vsub.f32 %v1389, %v2125
        %v2306 = vsub.f32 %v1394, %v2128
        %v2307 = vsub.f32 %v1397, %v2131
        %v2308 = vsub.f32 %v1471, %v2134
        %v2309 = vsub.f32 %v1474, %v2137
        %v2310 = vsub.f32 %v1479, %v2140
        %v2311 = vsub.f32 %v1482, %v2143
        %v2312 = vsub.f32 %v1487, %v2146
        %v2313 = vsub.f32 %v1490, %v2149
        %v2314 = vsub.f32 %v1495, %v2152
        %v2315 = vsub.f32 %v1498, %v2155
        %v2316 = vsub.f32 %v1572, %v2158
        %v2317 = vsub.f32 %v1575, %v2161
        %v2318 = vsub.f32 %v1580, %v2164
        %v2319 = vsub.f32 %v1583, %v2167
        %v2320 = vsub.f32 %v1588, %v2170
        %v2321 = vsub.f32 %v1591, %v2173
        %v2322 = vsub.f32 %v1596, %v2176
        %v2323 = vsub.f32 %v1599, %v2179
        %v2324 = vsub.f32 %v1673, %v2182
        %v2325 = vsub.f32 %v1676, %v2185
        %v2326 = vsub.f32 %v1681, %v2188
        %v2327 = vsub.f32 %v1684, %v2191
        %v2328 = vsub.f32 %v1689, %v2194
        %v2329 = vsub.f32 %v1692, %v2197
        %v2330 = vsub.f32 %v1697, %v2200
        %v2331 = vsub.f32 %v1700, %v2203
        %v2332 = vsub.f32 %v1774, %v2206
        %v2333 = vsub.f32 %v1777, %v2209
        %v2334 = vsub.f32 %v1782, %v2212
        %v2335 = vsub.f32 %v1785, %v2215
        %v2336 = vsub.f32 %v1790, %v2218
        %v2337 = vsub.f32 %v1793, %v2221
        %v2338 = vsub.f32 %v1798, %v2224
        %v2339 = vsub.f32 %v1801, %v2227
        %v2340 = vsub.f32 %v1875, %v2230
        %v2341 = vsub.f32 %v1878, %v2233
        %v2342 = vsub.f32 %v1883, %v2236
        %v2343 = vsub.f32 %v1886, %v2239
        %v2344 = vsub.f32 %v1891, %v2242
        %v2345 = vsub.f32 %v1894, %v2245
        %v2346 = vsub.f32 %v1899, %v2248
        %v2347 = vsub.f32 %v1902, %v2251
        %v2348 = vsub.f32 %v1976, %v2254
        %v2349 = vsub.f32 %v1979, %v2257
        %v2350 = vsub.f32 %v1984, %v2260
        %v2351 = vsub.f32 %v1987, %v2263
        %v2352 = vsub.f32 %v1992, %v2266
        %v2353 = vsub.f32 %v1995, %v2269
        %v2354 = vsub.f32 %v2000, %v2272
        %v2355 = vsub.f32 %v2003, %v2275
        %v2356 = vsub.f32 %v2077, %v2278
        %v2357 = vsub.f32 %v2080, %v2281
        %v2358 = vsub.f32 %v2085, %v2284
        %v2359 = vsub.f32 %v2088, %v2287
        %v2360 = vsub.f32 %v2093, %v2290
        %v2361 = vsub.f32 %v2096, %v2293
        %v2362 = vsub.f32 %v2101, %v2296
        %v2363 = vsub.f32 %v2104, %v2299
        %v2364 = vmul.f32 %v2300, 1.442695
        %v2365 = vpow.pop %v2364
        %v2366 = vmul.f32 %v2301, 1.442695
        %v2367 = vpow.pop %v2366
        %v2368 = vmul.f32 %v2302, 1.442695
        %v2369 = vpow.pop %v2368
        %v2370 = vmul.f32 %v2303, 1.442695
        %v2371 = vpow.pop %v2370
        %v2372 = vmul.f32 %v2304, 1.442695
        %v2373 = vpow.pop %v2372
        %v2374 = vmul.f32 %v2305, 1.442695
        %v2375 = vpow.pop %v2374
        %v2376 = vmul.f32 %v2306, 1.442695
        %v2377 = vpow.pop %v2376
        %v2378 = vmul.f32 %v2307, 1.442695
        %v2379 = vpow.pop %v2378
        %v2380 = vmul.f32 %v2308, 1.442695
        %v2381 = vpow.pop %v2380
        %v2382 = vmul.f32 %v2309, 1.442695
        %v2383 = vpow.pop %v2382
        %v2384 = vmul.f32 %v2310, 1.442695
        %v2385 = vpow.pop %v2384
        %v2386 = vmul.f32 %v2311, 1.442695
        %v2387 = vpow.pop %v2386
        %v2388 = vmul.f32 %v2312, 1.442695
        %v2389 = vpow.pop %v2388
        %v2390 = vmul.f32 %v2313, 1.442695
        %v2391 = vpow.pop %v2390
        %v2392 = vmul.f32 %v2314, 1.442695
        %v2393 = vpow.pop %v2392
        %v2394 = vmul.f32 %v2315, 1.442695
        %v2395 = vpow.pop %v2394
        %v2396 = vmul.f32 %v2316, 1.442695
        %v2397 = vpow.pop %v2396
        %v2398 = vmul.f32 %v2317, 1.442695
        %v2399 = vpow.pop %v2398
        %v2400 = vmul.f32 %v2318, 1.442695
        %v2401 = vpow.pop %v2400
        %v2402 = vmul.f32 %v2319, 1.442695
        %v2403 = vpow.pop %v2402
        %v2404 = vmul.f32 %v2320, 1.442695
        %v2405 = vpow.pop %v2404
        %v2406 = vmul.f32 %v2321, 1.442695
        %v2407 = vpow.pop %v2406
        %v2408 = vmul.f32 %v2322, 1.442695
        %v2409 = vpow.pop %v2408
        %v2410 = vmul.f32 %v2323, 1.442695
        %v2411 = vpow.pop %v2410
        %v2412 = vmul.f32 %v2324, 1.442695
        %v2413 = vpow.pop %v2412
        %v2414 = vmul.f32 %v2325, 1.442695
        %v2415 = vpow.pop %v2414
        %v2416 = vmul.f32 %v2326, 1.442695
        %v2417 = vpow.pop %v2416
        %v2418 = vmul.f32 %v2327, 1.442695
        %v2419 = vpow.pop %v2418
        %v2420 = vmul.f32 %v2328, 1.442695
        %v2421 = vpow.pop %v2420
        %v2422 = vmul.f32 %v2329, 1.442695
        %v2423 = vpow.pop %v2422
        %v2424 = vmul.f32 %v2330, 1.442695
        %v2425 = vpow.pop %v2424
        %v2426 = vmul.f32 %v2331, 1.442695
        %v2427 = vpow.pop %v2426
        %v2428 = vmul.f32 %v2332, 1.442695
        %v2429 = vpow.pop %v2428
        %v2430 = vmul.f32 %v2333, 1.442695
        %v2431 = vpow.pop %v2430
        %v2432 = vmul.f32 %v2334, 1.442695
        %v2433 = vpow.pop %v2432
        %v2434 = vmul.f32 %v2335, 1.442695
        %v2435 = vpow.pop %v2434
        %v2436 = vmul.f32 %v2336, 1.442695
        %v2437 = vpow.pop %v2436
        %v2438 = vmul.f32 %v2337, 1.442695
        %v2439 = vpow.pop %v2438
        %v2440 = vmul.f32 %v2338, 1.442695
        %v2441 = vpow.pop %v2440
        %v2442 = vmul.f32 %v2339, 1.442695
        %v2443 = vpow.pop %v2442
        %v2444 = vmul.f32 %v2340, 1.442695
        %v2445 = vpow.pop %v2444
        %v2446 = vmul.f32 %v2341, 1.442695
        %v2447 = vpow.pop %v2446
        %v2448 = vmul.f32 %v2342, 1.442695
        %v2449 = vpow.pop %v2448
        %v2450 = vmul.f32 %v2343, 1.442695
        %v2451 = vpow.pop %v2450
        %v2452 = vmul.f32 %v2344, 1.442695
        %v2453 = vpow.pop %v2452
        %v2454 = vmul.f32 %v2345, 1.442695
        %v2455 = vpow.pop %v2454
        %v2456 = vmul.f32 %v2346, 1.442695
        %v2457 = vpow.pop %v2456
        %v2458 = vmul.f32 %v2347, 1.442695
        %v2459 = vpow.pop %v2458
        %v2460 = vmul.f32 %v2348, 1.442695
        %v2461 = vpow.pop %v2460
        %v2462 = vmul.f32 %v2349, 1.442695
        %v2463 = vpow.pop %v2462
        %v2464 = vmul.f32 %v2350, 1.442695
        %v2465 = vpow.pop %v2464
        %v2466 = vmul.f32 %v2351, 1.442695
        %v2467 = vpow.pop %v2466
        %v2468 = vmul.f32 %v2352, 1.442695
        %v2469 = vpow.pop %v2468
        %v2470 = vmul.f32 %v2353, 1.442695
        %v2471 = vpow.pop %v2470
        %v2472 = vmul.f32 %v2354, 1.442695
        %v2473 = vpow.pop %v2472
        %v2474 = vmul.f32 %v2355, 1.442695
        %v2475 = vpow.pop %v2474
        %v2476 = vmul.f32 %v2356, 1.442695
        %v2477 = vpow.pop %v2476
        %v2478 = vmul.f32 %v2357, 1.442695
        %v2479 = vpow.pop %v2478
        %v2480 = vmul.f32 %v2358, 1.442695
        %v2481 = vpow.pop %v2480
        %v2482 = vmul.f32 %v2359, 1.442695
        %v2483 = vpow.pop %v2482
        %v2484 = vmul.f32 %v2360, 1.442695
        %v2485 = vpow.pop %v2484
        %v2486 = vmul.f32 %v2361, 1.442695
        %v2487 = vpow.pop %v2486
        %v2488 = vmul.f32 %v2362, 1.442695
        %v2489 = vpow.pop %v2488
        %v2490 = vmul.f32 %v2363, 1.442695
        %v2491 = vpow.pop %v2490
        %v2492 = vsel %vm2107, %v2365, 0.0
        %2493 = vadd.xlane.f32.xlu0 %v2492
        %v2494 = vpop.xlane.xlu0 %2493
        %v2495 = vsel %vm2107, %v2367, 0.0
        %2496 = vadd.xlane.f32.xlu0 %v2495
        %v2497 = vpop.xlane.xlu0 %2496
        %v2498 = vsel %vm2107, %v2369, 0.0
        %2499 = vadd.xlane.f32.xlu0 %v2498
        %v2500 = vpop.xlane.xlu0 %2499
        %v2501 = vsel %vm2107, %v2371, 0.0
        %2502 = vadd.xlane.f32.xlu0 %v2501
        %v2503 = vpop.xlane.xlu0 %2502
        %v2504 = vsel %vm2107, %v2373, 0.0
        %2505 = vadd.xlane.f32.xlu0 %v2504
        %v2506 = vpop.xlane.xlu0 %2505
        %v2507 = vsel %vm2107, %v2375, 0.0
        %2508 = vadd.xlane.f32.xlu0 %v2507
        %v2509 = vpop.xlane.xlu0 %2508
        %v2510 = vsel %vm2107, %v2377, 0.0
        %2511 = vadd.xlane.f32.xlu0 %v2510
        %v2512 = vpop.xlane.xlu0 %2511
        %v2513 = vsel %vm2107, %v2379, 0.0
        %2514 = vadd.xlane.f32.xlu0 %v2513
        %v2515 = vpop.xlane.xlu0 %2514
        %v2516 = vsel %vm2107, %v2381, 0.0
        %2517 = vadd.xlane.f32.xlu0 %v2516
        %v2518 = vpop.xlane.xlu0 %2517
        %v2519 = vsel %vm2107, %v2383, 0.0
        %2520 = vadd.xlane.f32.xlu0 %v2519
        %v2521 = vpop.xlane.xlu0 %2520
        %v2522 = vsel %vm2107, %v2385, 0.0
        %2523 = vadd.xlane.f32.xlu0 %v2522
        %v2524 = vpop.xlane.xlu0 %2523
        %v2525 = vsel %vm2107, %v2387, 0.0
        %2526 = vadd.xlane.f32.xlu0 %v2525
        %v2527 = vpop.xlane.xlu0 %2526
        %v2528 = vsel %vm2107, %v2389, 0.0
        %2529 = vadd.xlane.f32.xlu0 %v2528
        %v2530 = vpop.xlane.xlu0 %2529
        %v2531 = vsel %vm2107, %v2391, 0.0
        %2532 = vadd.xlane.f32.xlu0 %v2531
        %v2533 = vpop.xlane.xlu0 %2532
        %v2534 = vsel %vm2107, %v2393, 0.0
        %2535 = vadd.xlane.f32.xlu0 %v2534
        %v2536 = vpop.xlane.xlu0 %2535
        %v2537 = vsel %vm2107, %v2395, 0.0
        %2538 = vadd.xlane.f32.xlu0 %v2537
        %v2539 = vpop.xlane.xlu0 %2538
        %v2540 = vsel %vm2107, %v2397, 0.0
        %2541 = vadd.xlane.f32.xlu0 %v2540
        %v2542 = vpop.xlane.xlu0 %2541
        %v2543 = vsel %vm2107, %v2399, 0.0
        %2544 = vadd.xlane.f32.xlu0 %v2543
        %v2545 = vpop.xlane.xlu0 %2544
        %v2546 = vsel %vm2107, %v2401, 0.0
        %2547 = vadd.xlane.f32.xlu0 %v2546
        %v2548 = vpop.xlane.xlu0 %2547
        %v2549 = vsel %vm2107, %v2403, 0.0
        %2550 = vadd.xlane.f32.xlu0 %v2549
        %v2551 = vpop.xlane.xlu0 %2550
        %v2552 = vsel %vm2107, %v2405, 0.0
        %2553 = vadd.xlane.f32.xlu0 %v2552
        %v2554 = vpop.xlane.xlu0 %2553
        %v2555 = vsel %vm2107, %v2407, 0.0
        %2556 = vadd.xlane.f32.xlu0 %v2555
        %v2557 = vpop.xlane.xlu0 %2556
        %v2558 = vsel %vm2107, %v2409, 0.0
        %2559 = vadd.xlane.f32.xlu0 %v2558
        %v2560 = vpop.xlane.xlu0 %2559
        %v2561 = vsel %vm2107, %v2411, 0.0
        %2562 = vadd.xlane.f32.xlu0 %v2561
        %v2563 = vpop.xlane.xlu0 %2562
        %v2564 = vsel %vm2107, %v2413, 0.0
        %2565 = vadd.xlane.f32.xlu0 %v2564
        %v2566 = vpop.xlane.xlu0 %2565
        %v2567 = vsel %vm2107, %v2415, 0.0
        %2568 = vadd.xlane.f32.xlu0 %v2567
        %v2569 = vpop.xlane.xlu0 %2568
        %v2570 = vsel %vm2107, %v2417, 0.0
        %2571 = vadd.xlane.f32.xlu0 %v2570
        %v2572 = vpop.xlane.xlu0 %2571
        %v2573 = vsel %vm2107, %v2419, 0.0
        %2574 = vadd.xlane.f32.xlu0 %v2573
        %v2575 = vpop.xlane.xlu0 %2574
        %v2576 = vsel %vm2107, %v2421, 0.0
        %2577 = vadd.xlane.f32.xlu0 %v2576
        %v2578 = vpop.xlane.xlu0 %2577
        %v2579 = vsel %vm2107, %v2423, 0.0
        %2580 = vadd.xlane.f32.xlu0 %v2579
        %v2581 = vpop.xlane.xlu0 %2580
        %v2582 = vsel %vm2107, %v2425, 0.0
        %2583 = vadd.xlane.f32.xlu0 %v2582
        %v2584 = vpop.xlane.xlu0 %2583
        %v2585 = vsel %vm2107, %v2427, 0.0
        %2586 = vadd.xlane.f32.xlu0 %v2585
        %v2587 = vpop.xlane.xlu0 %2586
        %v2588 = vsel %vm2107, %v2429, 0.0
        %2589 = vadd.xlane.f32.xlu0 %v2588
        %v2590 = vpop.xlane.xlu0 %2589
        %v2591 = vsel %vm2107, %v2431, 0.0
        %2592 = vadd.xlane.f32.xlu0 %v2591
        %v2593 = vpop.xlane.xlu0 %2592
        %v2594 = vsel %vm2107, %v2433, 0.0
        %2595 = vadd.xlane.f32.xlu0 %v2594
        %v2596 = vpop.xlane.xlu0 %2595
        %v2597 = vsel %vm2107, %v2435, 0.0
        %2598 = vadd.xlane.f32.xlu0 %v2597
        %v2599 = vpop.xlane.xlu0 %2598
        %v2600 = vsel %vm2107, %v2437, 0.0
        %2601 = vadd.xlane.f32.xlu0 %v2600
        %v2602 = vpop.xlane.xlu0 %2601
        %v2603 = vsel %vm2107, %v2439, 0.0
        %2604 = vadd.xlane.f32.xlu0 %v2603
        %v2605 = vpop.xlane.xlu0 %2604
        %v2606 = vsel %vm2107, %v2441, 0.0
        %2607 = vadd.xlane.f32.xlu0 %v2606
        %v2608 = vpop.xlane.xlu0 %2607
        %v2609 = vsel %vm2107, %v2443, 0.0
        %2610 = vadd.xlane.f32.xlu0 %v2609
        %v2611 = vpop.xlane.xlu0 %2610
        %v2612 = vsel %vm2107, %v2445, 0.0
        %2613 = vadd.xlane.f32.xlu0 %v2612
        %v2614 = vpop.xlane.xlu0 %2613
        %v2615 = vsel %vm2107, %v2447, 0.0
        %2616 = vadd.xlane.f32.xlu0 %v2615
        %v2617 = vpop.xlane.xlu0 %2616
        %v2618 = vsel %vm2107, %v2449, 0.0
        %2619 = vadd.xlane.f32.xlu0 %v2618
        %v2620 = vpop.xlane.xlu0 %2619
        %v2621 = vsel %vm2107, %v2451, 0.0
        %2622 = vadd.xlane.f32.xlu0 %v2621
        %v2623 = vpop.xlane.xlu0 %2622
        %v2624 = vsel %vm2107, %v2453, 0.0
        %2625 = vadd.xlane.f32.xlu0 %v2624
        %v2626 = vpop.xlane.xlu0 %2625
        %v2627 = vsel %vm2107, %v2455, 0.0
        %2628 = vadd.xlane.f32.xlu0 %v2627
        %v2629 = vpop.xlane.xlu0 %2628
        %v2630 = vsel %vm2107, %v2457, 0.0
        %2631 = vadd.xlane.f32.xlu0 %v2630
        %v2632 = vpop.xlane.xlu0 %2631
        %v2633 = vsel %vm2107, %v2459, 0.0
        %2634 = vadd.xlane.f32.xlu0 %v2633
        %v2635 = vpop.xlane.xlu0 %2634
        %v2636 = vsel %vm2107, %v2461, 0.0
        %2637 = vadd.xlane.f32.xlu0 %v2636
        %v2638 = vpop.xlane.xlu0 %2637
        %v2639 = vsel %vm2107, %v2463, 0.0
        %2640 = vadd.xlane.f32.xlu0 %v2639
        %v2641 = vpop.xlane.xlu0 %2640
        %v2642 = vsel %vm2107, %v2465, 0.0
        %2643 = vadd.xlane.f32.xlu0 %v2642
        %v2644 = vpop.xlane.xlu0 %2643
        %v2645 = vsel %vm2107, %v2467, 0.0
        %2646 = vadd.xlane.f32.xlu0 %v2645
        %v2647 = vpop.xlane.xlu0 %2646
        %v2648 = vsel %vm2107, %v2469, 0.0
        %2649 = vadd.xlane.f32.xlu0 %v2648
        %v2650 = vpop.xlane.xlu0 %2649
        %v2651 = vsel %vm2107, %v2471, 0.0
        %2652 = vadd.xlane.f32.xlu0 %v2651
        %v2653 = vpop.xlane.xlu0 %2652
        %v2654 = vsel %vm2107, %v2473, 0.0
        %2655 = vadd.xlane.f32.xlu0 %v2654
        %v2656 = vpop.xlane.xlu0 %2655
        %v2657 = vsel %vm2107, %v2475, 0.0
        %2658 = vadd.xlane.f32.xlu0 %v2657
        %v2659 = vpop.xlane.xlu0 %2658
        %v2660 = vsel %vm2107, %v2477, 0.0
        %2661 = vadd.xlane.f32.xlu0 %v2660
        %v2662 = vpop.xlane.xlu0 %2661
        %v2663 = vsel %vm2107, %v2479, 0.0
        %2664 = vadd.xlane.f32.xlu0 %v2663
        %v2665 = vpop.xlane.xlu0 %2664
        %v2666 = vsel %vm2107, %v2481, 0.0
        %2667 = vadd.xlane.f32.xlu0 %v2666
        %v2668 = vpop.xlane.xlu0 %2667
        %v2669 = vsel %vm2107, %v2483, 0.0
        %2670 = vadd.xlane.f32.xlu0 %v2669
        %v2671 = vpop.xlane.xlu0 %2670
        %v2672 = vsel %vm2107, %v2485, 0.0
        %2673 = vadd.xlane.f32.xlu0 %v2672
        %v2674 = vpop.xlane.xlu0 %2673
        %v2675 = vsel %vm2107, %v2487, 0.0
        %2676 = vadd.xlane.f32.xlu0 %v2675
        %v2677 = vpop.xlane.xlu0 %2676
        %v2678 = vsel %vm2107, %v2489, 0.0
        %2679 = vadd.xlane.f32.xlu0 %v2678
        %v2680 = vpop.xlane.xlu0 %2679
        %v2681 = vsel %vm2107, %v2491, 0.0
        %2682 = vadd.xlane.f32.xlu0 %v2681
        %v2683 = vpop.xlane.xlu0 %2682
        %v2684 = vpack.c.bf16 %v2367, %v2365
        %v2685 = vpack.c.bf16 %v2371, %v2369
        %v2686 = vpack.c.bf16 %v2375, %v2373
        %v2687 = vpack.c.bf16 %v2379, %v2377
        %v2688 = vpack.c.bf16 %v2383, %v2381
        %v2689 = vpack.c.bf16 %v2387, %v2385
        %v2690 = vpack.c.bf16 %v2391, %v2389
        %v2691 = vpack.c.bf16 %v2395, %v2393
        %v2692 = vpack.c.bf16 %v2399, %v2397
        %v2693 = vpack.c.bf16 %v2403, %v2401
        %v2694 = vpack.c.bf16 %v2407, %v2405
        %v2695 = vpack.c.bf16 %v2411, %v2409
        %v2696 = vpack.c.bf16 %v2415, %v2413
        %v2697 = vpack.c.bf16 %v2419, %v2417
        %v2698 = vpack.c.bf16 %v2423, %v2421
        %v2699 = vpack.c.bf16 %v2427, %v2425
        %v2700 = vpack.c.bf16 %v2431, %v2429
        %v2701 = vpack.c.bf16 %v2435, %v2433
        %v2702 = vpack.c.bf16 %v2439, %v2437
        %v2703 = vpack.c.bf16 %v2443, %v2441
        %v2704 = vpack.c.bf16 %v2447, %v2445
        %v2705 = vpack.c.bf16 %v2451, %v2449
        %v2706 = vpack.c.bf16 %v2455, %v2453
        %v2707 = vpack.c.bf16 %v2459, %v2457
        %v2708 = vpack.c.bf16 %v2463, %v2461
        %v2709 = vpack.c.bf16 %v2467, %v2465
        %v2710 = vpack.c.bf16 %v2471, %v2469
        %v2711 = vpack.c.bf16 %v2475, %v2473
        %v2712 = vpack.c.bf16 %v2479, %v2477
        %v2713 = vpack.c.bf16 %v2483, %v2481
        %v2714 = vpack.c.bf16 %v2487, %v2485
        %v2715 = vpack.c.bf16 %v2491, %v2489
        %2716 = vrot.lane.b32.xlu0 %v1266, 64
        %v2717 = vpop.permute.xlu0 %2716
        %2718 = vrot.lane.b32.xlu0 %v1267, 64
        %v2719 = vpop.permute.xlu0 %2718
        %2720 = vrot.lane.b32.xlu0 %v1268, 64
        %v2721 = vpop.permute.xlu0 %2720
        %2722 = vrot.lane.b32.xlu0 %v1269, 64
        %v2723 = vpop.permute.xlu0 %2722
        %v2729 = vsel %vm2107, %v2684, 0
        %v2732 = vsel %vm2107, %v2685, 0
        %v2735 = vsel %vm2107, %v2686, 0
        %v2738 = vsel %vm2107, %v2687, 0
        %2740 = vmatprep.subr.bf16.mxu0 0
        %2741 = vmatpush1.bf16.msra.mxu0 %v2717
        %2742 = vmatprep.subr.bf16.mxu0 0
        %2743 = vmatpush1.bf16.msra.mxu0 %v2719
        %2744 = vmatprep.subr.bf16.mxu0 0
        %2745 = vmatpush1.bf16.msra.mxu0 %v2721
        %2746 = vmatprep.subr.bf16.mxu0 0
        %2747 = vmatpush1.bf16.msra.mxu0 %v2723
        %2748 = vmatprep.subr.bf16.mxu0 0
        %2749 = vmatpush1.bf16.msra.mxu0 0
        %2750 = vmatprep.subr.bf16.mxu0 0
        %2751 = vmatpush1.bf16.msra.mxu0 0
        %2752 = vmatprep.subr.bf16.mxu0 0
        %2753 = vmatpush1.bf16.msra.mxu0 0
        %2754 = vmatprep.subr.bf16.mxu0 0
        %2755 = vmatpush1.bf16.msra.mxu0 0
        %2756 = vmatprep.subr.bf16.mxu0 0
        %2757 = vmatpush1.bf16.msra.mxu0 0
        %2758 = vmatprep.subr.bf16.mxu0 0
        %2759 = vmatpush1.bf16.msra.mxu0 0
        %2760 = vmatprep.subr.bf16.mxu0 0
        %2761 = vmatpush1.bf16.msra.mxu0 0
        %2762 = vmatprep.subr.bf16.mxu0 0
        %2763 = vmatpush1.bf16.msra.mxu0 0
        %2764 = vmatprep.subr.bf16.mxu0 0
        %2765 = vmatpush1.bf16.msra.mxu0 0
        %2766 = vmatprep.subr.bf16.mxu0 0
        %2767 = vmatpush1.bf16.msra.mxu0 0
        %2768 = vmatprep.subr.bf16.mxu0 0
        %2769 = vmatpush1.bf16.msra.mxu0 0
        %2770 = vmatprep.subr.bf16.mxu0 0
        %2771 = vmatpush1.bf16.msra.mxu0 0
        %2772 = vmatprep.mubr.bf16.mxu0 0
        %2773 = vmatmul.mubr.bf16.gmra.mrb[0].mxu0 %v2729
        %v2774 = vpop.f32.mrb[0].mxu0
        %v2775 = vadd.f32 0.0, %v2774
        %v2776 = vpop.f32.mrb[0].mxu0
        %v2777 = vpop.f32.mrb[0].mxu0
        %v2778 = vadd.f32 0.0, %v2777
        %v2779 = vpop.f32.mrb[0].mxu0
        %2780 = vmatprep.mubr.bf16.mxu0 0
        %2781 = vmatmul.mubr.bf16.gmra.mrb[0].mxu0 %v2732
        %v2782 = vpop.f32.mrb[0].mxu0
        %v2783 = vadd.f32 0.0, %v2782
        %v2784 = vpop.f32.mrb[0].mxu0
        %v2785 = vpop.f32.mrb[0].mxu0
        %v2786 = vadd.f32 0.0, %v2785
        %v2787 = vpop.f32.mrb[0].mxu0
        %2788 = vmatprep.mubr.bf16.mxu0 0
        %2789 = vmatmul.mubr.bf16.gmra.mrb[0].mxu0 %v2735
        %v2790 = vpop.f32.mrb[0].mxu0
        %v2791 = vadd.f32 0.0, %v2790
        %v2792 = vpop.f32.mrb[0].mxu0
        %v2793 = vpop.f32.mrb[0].mxu0
        %v2794 = vadd.f32 0.0, %v2793
        %v2795 = vpop.f32.mrb[0].mxu0
        %2796 = vmatprep.mubr.bf16.mxu0 0
        %2797 = vmatmul.mubr.bf16.gmra.mrb[0].mxu0 %v2738
        %v2798 = vpop.f32.mrb[0].mxu0
        %v2799 = vadd.f32 0.0, %v2798
        %v2800 = vpop.f32.mrb[0].mxu0
        %v2801 = vpop.f32.mrb[0].mxu0
        %v2802 = vadd.f32 0.0, %v2801
        %v2803 = vpop.f32.mrb[0].mxu0
        %2804 = vdwg.mxu0
        %2805 = vrot.lane.b32.xlu0 %v1270, 64
        %v2806 = vpop.permute.xlu0 %2805
        %2807 = vrot.lane.b32.xlu0 %v1271, 64
        %v2808 = vpop.permute.xlu0 %2807
        %2809 = vrot.lane.b32.xlu0 %v1272, 64
        %v2810 = vpop.permute.xlu0 %2809
        %2811 = vrot.lane.b32.xlu0 %v1273, 64
        %v2812 = vpop.permute.xlu0 %2811
        %v2818 = vsel %vm2107, %v2688, 0
        %v2821 = vsel %vm2107, %v2689, 0
        %v2824 = vsel %vm2107, %v2690, 0
        %v2827 = vsel %vm2107, %v2691, 0
        %2829 = vmatprep.subr.bf16.mxu0 0
        %2830 = vmatpush1.bf16.msra.mxu0 %v2806
        %2831 = vmatprep.subr.bf16.mxu0 0
        %2832 = vmatpush1.bf16.msra.mxu0 %v2808
        %2833 = vmatprep.subr.bf16.mxu0 0
        %2834 = vmatpush1.bf16.msra.mxu0 %v2810
        %2835 = vmatprep.subr.bf16.mxu0 0
        %2836 = vmatpush1.bf16.msra.mxu0 %v2812
        %2837 = vmatprep.subr.bf16.mxu0 0
        %2838 = vmatpush1.bf16.msra.mxu0 0
        %2839 = vmatprep.subr.bf16.mxu0 0
        %2840 = vmatpush1.bf16.msra.mxu0 0
        %2841 = vmatprep.subr.bf16.mxu0 0
        %2842 = vmatpush1.bf16.msra.mxu0 0
        %2843 = vmatprep.subr.bf16.mxu0 0
        %2844 = vmatpush1.bf16.msra.mxu0 0
        %2845 = vmatprep.subr.bf16.mxu0 0
        %2846 = vmatpush1.bf16.msra.mxu0 0
        %2847 = vmatprep.subr.bf16.mxu0 0
        %2848 = vmatpush1.bf16.msra.mxu0 0
        %2849 = vmatprep.subr.bf16.mxu0 0
        %2850 = vmatpush1.bf16.msra.mxu0 0
        %2851 = vmatprep.subr.bf16.mxu0 0
        %2852 = vmatpush1.bf16.msra.mxu0 0
        %2853 = vmatprep.subr.bf16.mxu0 0
        %2854 = vmatpush1.bf16.msra.mxu0 0
        %2855 = vmatprep.subr.bf16.mxu0 0
        %2856 = vmatpush1.bf16.msra.mxu0 0
        %2857 = vmatprep.subr.bf16.mxu0 0
        %2858 = vmatpush1.bf16.msra.mxu0 0
        %2859 = vmatprep.subr.bf16.mxu0 0
        %2860 = vmatpush1.bf16.msra.mxu0 0
        %2861 = vmatprep.mubr.bf16.mxu0 0
        %2862 = vmatmul.mubr.bf16.gmra.mrb[0].mxu0 %v2818
        %v2863 = vpop.f32.mrb[0].mxu0
        %v2864 = vadd.f32 0.0, %v2863
        %v2865 = vpop.f32.mrb[0].mxu0
        %v2866 = vpop.f32.mrb[0].mxu0
        %v2867 = vadd.f32 0.0, %v2866
        %v2868 = vpop.f32.mrb[0].mxu0
        %2869 = vmatprep.mubr.bf16.mxu0 0
        %2870 = vmatmul.mubr.bf16.gmra.mrb[0].mxu0 %v2821
        %v2871 = vpop.f32.mrb[0].mxu0
        %v2872 = vadd.f32 0.0, %v2871
        %v2873 = vpop.f32.mrb[0].mxu0
        %v2874 = vpop.f32.mrb[0].mxu0
        %v2875 = vadd.f32 0.0, %v2874
        %v2876 = vpop.f32.mrb[0].mxu0
        %2877 = vmatprep.mubr.bf16.mxu0 0
        %2878 = vmatmul.mubr.bf16.gmra.mrb[0].mxu0 %v2824
        %v2879 = vpop.f32.mrb[0].mxu0
        %v2880 = vadd.f32 0.0, %v2879
        %v2881 = vpop.f32.mrb[0].mxu0
        %v2882 = vpop.f32.mrb[0].mxu0
        %v2883 = vadd.f32 0.0, %v2882
        %v2884 = vpop.f32.mrb[0].mxu0
        %2885 = vmatprep.mubr.bf16.mxu0 0
        %2886 = vmatmul.mubr.bf16.gmra.mrb[0].mxu0 %v2827
        %v2887 = vpop.f32.mrb[0].mxu0
        %v2888 = vadd.f32 0.0, %v2887
        %v2889 = vpop.f32.mrb[0].mxu0
        %v2890 = vpop.f32.mrb[0].mxu0
        %v2891 = vadd.f32 0.0, %v2890
        %v2892 = vpop.f32.mrb[0].mxu0
        %2893 = vdwg.mxu0
        %2894 = vrot.lane.b32.xlu0 %v1274, 64
        %v2895 = vpop.permute.xlu0 %2894
        %2896 = vrot.lane.b32.xlu0 %v1275, 64
        %v2897 = vpop.permute.xlu0 %2896
        %2898 = vrot.lane.b32.xlu0 %v1276, 64
        %v2899 = vpop.permute.xlu0 %2898
        %2900 = vrot.lane.b32.xlu0 %v1277, 64
        %v2901 = vpop.permute.xlu0 %2900
        %v2907 = vsel %vm2107, %v2692, 0
        %v2910 = vsel %vm2107, %v2693, 0
        %v2913 = vsel %vm2107, %v2694, 0
        %v2916 = vsel %vm2107, %v2695, 0
        %2918 = vmatprep.subr.bf16.mxu0 0
        %2919 = vmatpush1.bf16.msra.mxu0 %v2895
        %2920 = vmatprep.subr.bf16.mxu0 0
        %2921 = vmatpush1.bf16.msra.mxu0 %v2897
        %2922 = vmatprep.subr.bf16.mxu0 0
        %2923 = vmatpush1.bf16.msra.mxu0 %v2899
        %2924 = vmatprep.subr.bf16.mxu0 0
        %2925 = vmatpush1.bf16.msra.mxu0 %v2901
        %2926 = vmatprep.subr.bf16.mxu0 0
        %2927 = vmatpush1.bf16.msra.mxu0 0
        %2928 = vmatprep.subr.bf16.mxu0 0
        %2929 = vmatpush1.bf16.msra.mxu0 0
        %2930 = vmatprep.subr.bf16.mxu0 0
        %2931 = vmatpush1.bf16.msra.mxu0 0
        %2932 = vmatprep.subr.bf16.mxu0 0
        %2933 = vmatpush1.bf16.msra.mxu0 0
        %2934 = vmatprep.subr.bf16.mxu0 0
        %2935 = vmatpush1.bf16.msra.mxu0 0
        %2936 = vmatprep.subr.bf16.mxu0 0
        %2937 = vmatpush1.bf16.msra.mxu0 0
        %2938 = vmatprep.subr.bf16.mxu0 0
        %2939 = vmatpush1.bf16.msra.mxu0 0
        %2940 = vmatprep.subr.bf16.mxu0 0
        %2941 = vmatpush1.bf16.msra.mxu0 0
        %2942 = vmatprep.subr.bf16.mxu0 0
        %2943 = vmatpush1.bf16.msra.mxu0 0
        %2944 = vmatprep.subr.bf16.mxu0 0
        %2945 = vmatpush1.bf16.msra.mxu0 0
        %2946 = vmatprep.subr.bf16.mxu0 0
        %2947 = vmatpush1.bf16.msra.mxu0 0
        %2948 = vmatprep.subr.bf16.mxu0 0
        %2949 = vmatpush1.bf16.msra.mxu0 0
        %2950 = vmatprep.mubr.bf16.mxu0 0
        %2951 = vmatmul.mubr.bf16.gmra.mrb[0].mxu0 %v2907
        %v2952 = vpop.f32.mrb[0].mxu0
        %v2953 = vadd.f32 0.0, %v2952
        %v2954 = vpop.f32.mrb[0].mxu0
        %v2955 = vpop.f32.mrb[0].mxu0
        %v2956 = vadd.f32 0.0, %v2955
        %v2957 = vpop.f32.mrb[0].mxu0
        %2958 = vmatprep.mubr.bf16.mxu0 0
        %2959 = vmatmul.mubr.bf16.gmra.mrb[0].mxu0 %v2910
        %v2960 = vpop.f32.mrb[0].mxu0
        %v2961 = vadd.f32 0.0, %v2960
        %v2962 = vpop.f32.mrb[0].mxu0
        %v2963 = vpop.f32.mrb[0].mxu0
        %v2964 = vadd.f32 0.0, %v2963
        %v2965 = vpop.f32.mrb[0].mxu0
        %2966 = vmatprep.mubr.bf16.mxu0 0
        %2967 = vmatmul.mubr.bf16.gmra.mrb[0].mxu0 %v2913
        %v2968 = vpop.f32.mrb[0].mxu0
        %v2969 = vadd.f32 0.0, %v2968
        %v2970 = vpop.f32.mrb[0].mxu0
        %v2971 = vpop.f32.mrb[0].mxu0
        %v2972 = vadd.f32 0.0, %v2971
        %v2973 = vpop.f32.mrb[0].mxu0
        %2974 = vmatprep.mubr.bf16.mxu0 0
        %2975 = vmatmul.mubr.bf16.gmra.mrb[0].mxu0 %v2916
        %v2976 = vpop.f32.mrb[0].mxu0
        %v2977 = vadd.f32 0.0, %v2976
        %v2978 = vpop.f32.mrb[0].mxu0
        %v2979 = vpop.f32.mrb[0].mxu0
        %v2980 = vadd.f32 0.0, %v2979
        %v2981 = vpop.f32.mrb[0].mxu0
        %2982 = vdwg.mxu0
        %2983 = vrot.lane.b32.xlu0 %v1278, 64
        %v2984 = vpop.permute.xlu0 %2983
        %2985 = vrot.lane.b32.xlu0 %v1279, 64
        %v2986 = vpop.permute.xlu0 %2985
        %2987 = vrot.lane.b32.xlu0 %v1280, 64
        %v2988 = vpop.permute.xlu0 %2987
        %2989 = vrot.lane.b32.xlu0 %v1281, 64
        %v2990 = vpop.permute.xlu0 %2989
        %v2996 = vsel %vm2107, %v2696, 0
        %v2999 = vsel %vm2107, %v2697, 0
        %v3002 = vsel %vm2107, %v2698, 0
        %v3005 = vsel %vm2107, %v2699, 0
        %3007 = vmatprep.subr.bf16.mxu0 0
        %3008 = vmatpush1.bf16.msra.mxu0 %v2984
        %3009 = vmatprep.subr.bf16.mxu0 0
        %3010 = vmatpush1.bf16.msra.mxu0 %v2986
        %3011 = vmatprep.subr.bf16.mxu0 0
        %3012 = vmatpush1.bf16.msra.mxu0 %v2988
        %3013 = vmatprep.subr.bf16.mxu0 0
        %3014 = vmatpush1.bf16.msra.mxu0 %v2990
        %3015 = vmatprep.subr.bf16.mxu0 0
        %3016 = vmatpush1.bf16.msra.mxu0 0
        %3017 = vmatprep.subr.bf16.mxu0 0
        %3018 = vmatpush1.bf16.msra.mxu0 0
        %3019 = vmatprep.subr.bf16.mxu0 0
        %3020 = vmatpush1.bf16.msra.mxu0 0
        %3021 = vmatprep.subr.bf16.mxu0 0
        %3022 = vmatpush1.bf16.msra.mxu0 0
        %3023 = vmatprep.subr.bf16.mxu0 0
        %3024 = vmatpush1.bf16.msra.mxu0 0
        %3025 = vmatprep.subr.bf16.mxu0 0
        %3026 = vmatpush1.bf16.msra.mxu0 0
        %3027 = vmatprep.subr.bf16.mxu0 0
        %3028 = vmatpush1.bf16.msra.mxu0 0
        %3029 = vmatprep.subr.bf16.mxu0 0
        %3030 = vmatpush1.bf16.msra.mxu0 0
        %3031 = vmatprep.subr.bf16.mxu0 0
        %3032 = vmatpush1.bf16.msra.mxu0 0
        %3033 = vmatprep.subr.bf16.mxu0 0
        %3034 = vmatpush1.bf16.msra.mxu0 0
        %3035 = vmatprep.subr.bf16.mxu0 0
        %3036 = vmatpush1.bf16.msra.mxu0 0
        %3037 = vmatprep.subr.bf16.mxu0 0
        %3038 = vmatpush1.bf16.msra.mxu0 0
        %3039 = vmatprep.mubr.bf16.mxu0 0
        %3040 = vmatmul.mubr.bf16.gmra.mrb[0].mxu0 %v2996
        %v3041 = vpop.f32.mrb[0].mxu0
        %v3042 = vadd.f32 0.0, %v3041
        %v3043 = vpop.f32.mrb[0].mxu0
        %v3044 = vpop.f32.mrb[0].mxu0
        %v3045 = vadd.f32 0.0, %v3044
        %v3046 = vpop.f32.mrb[0].mxu0
        %3047 = vmatprep.mubr.bf16.mxu0 0
        %3048 = vmatmul.mubr.bf16.gmra.mrb[0].mxu0 %v2999
        %v3049 = vpop.f32.mrb[0].mxu0
        %v3050 = vadd.f32 0.0, %v3049
        %v3051 = vpop.f32.mrb[0].mxu0
        %v3052 = vpop.f32.mrb[0].mxu0
        %v3053 = vadd.f32 0.0, %v3052
        %v3054 = vpop.f32.mrb[0].mxu0
        %3055 = vmatprep.mubr.bf16.mxu0 0
        %3056 = vmatmul.mubr.bf16.gmra.mrb[0].mxu0 %v3002
        %v3057 = vpop.f32.mrb[0].mxu0
        %v3058 = vadd.f32 0.0, %v3057
        %v3059 = vpop.f32.mrb[0].mxu0
        %v3060 = vpop.f32.mrb[0].mxu0
        %v3061 = vadd.f32 0.0, %v3060
        %v3062 = vpop.f32.mrb[0].mxu0
        %3063 = vmatprep.mubr.bf16.mxu0 0
        %3064 = vmatmul.mubr.bf16.gmra.mrb[0].mxu0 %v3005
        %v3065 = vpop.f32.mrb[0].mxu0
        %v3066 = vadd.f32 0.0, %v3065
        %v3067 = vpop.f32.mrb[0].mxu0
        %v3068 = vpop.f32.mrb[0].mxu0
        %v3069 = vadd.f32 0.0, %v3068
        %v3070 = vpop.f32.mrb[0].mxu0
        %3071 = vdwg.mxu0
        %3072 = vrot.lane.b32.xlu0 %v1282, 64
        %v3073 = vpop.permute.xlu0 %3072
        %3074 = vrot.lane.b32.xlu0 %v1283, 64
        %v3075 = vpop.permute.xlu0 %3074
        %3076 = vrot.lane.b32.xlu0 %v1284, 64
        %v3077 = vpop.permute.xlu0 %3076
        %3078 = vrot.lane.b32.xlu0 %v1285, 64
        %v3079 = vpop.permute.xlu0 %3078
        %v3085 = vsel %vm2107, %v2700, 0
        %v3088 = vsel %vm2107, %v2701, 0
        %v3091 = vsel %vm2107, %v2702, 0
        %v3094 = vsel %vm2107, %v2703, 0
        %3096 = vmatprep.subr.bf16.mxu0 0
        %3097 = vmatpush1.bf16.msra.mxu0 %v3073
        %3098 = vmatprep.subr.bf16.mxu0 0
        %3099 = vmatpush1.bf16.msra.mxu0 %v3075
        %3100 = vmatprep.subr.bf16.mxu0 0
        %3101 = vmatpush1.bf16.msra.mxu0 %v3077
        %3102 = vmatprep.subr.bf16.mxu0 0
        %3103 = vmatpush1.bf16.msra.mxu0 %v3079
        %3104 = vmatprep.subr.bf16.mxu0 0
        %3105 = vmatpush1.bf16.msra.mxu0 0
        %3106 = vmatprep.subr.bf16.mxu0 0
        %3107 = vmatpush1.bf16.msra.mxu0 0
        %3108 = vmatprep.subr.bf16.mxu0 0
        %3109 = vmatpush1.bf16.msra.mxu0 0
        %3110 = vmatprep.subr.bf16.mxu0 0
        %3111 = vmatpush1.bf16.msra.mxu0 0
        %3112 = vmatprep.subr.bf16.mxu0 0
        %3113 = vmatpush1.bf16.msra.mxu0 0
        %3114 = vmatprep.subr.bf16.mxu0 0
        %3115 = vmatpush1.bf16.msra.mxu0 0
        %3116 = vmatprep.subr.bf16.mxu0 0
        %3117 = vmatpush1.bf16.msra.mxu0 0
        %3118 = vmatprep.subr.bf16.mxu0 0
        %3119 = vmatpush1.bf16.msra.mxu0 0
        %3120 = vmatprep.subr.bf16.mxu0 0
        %3121 = vmatpush1.bf16.msra.mxu0 0
        %3122 = vmatprep.subr.bf16.mxu0 0
        %3123 = vmatpush1.bf16.msra.mxu0 0
        %3124 = vmatprep.subr.bf16.mxu0 0
        %3125 = vmatpush1.bf16.msra.mxu0 0
        %3126 = vmatprep.subr.bf16.mxu0 0
        %3127 = vmatpush1.bf16.msra.mxu0 0
        %3128 = vmatprep.mubr.bf16.mxu0 0
        %3129 = vmatmul.mubr.bf16.gmra.mrb[0].mxu0 %v3085
        %v3130 = vpop.f32.mrb[0].mxu0
        %v3131 = vadd.f32 0.0, %v3130
        %v3132 = vpop.f32.mrb[0].mxu0
        %v3133 = vpop.f32.mrb[0].mxu0
        %v3134 = vadd.f32 0.0, %v3133
        %v3135 = vpop.f32.mrb[0].mxu0
        %3136 = vmatprep.mubr.bf16.mxu0 0
        %3137 = vmatmul.mubr.bf16.gmra.mrb[0].mxu0 %v3088
        %v3138 = vpop.f32.mrb[0].mxu0
        %v3139 = vadd.f32 0.0, %v3138
        %v3140 = vpop.f32.mrb[0].mxu0
        %v3141 = vpop.f32.mrb[0].mxu0
        %v3142 = vadd.f32 0.0, %v3141
        %v3143 = vpop.f32.mrb[0].mxu0
        %3144 = vmatprep.mubr.bf16.mxu0 0
        %3145 = vmatmul.mubr.bf16.gmra.mrb[0].mxu0 %v3091
        %v3146 = vpop.f32.mrb[0].mxu0
        %v3147 = vadd.f32 0.0, %v3146
        %v3148 = vpop.f32.mrb[0].mxu0
        %v3149 = vpop.f32.mrb[0].mxu0
        %v3150 = vadd.f32 0.0, %v3149
        %v3151 = vpop.f32.mrb[0].mxu0
        %3152 = vmatprep.mubr.bf16.mxu0 0
        %3153 = vmatmul.mubr.bf16.gmra.mrb[0].mxu0 %v3094
        %v3154 = vpop.f32.mrb[0].mxu0
        %v3155 = vadd.f32 0.0, %v3154
        %v3156 = vpop.f32.mrb[0].mxu0
        %v3157 = vpop.f32.mrb[0].mxu0
        %v3158 = vadd.f32 0.0, %v3157
        %v3159 = vpop.f32.mrb[0].mxu0
        %3160 = vdwg.mxu0
        %3161 = vrot.lane.b32.xlu0 %v1286, 64
        %v3162 = vpop.permute.xlu0 %3161
        %3163 = vrot.lane.b32.xlu0 %v1287, 64
        %v3164 = vpop.permute.xlu0 %3163
        %3165 = vrot.lane.b32.xlu0 %v1288, 64
        %v3166 = vpop.permute.xlu0 %3165
        %3167 = vrot.lane.b32.xlu0 %v1289, 64
        %v3168 = vpop.permute.xlu0 %3167
        %v3174 = vsel %vm2107, %v2704, 0
        %v3177 = vsel %vm2107, %v2705, 0
        %v3180 = vsel %vm2107, %v2706, 0
        %v3183 = vsel %vm2107, %v2707, 0
        %3185 = vmatprep.subr.bf16.mxu0 0
        %3186 = vmatpush1.bf16.msra.mxu0 %v3162
        %3187 = vmatprep.subr.bf16.mxu0 0
        %3188 = vmatpush1.bf16.msra.mxu0 %v3164
        %3189 = vmatprep.subr.bf16.mxu0 0
        %3190 = vmatpush1.bf16.msra.mxu0 %v3166
        %3191 = vmatprep.subr.bf16.mxu0 0
        %3192 = vmatpush1.bf16.msra.mxu0 %v3168
        %3193 = vmatprep.subr.bf16.mxu0 0
        %3194 = vmatpush1.bf16.msra.mxu0 0
        %3195 = vmatprep.subr.bf16.mxu0 0
        %3196 = vmatpush1.bf16.msra.mxu0 0
        %3197 = vmatprep.subr.bf16.mxu0 0
        %3198 = vmatpush1.bf16.msra.mxu0 0
        %3199 = vmatprep.subr.bf16.mxu0 0
        %3200 = vmatpush1.bf16.msra.mxu0 0
        %3201 = vmatprep.subr.bf16.mxu0 0
        %3202 = vmatpush1.bf16.msra.mxu0 0
        %3203 = vmatprep.subr.bf16.mxu0 0
        %3204 = vmatpush1.bf16.msra.mxu0 0
        %3205 = vmatprep.subr.bf16.mxu0 0
        %3206 = vmatpush1.bf16.msra.mxu0 0
        %3207 = vmatprep.subr.bf16.mxu0 0
        %3208 = vmatpush1.bf16.msra.mxu0 0
        %3209 = vmatprep.subr.bf16.mxu0 0
        %3210 = vmatpush1.bf16.msra.mxu0 0
        %3211 = vmatprep.subr.bf16.mxu0 0
        %3212 = vmatpush1.bf16.msra.mxu0 0
        %3213 = vmatprep.subr.bf16.mxu0 0
        %3214 = vmatpush1.bf16.msra.mxu0 0
        %3215 = vmatprep.subr.bf16.mxu0 0
        %3216 = vmatpush1.bf16.msra.mxu0 0
        %3217 = vmatprep.mubr.bf16.mxu0 0
        %3218 = vmatmul.mubr.bf16.gmra.mrb[0].mxu0 %v3174
        %v3219 = vpop.f32.mrb[0].mxu0
        %v3220 = vadd.f32 0.0, %v3219
        %v3221 = vpop.f32.mrb[0].mxu0
        %v3222 = vpop.f32.mrb[0].mxu0
        %v3223 = vadd.f32 0.0, %v3222
        %v3224 = vpop.f32.mrb[0].mxu0
        %3225 = vmatprep.mubr.bf16.mxu0 0
        %3226 = vmatmul.mubr.bf16.gmra.mrb[0].mxu0 %v3177
        %v3227 = vpop.f32.mrb[0].mxu0
        %v3228 = vadd.f32 0.0, %v3227
        %v3229 = vpop.f32.mrb[0].mxu0
        %v3230 = vpop.f32.mrb[0].mxu0
        %v3231 = vadd.f32 0.0, %v3230
        %v3232 = vpop.f32.mrb[0].mxu0
        %3233 = vmatprep.mubr.bf16.mxu0 0
        %3234 = vmatmul.mubr.bf16.gmra.mrb[0].mxu0 %v3180
        %v3235 = vpop.f32.mrb[0].mxu0
        %v3236 = vadd.f32 0.0, %v3235
        %v3237 = vpop.f32.mrb[0].mxu0
        %v3238 = vpop.f32.mrb[0].mxu0
        %v3239 = vadd.f32 0.0, %v3238
        %v3240 = vpop.f32.mrb[0].mxu0
        %3241 = vmatprep.mubr.bf16.mxu0 0
        %3242 = vmatmul.mubr.bf16.gmra.mrb[0].mxu0 %v3183
        %v3243 = vpop.f32.mrb[0].mxu0
        %v3244 = vadd.f32 0.0, %v3243
        %v3245 = vpop.f32.mrb[0].mxu0
        %v3246 = vpop.f32.mrb[0].mxu0
        %v3247 = vadd.f32 0.0, %v3246
        %v3248 = vpop.f32.mrb[0].mxu0
        %3249 = vdwg.mxu0
        %3250 = vrot.lane.b32.xlu0 %v1290, 64
        %v3251 = vpop.permute.xlu0 %3250
        %3252 = vrot.lane.b32.xlu0 %v1291, 64
        %v3253 = vpop.permute.xlu0 %3252
        %3254 = vrot.lane.b32.xlu0 %v1292, 64
        %v3255 = vpop.permute.xlu0 %3254
        %3256 = vrot.lane.b32.xlu0 %v1293, 64
        %v3257 = vpop.permute.xlu0 %3256
        %v3263 = vsel %vm2107, %v2708, 0
        %v3266 = vsel %vm2107, %v2709, 0
        %v3269 = vsel %vm2107, %v2710, 0
        %v3272 = vsel %vm2107, %v2711, 0
        %3274 = vmatprep.subr.bf16.mxu0 0
        %3275 = vmatpush1.bf16.msra.mxu0 %v3251
        %3276 = vmatprep.subr.bf16.mxu0 0
        %3277 = vmatpush1.bf16.msra.mxu0 %v3253
        %3278 = vmatprep.subr.bf16.mxu0 0
        %3279 = vmatpush1.bf16.msra.mxu0 %v3255
        %3280 = vmatprep.subr.bf16.mxu0 0
        %3281 = vmatpush1.bf16.msra.mxu0 %v3257
        %3282 = vmatprep.subr.bf16.mxu0 0
        %3283 = vmatpush1.bf16.msra.mxu0 0
        %3284 = vmatprep.subr.bf16.mxu0 0
        %3285 = vmatpush1.bf16.msra.mxu0 0
        %3286 = vmatprep.subr.bf16.mxu0 0
        %3287 = vmatpush1.bf16.msra.mxu0 0
        %3288 = vmatprep.subr.bf16.mxu0 0
        %3289 = vmatpush1.bf16.msra.mxu0 0
        %3290 = vmatprep.subr.bf16.mxu0 0
        %3291 = vmatpush1.bf16.msra.mxu0 0
        %3292 = vmatprep.subr.bf16.mxu0 0
        %3293 = vmatpush1.bf16.msra.mxu0 0
        %3294 = vmatprep.subr.bf16.mxu0 0
        %3295 = vmatpush1.bf16.msra.mxu0 0
        %3296 = vmatprep.subr.bf16.mxu0 0
        %3297 = vmatpush1.bf16.msra.mxu0 0
        %3298 = vmatprep.subr.bf16.mxu0 0
        %3299 = vmatpush1.bf16.msra.mxu0 0
        %3300 = vmatprep.subr.bf16.mxu0 0
        %3301 = vmatpush1.bf16.msra.mxu0 0
        %3302 = vmatprep.subr.bf16.mxu0 0
        %3303 = vmatpush1.bf16.msra.mxu0 0
        %3304 = vmatprep.subr.bf16.mxu0 0
        %3305 = vmatpush1.bf16.msra.mxu0 0
        %3306 = vmatprep.mubr.bf16.mxu0 0
        %3307 = vmatmul.mubr.bf16.gmra.mrb[0].mxu0 %v3263
        %v3308 = vpop.f32.mrb[0].mxu0
        %v3309 = vadd.f32 0.0, %v3308
        %v3310 = vpop.f32.mrb[0].mxu0
        %v3311 = vpop.f32.mrb[0].mxu0
        %v3312 = vadd.f32 0.0, %v3311
        %v3313 = vpop.f32.mrb[0].mxu0
        %3314 = vmatprep.mubr.bf16.mxu0 0
        %3315 = vmatmul.mubr.bf16.gmra.mrb[0].mxu0 %v3266
        %v3316 = vpop.f32.mrb[0].mxu0
        %v3317 = vadd.f32 0.0, %v3316
        %v3318 = vpop.f32.mrb[0].mxu0
        %v3319 = vpop.f32.mrb[0].mxu0
        %v3320 = vadd.f32 0.0, %v3319
        %v3321 = vpop.f32.mrb[0].mxu0
        %3322 = vmatprep.mubr.bf16.mxu0 0
        %3323 = vmatmul.mubr.bf16.gmra.mrb[0].mxu0 %v3269
        %v3324 = vpop.f32.mrb[0].mxu0
        %v3325 = vadd.f32 0.0, %v3324
        %v3326 = vpop.f32.mrb[0].mxu0
        %v3327 = vpop.f32.mrb[0].mxu0
        %v3328 = vadd.f32 0.0, %v3327
        %v3329 = vpop.f32.mrb[0].mxu0
        %3330 = vmatprep.mubr.bf16.mxu0 0
        %3331 = vmatmul.mubr.bf16.gmra.mrb[0].mxu0 %v3272
        %v3332 = vpop.f32.mrb[0].mxu0
        %v3333 = vadd.f32 0.0, %v3332
        %v3334 = vpop.f32.mrb[0].mxu0
        %v3335 = vpop.f32.mrb[0].mxu0
        %v3336 = vadd.f32 0.0, %v3335
        %v3337 = vpop.f32.mrb[0].mxu0
        %3338 = vdwg.mxu0
        %3339 = vrot.lane.b32.xlu0 %v1294, 64
        %v3340 = vpop.permute.xlu0 %3339
        %3341 = vrot.lane.b32.xlu0 %v1295, 64
        %v3342 = vpop.permute.xlu0 %3341
        %3343 = vrot.lane.b32.xlu0 %v1296, 64
        %v3344 = vpop.permute.xlu0 %3343
        %3345 = vrot.lane.b32.xlu0 %v1297, 64
        %v3346 = vpop.permute.xlu0 %3345
        %v3352 = vsel %vm2107, %v2712, 0
        %v3355 = vsel %vm2107, %v2713, 0
        %v3358 = vsel %vm2107, %v2714, 0
        %v3361 = vsel %vm2107, %v2715, 0
        %3363 = vmatprep.subr.bf16.mxu0 0
        %3364 = vmatpush1.bf16.msra.mxu0 %v3340
        %3365 = vmatprep.subr.bf16.mxu0 0
        %3366 = vmatpush1.bf16.msra.mxu0 %v3342
        %3367 = vmatprep.subr.bf16.mxu0 0
        %3368 = vmatpush1.bf16.msra.mxu0 %v3344
        %3369 = vmatprep.subr.bf16.mxu0 0
        %3370 = vmatpush1.bf16.msra.mxu0 %v3346
        %3371 = vmatprep.subr.bf16.mxu0 0
        %3372 = vmatpush1.bf16.msra.mxu0 0
        %3373 = vmatprep.subr.bf16.mxu0 0
        %3374 = vmatpush1.bf16.msra.mxu0 0
        %3375 = vmatprep.subr.bf16.mxu0 0
        %3376 = vmatpush1.bf16.msra.mxu0 0
        %3377 = vmatprep.subr.bf16.mxu0 0
        %3378 = vmatpush1.bf16.msra.mxu0 0
        %3379 = vmatprep.subr.bf16.mxu0 0
        %3380 = vmatpush1.bf16.msra.mxu0 0
        %3381 = vmatprep.subr.bf16.mxu0 0
        %3382 = vmatpush1.bf16.msra.mxu0 0
        %3383 = vmatprep.subr.bf16.mxu0 0
        %3384 = vmatpush1.bf16.msra.mxu0 0
        %3385 = vmatprep.subr.bf16.mxu0 0
        %3386 = vmatpush1.bf16.msra.mxu0 0
        %3387 = vmatprep.subr.bf16.mxu0 0
        %3388 = vmatpush1.bf16.msra.mxu0 0
        %3389 = vmatprep.subr.bf16.mxu0 0
        %3390 = vmatpush1.bf16.msra.mxu0 0
        %3391 = vmatprep.subr.bf16.mxu0 0
        %3392 = vmatpush1.bf16.msra.mxu0 0
        %3393 = vmatprep.subr.bf16.mxu0 0
        %3394 = vmatpush1.bf16.msra.mxu0 0
        %3395 = vmatprep.mubr.bf16.mxu0 0
        %3396 = vmatmul.mubr.bf16.gmra.mrb[0].mxu0 %v3352
        %v3397 = vpop.f32.mrb[0].mxu0
        %v3398 = vadd.f32 0.0, %v3397
        %v3399 = vpop.f32.mrb[0].mxu0
        %v3400 = vpop.f32.mrb[0].mxu0
        %v3401 = vadd.f32 0.0, %v3400
        %v3402 = vpop.f32.mrb[0].mxu0
        %3403 = vmatprep.mubr.bf16.mxu0 0
        %3404 = vmatmul.mubr.bf16.gmra.mrb[0].mxu0 %v3355
        %v3405 = vpop.f32.mrb[0].mxu0
        %v3406 = vadd.f32 0.0, %v3405
        %v3407 = vpop.f32.mrb[0].mxu0
        %v3408 = vpop.f32.mrb[0].mxu0
        %v3409 = vadd.f32 0.0, %v3408
        %v3410 = vpop.f32.mrb[0].mxu0
        %3411 = vmatprep.mubr.bf16.mxu0 0
        %3412 = vmatmul.mubr.bf16.gmra.mrb[0].mxu0 %v3358
        %v3413 = vpop.f32.mrb[0].mxu0
        %v3414 = vadd.f32 0.0, %v3413
        %v3415 = vpop.f32.mrb[0].mxu0
        %v3416 = vpop.f32.mrb[0].mxu0
        %v3417 = vadd.f32 0.0, %v3416
        %v3418 = vpop.f32.mrb[0].mxu0
        %3419 = vmatprep.mubr.bf16.mxu0 0
        %3420 = vmatmul.mubr.bf16.gmra.mrb[0].mxu0 %v3361
        %v3421 = vpop.f32.mrb[0].mxu0
        %v3422 = vadd.f32 0.0, %v3421
        %v3423 = vpop.f32.mrb[0].mxu0
        %v3424 = vpop.f32.mrb[0].mxu0
        %v3425 = vadd.f32 0.0, %v3424
        %v3426 = vpop.f32.mrb[0].mxu0
        %3427 = vdwg.mxu0
        %v3428 = vrcp.pop %v2494
        %v3429 = vrcp.pop %v2497
        %v3430 = vrcp.pop %v2500
        %v3431 = vrcp.pop %v2503
        %v3432 = vrcp.pop %v2506
        %v3433 = vrcp.pop %v2509
        %v3434 = vrcp.pop %v2512
        %v3435 = vrcp.pop %v2515
        %v3436 = vrcp.pop %v2518
        %v3437 = vrcp.pop %v2521
        %v3438 = vrcp.pop %v2524
        %v3439 = vrcp.pop %v2527
        %v3440 = vrcp.pop %v2530
        %v3441 = vrcp.pop %v2533
        %v3442 = vrcp.pop %v2536
        %v3443 = vrcp.pop %v2539
        %v3444 = vrcp.pop %v2542
        %v3445 = vrcp.pop %v2545
        %v3446 = vrcp.pop %v2548
        %v3447 = vrcp.pop %v2551
        %v3448 = vrcp.pop %v2554
        %v3449 = vrcp.pop %v2557
        %v3450 = vrcp.pop %v2560
        %v3451 = vrcp.pop %v2563
        %v3452 = vrcp.pop %v2566
        %v3453 = vrcp.pop %v2569
        %v3454 = vrcp.pop %v2572
        %v3455 = vrcp.pop %v2575
        %v3456 = vrcp.pop %v2578
        %v3457 = vrcp.pop %v2581
        %v3458 = vrcp.pop %v2584
        %v3459 = vrcp.pop %v2587
        %v3460 = vrcp.pop %v2590
        %v3461 = vrcp.pop %v2593
        %v3462 = vrcp.pop %v2596
        %v3463 = vrcp.pop %v2599
        %v3464 = vrcp.pop %v2602
        %v3465 = vrcp.pop %v2605
        %v3466 = vrcp.pop %v2608
        %v3467 = vrcp.pop %v2611
        %v3468 = vrcp.pop %v2614
        %v3469 = vrcp.pop %v2617
        %v3470 = vrcp.pop %v2620
        %v3471 = vrcp.pop %v2623
        %v3472 = vrcp.pop %v2626
        %v3473 = vrcp.pop %v2629
        %v3474 = vrcp.pop %v2632
        %v3475 = vrcp.pop %v2635
        %v3476 = vrcp.pop %v2638
        %v3477 = vrcp.pop %v2641
        %v3478 = vrcp.pop %v2644
        %v3479 = vrcp.pop %v2647
        %v3480 = vrcp.pop %v2650
        %v3481 = vrcp.pop %v2653
        %v3482 = vrcp.pop %v2656
        %v3483 = vrcp.pop %v2659
        %v3484 = vrcp.pop %v2662
        %v3485 = vrcp.pop %v2665
        %v3486 = vrcp.pop %v2668
        %v3487 = vrcp.pop %v2671
        %v3488 = vrcp.pop %v2674
        %v3489 = vrcp.pop %v2677
        %v3490 = vrcp.pop %v2680
        %v3491 = vrcp.pop %v2683
        %v3492 = vmul.f32 %v2775, %v3428
        %v3493 = vmul.f32 %v2778, %v3429
        %v3494 = vmul.f32 %v2783, %v3430
        %v3495 = vmul.f32 %v2786, %v3431
        %v3496 = vmul.f32 %v2791, %v3432
        %v3497 = vmul.f32 %v2794, %v3433
        %v3498 = vmul.f32 %v2799, %v3434
        %v3499 = vmul.f32 %v2802, %v3435
        %v3500 = vmul.f32 %v2864, %v3436
        %v3501 = vmul.f32 %v2867, %v3437
        %v3502 = vmul.f32 %v2872, %v3438
        %v3503 = vmul.f32 %v2875, %v3439
        %v3504 = vmul.f32 %v2880, %v3440
        %v3505 = vmul.f32 %v2883, %v3441
        %v3506 = vmul.f32 %v2888, %v3442
        %v3507 = vmul.f32 %v2891, %v3443
        %v3508 = vmul.f32 %v2953, %v3444
        %v3509 = vmul.f32 %v2956, %v3445
        %v3510 = vmul.f32 %v2961, %v3446
        %v3511 = vmul.f32 %v2964, %v3447
        %v3512 = vmul.f32 %v2969, %v3448
        %v3513 = vmul.f32 %v2972, %v3449
        %v3514 = vmul.f32 %v2977, %v3450
        %v3515 = vmul.f32 %v2980, %v3451
        %v3516 = vmul.f32 %v3042, %v3452
        %v3517 = vmul.f32 %v3045, %v3453
        %v3518 = vmul.f32 %v3050, %v3454
        %v3519 = vmul.f32 %v3053, %v3455
        %v3520 = vmul.f32 %v3058, %v3456
        %v3521 = vmul.f32 %v3061, %v3457
        %v3522 = vmul.f32 %v3066, %v3458
        %v3523 = vmul.f32 %v3069, %v3459
        %v3524 = vmul.f32 %v3131, %v3460
        %v3525 = vmul.f32 %v3134, %v3461
        %v3526 = vmul.f32 %v3139, %v3462
        %v3527 = vmul.f32 %v3142, %v3463
        %v3528 = vmul.f32 %v3147, %v3464
        %v3529 = vmul.f32 %v3150, %v3465
        %v3530 = vmul.f32 %v3155, %v3466
        %v3531 = vmul.f32 %v3158, %v3467
        %v3532 = vmul.f32 %v3220, %v3468
        %v3533 = vmul.f32 %v3223, %v3469
        %v3534 = vmul.f32 %v3228, %v3470
        %v3535 = vmul.f32 %v3231, %v3471
        %v3536 = vmul.f32 %v3236, %v3472
        %v3537 = vmul.f32 %v3239, %v3473
        %v3538 = vmul.f32 %v3244, %v3474
        %v3539 = vmul.f32 %v3247, %v3475
        %v3540 = vmul.f32 %v3309, %v3476
        %v3541 = vmul.f32 %v3312, %v3477
        %v3542 = vmul.f32 %v3317, %v3478
        %v3543 = vmul.f32 %v3320, %v3479
        %v3544 = vmul.f32 %v3325, %v3480
        %v3545 = vmul.f32 %v3328, %v3481
        %v3546 = vmul.f32 %v3333, %v3482
        %v3547 = vmul.f32 %v3336, %v3483
        %v3548 = vmul.f32 %v3398, %v3484
        %v3549 = vmul.f32 %v3401, %v3485
        %v3550 = vmul.f32 %v3406, %v3486
        %v3551 = vmul.f32 %v3409, %v3487
        %v3552 = vmul.f32 %v3414, %v3488
        %v3553 = vmul.f32 %v3417, %v3489
        %v3554 = vmul.f32 %v3422, %v3490
        %v3555 = vmul.f32 %v3425, %v3491
        %3556 = vst.msk [vmem:[#allocation3] sm:$0xff] %vm1310, %v3492
        %3557 = vst.msk [vmem:[#allocation3 + $0x8] sm:$0xff] %vm1310, %v3493
        %3558 = vst.msk [vmem:[#allocation3 + $0x10] sm:$0xff] %vm1310, %v3494
        %3559 = vst.msk [vmem:[#allocation3 + $0x18] sm:$0xff] %vm1310, %v3495
        %3560 = vst.msk [vmem:[#allocation3 + $0x20] sm:$0xff] %vm1310, %v3496
        %3561 = vst.msk [vmem:[#allocation3 + $0x28] sm:$0xff] %vm1310, %v3497
        %3562 = vst.msk [vmem:[#allocation3 + $0x30] sm:$0xff] %vm1310, %v3498
        %3563 = vst.msk [vmem:[#allocation3 + $0x38] sm:$0xff] %vm1310, %v3499
        %3572 = vrot.lane.b32.xlu0 %v3500, 4
        %v3573 = vpop.permute.xlu0 %3572
        %3574 = vrot.lane.b32.xlu0 %v3501, 4
        %v3575 = vpop.permute.xlu0 %3574
        %3576 = vrot.lane.b32.xlu0 %v3502, 4
        %v3577 = vpop.permute.xlu0 %3576
        %3578 = vrot.lane.b32.xlu0 %v3503, 4
        %v3579 = vpop.permute.xlu0 %3578
        %3580 = vrot.lane.b32.xlu0 %v3504, 4
        %v3581 = vpop.permute.xlu0 %3580
        %3582 = vrot.lane.b32.xlu0 %v3505, 4
        %v3583 = vpop.permute.xlu0 %3582
        %3584 = vrot.lane.b32.xlu0 %v3506, 4
        %v3585 = vpop.permute.xlu0 %3584
        %3586 = vrot.lane.b32.xlu0 %v3507, 4
        %v3587 = vpop.permute.xlu0 %3586
        %vm3596 = vcmask 64544
        %3597 = vst.msk [vmem:[#allocation3] sm:$0xff] %vm3596, %v3573
        %3598 = vst.msk [vmem:[#allocation3 + $0x8] sm:$0xff] %vm3596, %v3575
        %3599 = vst.msk [vmem:[#allocation3 + $0x10] sm:$0xff] %vm3596, %v3577
        %3600 = vst.msk [vmem:[#allocation3 + $0x18] sm:$0xff] %vm3596, %v3579
        %3601 = vst.msk [vmem:[#allocation3 + $0x20] sm:$0xff] %vm3596, %v3581
        %3602 = vst.msk [vmem:[#allocation3 + $0x28] sm:$0xff] %vm3596, %v3583
        %3603 = vst.msk [vmem:[#allocation3 + $0x30] sm:$0xff] %vm3596, %v3585
        %3604 = vst.msk [vmem:[#allocation3 + $0x38] sm:$0xff] %vm3596, %v3587
        %3613 = vrot.lane.b32.xlu0 %v3508, 8
        %v3614 = vpop.permute.xlu0 %3613
        %3615 = vrot.lane.b32.xlu0 %v3509, 8
        %v3616 = vpop.permute.xlu0 %3615
        %3617 = vrot.lane.b32.xlu0 %v3510, 8
        %v3618 = vpop.permute.xlu0 %3617
        %3619 = vrot.lane.b32.xlu0 %v3511, 8
        %v3620 = vpop.permute.xlu0 %3619
        %3621 = vrot.lane.b32.xlu0 %v3512, 8
        %v3622 = vpop.permute.xlu0 %3621
        %3623 = vrot.lane.b32.xlu0 %v3513, 8
        %v3624 = vpop.permute.xlu0 %3623
        %3625 = vrot.lane.b32.xlu0 %v3514, 8
        %v3626 = vpop.permute.xlu0 %3625
        %3627 = vrot.lane.b32.xlu0 %v3515, 8
        %v3628 = vpop.permute.xlu0 %3627
        %vm3637 = vcmask 97344
        %3638 = vst.msk [vmem:[#allocation3] sm:$0xff] %vm3637, %v3614
        %3639 = vst.msk [vmem:[#allocation3 + $0x8] sm:$0xff] %vm3637, %v3616
        %3640 = vst.msk [vmem:[#allocation3 + $0x10] sm:$0xff] %vm3637, %v3618
        %3641 = vst.msk [vmem:[#allocation3 + $0x18] sm:$0xff] %vm3637, %v3620
        %3642 = vst.msk [vmem:[#allocation3 + $0x20] sm:$0xff] %vm3637, %v3622
        %3643 = vst.msk [vmem:[#allocation3 + $0x28] sm:$0xff] %vm3637, %v3624
        %3644 = vst.msk [vmem:[#allocation3 + $0x30] sm:$0xff] %vm3637, %v3626
        %3645 = vst.msk [vmem:[#allocation3 + $0x38] sm:$0xff] %vm3637, %v3628
        %3654 = vrot.lane.b32.xlu0 %v3516, 12
        %v3655 = vpop.permute.xlu0 %3654
        %3656 = vrot.lane.b32.xlu0 %v3517, 12
        %v3657 = vpop.permute.xlu0 %3656
        %3658 = vrot.lane.b32.xlu0 %v3518, 12
        %v3659 = vpop.permute.xlu0 %3658
        %3660 = vrot.lane.b32.xlu0 %v3519, 12
        %v3661 = vpop.permute.xlu0 %3660
        %3662 = vrot.lane.b32.xlu0 %v3520, 12
        %v3663 = vpop.permute.xlu0 %3662
        %3664 = vrot.lane.b32.xlu0 %v3521, 12
        %v3665 = vpop.permute.xlu0 %3664
        %3666 = vrot.lane.b32.xlu0 %v3522, 12
        %v3667 = vpop.permute.xlu0 %3666
        %3668 = vrot.lane.b32.xlu0 %v3523, 12
        %v3669 = vpop.permute.xlu0 %3668
        %vm3678 = vcmask 130144
        %3679 = vst.msk [vmem:[#allocation3] sm:$0xff] %vm3678, %v3655
        %3680 = vst.msk [vmem:[#allocation3 + $0x8] sm:$0xff] %vm3678, %v3657
        %3681 = vst.msk [vmem:[#allocation3 + $0x10] sm:$0xff] %vm3678, %v3659
        %3682 = vst.msk [vmem:[#allocation3 + $0x18] sm:$0xff] %vm3678, %v3661
        %3683 = vst.msk [vmem:[#allocation3 + $0x20] sm:$0xff] %vm3678, %v3663
        %3684 = vst.msk [vmem:[#allocation3 + $0x28] sm:$0xff] %vm3678, %v3665
        %3685 = vst.msk [vmem:[#allocation3 + $0x30] sm:$0xff] %vm3678, %v3667
        %3686 = vst.msk [vmem:[#allocation3 + $0x38] sm:$0xff] %vm3678, %v3669
        %3695 = vrot.lane.b32.xlu0 %v3524, 16
        %v3696 = vpop.permute.xlu0 %3695
        %3697 = vrot.lane.b32.xlu0 %v3525, 16
        %v3698 = vpop.permute.xlu0 %3697
        %3699 = vrot.lane.b32.xlu0 %v3526, 16
        %v3700 = vpop.permute.xlu0 %3699
        %3701 = vrot.lane.b32.xlu0 %v3527, 16
        %v3702 = vpop.permute.xlu0 %3701
        %3703 = vrot.lane.b32.xlu0 %v3528, 16
        %v3704 = vpop.permute.xlu0 %3703
        %3705 = vrot.lane.b32.xlu0 %v3529, 16
        %v3706 = vpop.permute.xlu0 %3705
        %3707 = vrot.lane.b32.xlu0 %v3530, 16
        %v3708 = vpop.permute.xlu0 %3707
        %3709 = vrot.lane.b32.xlu0 %v3531, 16
        %v3710 = vpop.permute.xlu0 %3709
        %vm3719 = vcmask 162944
        %3720 = vst.msk [vmem:[#allocation3] sm:$0xff] %vm3719, %v3696
        %3721 = vst.msk [vmem:[#allocation3 + $0x8] sm:$0xff] %vm3719, %v3698
        %3722 = vst.msk [vmem:[#allocation3 + $0x10] sm:$0xff] %vm3719, %v3700
        %3723 = vst.msk [vmem:[#allocation3 + $0x18] sm:$0xff] %vm3719, %v3702
        %3724 = vst.msk [vmem:[#allocation3 + $0x20] sm:$0xff] %vm3719, %v3704
        %3725 = vst.msk [vmem:[#allocation3 + $0x28] sm:$0xff] %vm3719, %v3706
        %3726 = vst.msk [vmem:[#allocation3 + $0x30] sm:$0xff] %vm3719, %v3708
        %3727 = vst.msk [vmem:[#allocation3 + $0x38] sm:$0xff] %vm3719, %v3710
        %3736 = vrot.lane.b32.xlu0 %v3532, 20
        %v3737 = vpop.permute.xlu0 %3736
        %3738 = vrot.lane.b32.xlu0 %v3533, 20
        %v3739 = vpop.permute.xlu0 %3738
        %3740 = vrot.lane.b32.xlu0 %v3534, 20
        %v3741 = vpop.permute.xlu0 %3740
        %3742 = vrot.lane.b32.xlu0 %v3535, 20
        %v3743 = vpop.permute.xlu0 %3742
        %3744 = vrot.lane.b32.xlu0 %v3536, 20
        %v3745 = vpop.permute.xlu0 %3744
        %3746 = vrot.lane.b32.xlu0 %v3537, 20
        %v3747 = vpop.permute.xlu0 %3746
        %3748 = vrot.lane.b32.xlu0 %v3538, 20
        %v3749 = vpop.permute.xlu0 %3748
        %3750 = vrot.lane.b32.xlu0 %v3539, 20
        %v3751 = vpop.permute.xlu0 %3750
        %vm3760 = vcmask 195744
        %3761 = vst.msk [vmem:[#allocation3] sm:$0xff] %vm3760, %v3737
        %3762 = vst.msk [vmem:[#allocation3 + $0x8] sm:$0xff] %vm3760, %v3739
        %3763 = vst.msk [vmem:[#allocation3 + $0x10] sm:$0xff] %vm3760, %v3741
        %3764 = vst.msk [vmem:[#allocation3 + $0x18] sm:$0xff] %vm3760, %v3743
        %3765 = vst.msk [vmem:[#allocation3 + $0x20] sm:$0xff] %vm3760, %v3745
        %3766 = vst.msk [vmem:[#allocation3 + $0x28] sm:$0xff] %vm3760, %v3747
        %3767 = vst.msk [vmem:[#allocation3 + $0x30] sm:$0xff] %vm3760, %v3749
        %3768 = vst.msk [vmem:[#allocation3 + $0x38] sm:$0xff] %vm3760, %v3751
        %3777 = vrot.lane.b32.xlu0 %v3540, 24
        %v3778 = vpop.permute.xlu0 %3777
        %3779 = vrot.lane.b32.xlu0 %v3541, 24
        %v3780 = vpop.permute.xlu0 %3779
        %3781 = vrot.lane.b32.xlu0 %v3542, 24
        %v3782 = vpop.permute.xlu0 %3781
        %3783 = vrot.lane.b32.xlu0 %v3543, 24
        %v3784 = vpop.permute.xlu0 %3783
        %3785 = vrot.lane.b32.xlu0 %v3544, 24
        %v3786 = vpop.permute.xlu0 %3785
        %3787 = vrot.lane.b32.xlu0 %v3545, 24
        %v3788 = vpop.permute.xlu0 %3787
        %3789 = vrot.lane.b32.xlu0 %v3546, 24
        %v3790 = vpop.permute.xlu0 %3789
        %3791 = vrot.lane.b32.xlu0 %v3547, 24
        %v3792 = vpop.permute.xlu0 %3791
        %vm3801 = vcmask 228544
        %3802 = vst.msk [vmem:[#allocation3] sm:$0xff] %vm3801, %v3778
        %3803 = vst.msk [vmem:[#allocation3 + $0x8] sm:$0xff] %vm3801, %v3780
        %3804 = vst.msk [vmem:[#allocation3 + $0x10] sm:$0xff] %vm3801, %v3782
        %3805 = vst.msk [vmem:[#allocation3 + $0x18] sm:$0xff] %vm3801, %v3784
        %3806 = vst.msk [vmem:[#allocation3 + $0x20] sm:$0xff] %vm3801, %v3786
        %3807 = vst.msk [vmem:[#allocation3 + $0x28] sm:$0xff] %vm3801, %v3788
        %3808 = vst.msk [vmem:[#allocation3 + $0x30] sm:$0xff] %vm3801, %v3790
        %3809 = vst.msk [vmem:[#allocation3 + $0x38] sm:$0xff] %vm3801, %v3792
        %3818 = vrot.lane.b32.xlu0 %v3548, 28
        %v3819 = vpop.permute.xlu0 %3818
        %3820 = vrot.lane.b32.xlu0 %v3549, 28
        %v3821 = vpop.permute.xlu0 %3820
        %3822 = vrot.lane.b32.xlu0 %v3550, 28
        %v3823 = vpop.permute.xlu0 %3822
        %3824 = vrot.lane.b32.xlu0 %v3551, 28
        %v3825 = vpop.permute.xlu0 %3824
        %3826 = vrot.lane.b32.xlu0 %v3552, 28
        %v3827 = vpop.permute.xlu0 %3826
        %3828 = vrot.lane.b32.xlu0 %v3553, 28
        %v3829 = vpop.permute.xlu0 %3828
        %3830 = vrot.lane.b32.xlu0 %v3554, 28
        %v3831 = vpop.permute.xlu0 %3830
        %3832 = vrot.lane.b32.xlu0 %v3555, 28
        %v3833 = vpop.permute.xlu0 %3832
        %vm3842 = vcmask 261344
        %3843 = vst.msk [vmem:[#allocation3] sm:$0xff] %vm3842, %v3819
        %3844 = vst.msk [vmem:[#allocation3 + $0x8] sm:$0xff] %vm3842, %v3821
        %3845 = vst.msk [vmem:[#allocation3 + $0x10] sm:$0xff] %vm3842, %v3823
        %3846 = vst.msk [vmem:[#allocation3 + $0x18] sm:$0xff] %vm3842, %v3825
        %3847 = vst.msk [vmem:[#allocation3 + $0x20] sm:$0xff] %vm3842, %v3827
        %3848 = vst.msk [vmem:[#allocation3 + $0x28] sm:$0xff] %vm3842, %v3829
        %3849 = vst.msk [vmem:[#allocation3 + $0x30] sm:$0xff] %vm3842, %v3831
        %3850 = vst.msk [vmem:[#allocation3 + $0x38] sm:$0xff] %vm3842, %v3833
        %v3851 = vld [vmem:[#allocation3] sm:$0xff]
        %v3852 = vld [vmem:[#allocation3 + $0x8] sm:$0xff]
        %v3853 = vld [vmem:[#allocation3 + $0x10] sm:$0xff]
        %v3854 = vld [vmem:[#allocation3 + $0x18] sm:$0xff]
        %v3855 = vld [vmem:[#allocation3 + $0x20] sm:$0xff]
        %v3856 = vld [vmem:[#allocation3 + $0x28] sm:$0xff]
        %v3857 = vld [vmem:[#allocation3 + $0x30] sm:$0xff]
        %v3858 = vld [vmem:[#allocation3 + $0x38] sm:$0xff]
        %v3859 = vpack.c.bf16 %v3852, %v3851
        %v3860 = vpack.c.bf16 %v3854, %v3853
        %v3861 = vpack.c.bf16 %v3856, %v3855
        %v3862 = vpack.c.bf16 %v3858, %v3857
        %v3863 = vld [vmem:[#allocation12] sm:$0xf]
        %v3864 = vld [vmem:[#allocation12 + $0x4] sm:$0xf]
        %v3865 = vld [vmem:[#allocation12 + $0x8] sm:$0xf]
        %v3866 = vld [vmem:[#allocation12 + $0xc] sm:$0xf]
        %v3867 = vld [vmem:[#allocation13] sm:$0x1]
        %v3869 = vlaneseq
        %v3870 = vshrl.u32 %v3869, 7
        %v3871 = vsub.s32 0, %v3870
        %v3872 = vrot.slane %v3867, %v3871
        %v3878 = vunpack.c.l.b16 %v3863
        %v3879 = vunpack.c.l.b16 %v3864
        %v3880 = vunpack.c.l.b16 %v3865
        %v3881 = vunpack.c.l.b16 %v3866
        %v3882 = vpack.c.b16 %v3879, %v3878
        %v3883 = vpack.c.b16 %v3881, %v3880
        %v3887 = vsel %vm995, %v3859, 0
        %v3890 = vsel %vm995, %v3860, 0
        %v3893 = vsel %vm995, %v3861, 0
        %v3896 = vsel %vm995, %v3862, 0
        %3898 = vmatprep.subr.bf16.mxu0 0
        %3899 = vmatpush1.bf16.msra.mxu0 %v3882
        %3900 = vmatprep.subr.bf16.mxu0 0
        %3901 = vmatpush1.bf16.msra.mxu0 %v3883
        %3902 = vmatprep.subr.bf16.mxu0 0
        %3903 = vmatpush1.bf16.msra.mxu0 0
        %3904 = vmatprep.subr.bf16.mxu0 0
        %3905 = vmatpush1.bf16.msra.mxu0 0
        %3906 = vmatprep.subr.bf16.mxu0 0
        %3907 = vmatpush1.bf16.msra.mxu0 0
        %3908 = vmatprep.subr.bf16.mxu0 0
        %3909 = vmatpush1.bf16.msra.mxu0 0
        %3910 = vmatprep.subr.bf16.mxu0 0
        %3911 = vmatpush1.bf16.msra.mxu0 0
        %3912 = vmatprep.subr.bf16.mxu0 0
        %3913 = vmatpush1.bf16.msra.mxu0 0
        %3914 = vmatprep.subr.bf16.mxu0 0
        %3915 = vmatpush1.bf16.msra.mxu0 0
        %3916 = vmatprep.subr.bf16.mxu0 0
        %3917 = vmatpush1.bf16.msra.mxu0 0
        %3918 = vmatprep.subr.bf16.mxu0 0
        %3919 = vmatpush1.bf16.msra.mxu0 0
        %3920 = vmatprep.subr.bf16.mxu0 0
        %3921 = vmatpush1.bf16.msra.mxu0 0
        %3922 = vmatprep.subr.bf16.mxu0 0
        %3923 = vmatpush1.bf16.msra.mxu0 0
        %3924 = vmatprep.subr.bf16.mxu0 0
        %3925 = vmatpush1.bf16.msra.mxu0 0
        %3926 = vmatprep.subr.bf16.mxu0 0
        %3927 = vmatpush1.bf16.msra.mxu0 0
        %3928 = vmatprep.subr.bf16.mxu0 0
        %3929 = vmatpush1.bf16.msra.mxu0 0
        %3930 = vmatprep.mubr.bf16.mxu0 0
        %3931 = vmatmul.mubr.bf16.gmra.mrb[0].mxu0 %v3887
        %v3932 = vpop.f32.mrb[0].mxu0
        %v3933 = vadd.f32 %v3872, %v3932
        %v3934 = vpop.f32.mrb[0].mxu0
        %v3935 = vpop.f32.mrb[0].mxu0
        %v3936 = vadd.f32 %v3872, %v3935
        %v3937 = vpop.f32.mrb[0].mxu0
        %3938 = vmatprep.mubr.bf16.mxu0 0
        %3939 = vmatmul.mubr.bf16.gmra.mrb[0].mxu0 %v3890
        %v3940 = vpop.f32.mrb[0].mxu0
        %v3941 = vadd.f32 %v3872, %v3940
        %v3942 = vpop.f32.mrb[0].mxu0
        %v3943 = vpop.f32.mrb[0].mxu0
        %v3944 = vadd.f32 %v3872, %v3943
        %v3945 = vpop.f32.mrb[0].mxu0
        %3946 = vmatprep.mubr.bf16.mxu0 0
        %3947 = vmatmul.mubr.bf16.gmra.mrb[0].mxu0 %v3893
        %v3948 = vpop.f32.mrb[0].mxu0
        %v3949 = vadd.f32 %v3872, %v3948
        %v3950 = vpop.f32.mrb[0].mxu0
        %v3951 = vpop.f32.mrb[0].mxu0
        %v3952 = vadd.f32 %v3872, %v3951
        %v3953 = vpop.f32.mrb[0].mxu0
        %3954 = vmatprep.mubr.bf16.mxu0 0
        %3955 = vmatmul.mubr.bf16.gmra.mrb[0].mxu0 %v3896
        %v3956 = vpop.f32.mrb[0].mxu0
        %v3957 = vadd.f32 %v3872, %v3956
        %v3958 = vpop.f32.mrb[0].mxu0
        %v3959 = vpop.f32.mrb[0].mxu0
        %v3960 = vadd.f32 %v3872, %v3959
        %v3961 = vpop.f32.mrb[0].mxu0
        %3962 = vdwg.mxu0
        %3963 = vst.msk [vmem:[%s338] sm:$0xff] %vm995, %v3933
        %3964 = vst.msk [vmem:[%s338 + $0x8] sm:$0xff] %vm995, %v3936
        %3965 = vst.msk [vmem:[%s338 + $0x10] sm:$0xff] %vm995, %v3941
        %3966 = vst.msk [vmem:[%s338 + $0x18] sm:$0xff] %vm995, %v3944
        %3967 = vst.msk [vmem:[%s338 + $0x20] sm:$0xff] %vm995, %v3949
        %3968 = vst.msk [vmem:[%s338 + $0x28] sm:$0xff] %vm995, %v3952
        %3969 = vst.msk [vmem:[%s338 + $0x30] sm:$0xff] %vm995, %v3957
        %3970 = vst.msk [vmem:[%s338 + $0x38] sm:$0xff] %vm995, %v3960
        %s3971 = sand.u32 %s165, 1
        %s3972 = scalar_lea.sflag [#allocation6], %s3971
        %s3973 = sand.u32 %s165, 1
        %s3974 = smul.addr %s3973, 64
        %s3975 = scalar_lea.vmem [#allocation15], %s3974
        // Predicated region
        $region69: #{tpu_custom_call.1} parent=43 // pred_check
          %p3976 = pneg %p175
        $region70: #{tpu_custom_call.1} parent=43 // pred_check_branch
          %3978 = sbr.rel (%p3976) target = $region72
        $region71: #{tpu_custom_call.1} parent=43 // pred_region
          %s3980 = ssub.s32 1024, 1024
          %3981 = vsyncadd %s3972, %s3980
          %s3982 = smul.addr %s26, 8
          %s3983 = smul.addr %s3982, 128
          %s3984 = scalar_lea.hbm %s6, %s3983
          %s3985 = sshll.u32 %s3975, 4
          %s3986 = int_to_ptr.vmem [resolvable:$true] %s3985
          %3991 = dma.vmem_to_hbm [thread:$0]  %s3986, 1024, %s3984, %s3972, 128, 128, 8
        $region72: #{tpu_custom_call.1} parent=43 // pred_fallthru
          _
      $region44: #{tpu_custom_call.1} parent=5 // pred_fallthru
        _
      %p3992 = scmp.le.s32.totalorder 2, %s21
      // Predicated region
      $region73: #{tpu_custom_call.1} parent=5 // pred_check
        %p3993 = pneg %p3992
      $region74: #{tpu_custom_call.1} parent=5 // pred_check_branch
        %3995 = sbr.rel (%p3993) target = $region76
      $region75: #{tpu_custom_call.1} parent=5 // pred_region
        %s3996 = ssub.s32 %s21, 2
        // Predicated region
        $region77: #{tpu_custom_call.1} parent=75 // pred_check
          %p3997 = pneg %p181
        $region78: #{tpu_custom_call.1} parent=75 // pred_check_branch
          %3999 = sbr.rel (%p3997) target = $region80
        $region79: #{tpu_custom_call.1} parent=75 // pred_region
          %s4000 = sand.u32 %s166, 1
          %s4001 = scalar_lea.sflag [#allocation6], %s4000
          %s4002 = sand.u32 %s166, 1
          %s4003 = smul.addr %s4002, 64
          %s4004 = scalar_lea.vmem [#allocation15], %s4003
          %4005 = dma.done %s4001, 1024
        $region80: #{tpu_custom_call.1} parent=75 // pred_fallthru
          _
      $region76: #{tpu_custom_call.1} parent=5 // pred_fallthru
        _
    $region6: #{tpu_custom_call.1} parent=1 // loop_footer
      %s25 = sadd.s32 1, %s21
    $region7: #{tpu_custom_call.1} parent=1 // loop_footer_branch
      %20 = sbr.rel target = $region3
    $region8: #{tpu_custom_call.1} parent=1 // loop_exit
      _
    %4006 = vsyncpa [#allocation5], 1
    %s4007 = scalar_lea.sflag [#allocation5], 1
    %4008 = vsyncpa %s4007, 1
    %4009 = vsyncpa [#allocation8], 1
    %4010 = vsyncpa [#allocation11], 1
    %4011 = vsyncpa [#allocation14], 1
    %4012 = vsyncpa [#allocation6], 1
    %s4013 = scalar_lea.sflag [#allocation6], 1
    %4014 = vsyncpa %s4013, 1

</llo_original>
